<compile_context>
chip_gen: v5e
topology: v5e:2x2
jax: 0.10.0
libtpu: 0.0.40
codegen_flags: <defaults>
</compile_context>

<pallas_src>
import functools

import jax
import jax.numpy as jnp
from jax.experimental import pallas as pl
from jax.experimental.pallas import tpu as pltpu


# ----------------------------- small helpers ------------------------------

def _rup(v, m):
    return -(-v // m) * m


def _tile_bytes(shape, itemsize):
    s = list(shape)
    if len(s) == 1:
        s[-1] = _rup(s[-1], 128)
    else:
        s[-2] = _rup(s[-2], 8)
        s[-1] = _rup(s[-1], 128)
    n = 1
    for v in s:
        n *= v
    return n * itemsize


def _layer_norm(x, gamma, beta, true_dim, mask, eps=1e-5):
    """LayerNorm over the last axis; `true_dim` real lanes, rest zero-padded."""
    inv_n = 1.0 / float(true_dim)
    mean = jnp.sum(x, axis=-1, keepdims=True) * inv_n
    diff = x - mean
    if mask is not None:
        diff = diff * mask          # keep pad lanes exactly zero
    var = jnp.sum(diff * diff, axis=-1, keepdims=True) * inv_n
    return diff * jax.lax.rsqrt(var + eps) * gamma + beta


# -------------------------------- kernel ----------------------------------

def _encoder_kernel(n_layers, n_heads, hd_true, hp, block_batch, seq_len,
                    emb_ref, wqkv_ref, bqkv_ref, wu_ref, small_ref,
                    w1_ref, b1_ref, w2_ref,
                    out_ref, h_scratch, cat_scratch):
    li = pl.program_id(1)
    nh = n_heads
    Bt = block_batch
    S = seq_len
    Hp = hp
    M = Bt * S

    # carried hidden state: (re)load the (already embedded) input at layer 0
    @pl.when(li == 0)
    def _():
        h_scratch[...] = emb_ref[...].reshape(M, Hp)

    h = h_scratch[...]                                       # (M, Hp) f32

    small = small_ref[0]                                     # (8, Hp) packed vectors
    bu, ln1g, ln1b = small[0:1, :], small[1:2, :], small[2:3, :]
    b2, ln2g, ln2b = small[3:4, :], small[4:5, :], small[5:6, :]

    if Hp == hd_true:
        mask = None
    else:
        mask = (jax.lax.broadcasted_iota(jnp.int32, (1, Hp), 1)
                < hd_true).astype(jnp.float32)

    # ---- fused Q|K|V projection: one bf16 MXU matmul, f32 accumulation ----
    qkv = jnp.dot(h.astype(jnp.bfloat16), wqkv_ref[0],
                  preferred_element_type=jnp.float32) + bqkv_ref[0]

    # PyTorch scales q and k each by hidden^-0.25; fold both into q.
    scale = float(hd_true) ** -0.5

    for head in range(nh):
        q = (qkv[:, head * Hp:(head + 1) * Hp] * scale
             ).reshape(Bt, S, Hp).astype(jnp.bfloat16)
        k = qkv[:, (nh + head) * Hp:(nh + head + 1) * Hp
                ].reshape(Bt, S, Hp).astype(jnp.bfloat16)
        v = qkv[:, (2 * nh + head) * Hp:(2 * nh + head + 1) * Hp
                ].reshape(Bt, S, Hp).astype(jnp.bfloat16)

        logits = jnp.einsum('bqd,bkd->bqk', q, k,
                            preferred_element_type=jnp.float32)   # (Bt, S, S)
        logits = logits - jnp.max(logits, axis=-1, keepdims=True)
        p = jnp.exp(logits)
        p = p * pl.reciprocal(jnp.sum(p, axis=-1, keepdims=True), approx=True)
        ho = jnp.einsum('bqk,bkd->bqd', p.astype(jnp.bfloat16), v,
                        preferred_element_type=jnp.float32)       # (Bt, S, Hp)

        # lane-aligned (Hp % 128 == 0) slice store -> one big unify matmul later
        cat_scratch[:, head * Hp:(head + 1) * Hp] = \
            ho.reshape(M, Hp).astype(jnp.bfloat16)

    # ---- unify projection: single matmul with K = nh*Hp ----
    u = jnp.dot(cat_scratch[...], wu_ref[0],
                preferred_element_type=jnp.float32) + bu

    # ---- residual + LN1 ----
    h = _layer_norm(u + h, ln1g, ln1b, hd_true, mask)

    # ---- MLP (bf16 weights, f32 accumulation) ----
    m = jnp.dot(h.astype(jnp.bfloat16), w1_ref[0],
                preferred_element_type=jnp.float32) + b1_ref[0]
    m = jnp.maximum(m, 0.0)
    m = jnp.dot(m.astype(jnp.bfloat16), w2_ref[0],
                preferred_element_type=jnp.float32) + b2

    # ---- residual + LN2 ----
    h = _layer_norm(m + h, ln2g, ln2b, hd_true, mask)
    h_scratch[...] = h

    # ---- lane-dense (Bt, S, Hp) output at the last layer step ----
    @pl.when(li == n_layers - 1)
    def _():
        out_ref[...] = h.reshape(Bt, S, Hp).astype(out_ref.dtype)


# ------------------------------ parameters --------------------------------

def init_params(key, hidden_dim, n_heads, n_layers):
    """Synthetic parameters.  Linear weights stored as (in_features, out_features)."""
    def nrm(k, shape, scale=0.02):
        return jax.random.normal(k, shape, dtype=jnp.float32) * scale

    keys = jax.random.split(key, 2 + n_layers)
    params = {
        "sem_w": nrm(keys[0], (3, hidden_dim)),
        "sem_b": jnp.zeros((1, hidden_dim), jnp.float32),
        "out_w": nrm(keys[1], (hidden_dim, 1)),
        "out_b": jnp.zeros((1, 1), jnp.float32),
        "layers": [],
    }
    for l in range(n_layers):
        lk = jax.random.split(keys[2 + l], 6)
        params["layers"].append({
            "wq": nrm(lk[0], (hidden_dim, hidden_dim * n_heads)),
            "bq": jnp.zeros((1, hidden_dim * n_heads), jnp.float32),
            "wk": nrm(lk[1], (hidden_dim, hidden_dim * n_heads)),
            "bk": jnp.zeros((1, hidden_dim * n_heads), jnp.float32),
            "wv": nrm(lk[2], (hidden_dim, hidden_dim * n_heads)),
            "bv": jnp.zeros((1, hidden_dim * n_heads), jnp.float32),
            "wu": nrm(lk[3], (hidden_dim * n_heads, hidden_dim)),
            "bu": jnp.zeros((1, hidden_dim), jnp.float32),
            "ln1g": jnp.ones((1, hidden_dim), jnp.float32),
            "ln1b": jnp.zeros((1, hidden_dim), jnp.float32),
            "w1": nrm(lk[4], (hidden_dim, hidden_dim * 4)),
            "b1": jnp.zeros((1, hidden_dim * 4), jnp.float32),
            "w2": nrm(lk[5], (hidden_dim * 4, hidden_dim)),
            "b2": jnp.zeros((1, hidden_dim), jnp.float32),
            "ln2g": jnp.ones((1, hidden_dim), jnp.float32),
            "ln2b": jnp.zeros((1, hidden_dim), jnp.float32),
        })
    return params


def prepack_params(params, *, hidden_dim, n_heads):
    """One-time packing: pad to lane multiples, fuse QKV, cast weights to bf16.

    Hoisted out of the per-call path so jit does not re-materialize the weights
    in HBM on every forward.
    """
    Hd = hidden_dim
    nh = n_heads
    Hp = _rup(Hd, 128)
    Fp = _rup(4 * Hd, 128)

    def pad_vec(v):                      # (1, Hd) -> (1, Hp)
        return jnp.pad(v, ((0, 0), (0, Hp - Hd)))

    def pad_qkv_w(w):                    # (Hd, nh*Hd) -> (Hp, nh*Hp), per-head cols
        w3 = w.reshape(Hd, nh, Hd)
        w3 = jnp.pad(w3, ((0, Hp - Hd), (0, 0), (0, Hp - Hd)))
        return w3.reshape(Hp, nh * Hp)

    def pad_qkv_b(b):                    # (1, nh*Hd) -> (1, nh*Hp)
        b3 = b.reshape(1, nh, Hd)
        b3 = jnp.pad(b3, ((0, 0), (0, 0), (0, Hp - Hd)))
        return b3.reshape(1, nh * Hp)

    def pad_unify_w(w):                  # (nh*Hd, Hd) -> (nh*Hp, Hp), per-head rows
        w3 = w.reshape(nh, Hd, Hd)
        w3 = jnp.pad(w3, ((0, 0), (0, Hp - Hd), (0, Hp - Hd)))
        return w3.reshape(nh * Hp, Hp)

    wqkv, bqkv, wu, small, w1, b1, w2 = [], [], [], [], [], [], []
    for lp in params["layers"]:
        wqkv.append(jnp.concatenate(
            [pad_qkv_w(lp["wq"]), pad_qkv_w(lp["wk"]), pad_qkv_w(lp["wv"])], axis=1))
        bqkv.append(jnp.concatenate(
            [pad_qkv_b(lp["bq"]), pad_qkv_b(lp["bk"]), pad_qkv_b(lp["bv"])], axis=1))
        wu.append(pad_unify_w(lp["wu"]))
        small.append(jnp.concatenate(
            [pad_vec(lp["bu"]), pad_vec(lp["ln1g"]), pad_vec(lp["ln1b"]),
             pad_vec(lp["b2"]), pad_vec(lp["ln2g"]), pad_vec(lp["ln2b"]),
             jnp.zeros((2, Hp), jnp.float32)], axis=0))
        w1.append(jnp.pad(lp["w1"], ((0, Hp - Hd), (0, Fp - 4 * Hd))))
        b1.append(jnp.pad(lp["b1"], ((0, 0), (0, Fp - 4 * Hd))))
        w2.append(jnp.pad(lp["w2"], ((0, Fp - 4 * Hd), (0, Hp - Hd))))

    return {
        "wqkv": jnp.stack(wqkv).astype(jnp.bfloat16),   # (L, Hp, 3*nh*Hp)
        "bqkv": jnp.stack(bqkv).astype(jnp.float32),    # (L, 1, 3*nh*Hp)
        "wu": jnp.stack(wu).astype(jnp.bfloat16),       # (L, nh*Hp, Hp)
        "small": jnp.stack(small).astype(jnp.float32),  # (L, 8, Hp)
        "w1": jnp.stack(w1).astype(jnp.bfloat16),       # (L, Hp, Fp)
        "b1": jnp.stack(b1).astype(jnp.float32),        # (L, 1, Fp)
        "w2": jnp.stack(w2).astype(jnp.bfloat16),       # (L, Fp, Hp)
        "sem_w": params["sem_w"],
        "sem_b": params["sem_b"],
        "out_w": params["out_w"],
        "out_b": params["out_b"],
    }


# ------------------------- tiling / VMEM budgeting -------------------------

def _num_tensorcores():
    try:
        kind = (jax.devices()[0].device_kind or "").lower()
        if "v7" in kind:
            return 2
    except Exception:
        pass
    return 1


def _vmem_cap_bytes():
    try:
        phys = int(pltpu.get_tpu_info().vmem_capacity_bytes)
    except Exception:
        phys = 64 << 20
    # 7/8 of physical: ~112 MiB on v5e/v6e, ~56 MiB on v7x
    return max((phys * 7) // 8, 32 << 20)


def _vmem_estimate(Bt, S, Hp, Fp, nh):
    """Honest budget: double-buffered streamed blocks + scratches + temporaries."""
    M = Bt * S
    Sp = _rup(S, 128)
    qkv_w = 3 * nh * Hp
    streamed = [
        ((Bt, S, Hp), 4),        # emb input block
        ((Bt, S, Hp), 4),        # output block
        ((Hp, qkv_w), 2),        # wqkv (bf16)
        ((1, qkv_w), 4),         # bqkv
        ((nh * Hp, Hp), 2),      # wu (bf16)
        ((8, Hp), 4),            # packed vectors
        ((Hp, Fp), 2),           # w1 (bf16)
        ((1, Fp), 4),            # b1
        ((Fp, Hp), 2),           # w2 (bf16)
    ]
    scratch = [
        ((M, Hp), 4),            # h_scratch
        ((M, nh * Hp), 2),       # head-output concat scratch (bf16)
    ]
    temps = [
        ((M, qkv_w), 4),         # qkv slab
        ((M, Fp), 4),            # MLP inner slab
        ((Bt, S, Sp), 4),        # attention logits
        ((Bt, S, Sp), 4),        # softmax probs
        ((M, Hp), 4), ((M, Hp), 4), ((M, Hp), 4), ((M, Hp), 4),  # ho / residuals
    ]
    total = sum(2 * _tile_bytes(s, it) for s, it in streamed)
    total += sum(_tile_bytes(s, it) for s, it in scratch + temps)
    return total + (4 << 20)


def _pick_block_batch(batch, seq_len, est_fn, cap, prefer_multi, max_rows=1024):
    divisors = [d for d in range(1, batch + 1) if batch % d == 0]
    fits = [d for d in divisors if est_fn(d) <= cap]
    if not fits:
        fits = [1]
    cands = [d for d in fits if d * seq_len <= max(max_rows, seq_len)]
    if not cands:
        cands = [min(fits)]
    if prefer_multi and batch >= 2:
        multi = [d for d in cands if batch // d >= 2]
        if multi:
            return max(multi)
    return max(cands)


# ------------------------------- forward -----------------------------------

def _forward(x_nchw, packed, *, hidden_dim, n_heads, n_layers):
    B, C, Hc, Wc = x_nchw.shape
    assert C == 3
    S = Hc * Wc
    Hd = hidden_dim
    nh = n_heads
    Hp = _rup(Hd, 128)
    Fp = _rup(4 * Hd, 128)
    qkv_w = 3 * nh * Hp

    # glue: NCHW -> (B, S, 3)
    x = jnp.transpose(x_nchw, (0, 2, 3, 1)).reshape(B, S, C).astype(jnp.float32)

    # glue: TrigPosEncoding2D (shared across batch)
    i = jnp.arange(Hc, dtype=jnp.float32)
    j = jnp.arange(Wc, dtype=jnp.float32)
    ii, jj = jnp.meshgrid(i, j, indexing="ij")
    ii = ii.reshape(-1, 1)
    jj = jj.reshape(-1, 1)
    w_k = 1.0 / (10000.0 ** (jnp.arange(Hd, dtype=jnp.float32) / Hd))
    pos = jnp.sin(w_k * ii) + jnp.cos(w_k * jj)                  # (S, Hd)

    # semantic + positional embedding in the wrapper (one cheap fused XLA pass);
    # the kernel receives a single lane-padded (B, S, Hp) activation.
    emb = jnp.einsum('bsc,ch->bsh', x, packed["sem_w"]) + packed["sem_b"] + pos
    if Hp > Hd:
        emb = jnp.pad(emb, ((0, 0), (0, 0), (0, Hp - Hd)))
    emb = emb.astype(jnp.float32)

    cap = _vmem_cap_bytes()
    prefer_multi = _num_tensorcores() >= 2
    est = lambda d: _vmem_estimate(d, S, Hp, Fp, nh)
    Bt = _pick_block_batch(B, S, est, cap, prefer_multi)
    n_bblocks = B // Bt
    vmem_limit = int(min(max(est(Bt), 32 << 20), cap))

    kernel = functools.partial(_encoder_kernel, n_layers, n_heads, Hd, Hp, Bt, S)

    out_bsh = pl.pallas_call(
        kernel,
        out_shape=jax.ShapeDtypeStruct((B, S, Hp), jnp.float32),
        grid_spec=pltpu.PrefetchScalarGridSpec(
            num_scalar_prefetch=0,
            grid=(n_bblocks, n_layers),
            in_specs=[
                pl.BlockSpec((Bt, S, Hp), lambda bi, li: (bi, 0, 0)),       # emb
                pl.BlockSpec((1, Hp, qkv_w), lambda bi, li: (li, 0, 0)),    # wqkv
                pl.BlockSpec((1, 1, qkv_w), lambda bi, li: (li, 0, 0)),     # bqkv
                pl.BlockSpec((1, nh * Hp, Hp), lambda bi, li: (li, 0, 0)),  # wu
                pl.BlockSpec((1, 8, Hp), lambda bi, li: (li, 0, 0)),        # vectors
                pl.BlockSpec((1, Hp, Fp), lambda bi, li: (li, 0, 0)),       # w1
                pl.BlockSpec((1, 1, Fp), lambda bi, li: (li, 0, 0)),        # b1
                pl.BlockSpec((1, Fp, Hp), lambda bi, li: (li, 0, 0)),       # w2
            ],
            out_specs=pl.BlockSpec((Bt, S, Hp), lambda bi, li: (bi, 0, 0)),
            scratch_shapes=[
                pltpu.VMEM((Bt * S, Hp), jnp.float32),          # carried hidden state
                pltpu.VMEM((Bt * S, nh * Hp), jnp.bfloat16),    # head-output concat
            ],
        ),
        compiler_params=pltpu.CompilerParams(
            dimension_semantics=("parallel", "arbitrary"),
            vmem_limit_bytes=vmem_limit,
        ),
    )(emb, packed["wqkv"], packed["bqkv"], packed["wu"], packed["small"],
      packed["w1"], packed["b1"], packed["w2"])

    out_bsh = out_bsh[:, :, :Hd]                               # drop lane padding
    out = jnp.transpose(out_bsh, (0, 2, 1))                    # (B, hidden, S)
    res = jnp.einsum('bsh,ho->bso', out_bsh, packed["out_w"]) + packed["out_b"]
    return out, res


image_transformer_encoder = jax.jit(
    _forward, static_argnames=("hidden_dim", "n_heads", "n_layers"))


if __name__ == "__main__":
    B, C, H_img, W_img = 4, 3, 8, 8          # S = 64
    hidden_dim, n_heads, n_layers = 32, 2, 2

    key = jax.random.PRNGKey(0)
    k_x, k_p = jax.random.split(key)
    x = jax.random.normal(k_x, (B, C, H_img, W_img), dtype=jnp.float32)
    params = init_params(k_p, hidden_dim, n_heads, n_layers)
    packed = prepack_params(params, hidden_dim=hidden_dim, n_heads=n_heads)

    out, res = image_transformer_encoder(
        x, packed, hidden_dim=hidden_dim, n_heads=n_heads, n_layers=n_layers)
    jax.block_until_ready((out, res))

    assert out.shape == (B, hidden_dim, H_img * W_img)
    assert res.shape == (B, H_img * W_img, 1)
    assert bool(jnp.all(jnp.isfinite(out))) and bool(jnp.all(jnp.isfinite(res)))
    print("KERNEL_OK")
</pallas_src>

<mosaic_0001>
module attributes {stable_mosaic.version = 11 : i64} {
  func.func @_encoder_kernel(%arg0: i32, %arg1: i32, %arg2: memref<4x64x128xf32, #tpu.memory_space<vmem>>, %arg3: memref<1x128x768xbf16, #tpu.memory_space<vmem>>, %arg4: memref<1x1x768xf32, #tpu.memory_space<vmem>>, %arg5: memref<1x256x128xbf16, #tpu.memory_space<vmem>>, %arg6: memref<1x8x128xf32, #tpu.memory_space<vmem>>, %arg7: memref<1x128x128xbf16, #tpu.memory_space<vmem>>, %arg8: memref<1x1x128xf32, #tpu.memory_space<vmem>>, %arg9: memref<1x128x128xbf16, #tpu.memory_space<vmem>>, %arg10: memref<4x64x128xf32, #tpu.memory_space<vmem>>, %arg11: memref<256x128xf32, #tpu.memory_space<vmem>>, %arg12: memref<256x256xbf16, #tpu.memory_space<vmem>>) attributes {dimension_semantics = [#tpu.dimension_semantics<parallel>, #tpu.dimension_semantics<arbitrary>], iteration_bounds = array<i64: 1, 2>, scalar_prefetch = 0 : i64, scratch_operands = 2 : i64, tpu.core_type = #tpu.core_type<tc>, window_params = [{transform_indices = @transform_0, window_bounds = array<i64: 4, 64, 128>}, {transform_indices = @transform_1, window_bounds = array<i64: 1, 128, 768>}, {transform_indices = @transform_2, window_bounds = array<i64: 1, 1, 768>}, {transform_indices = @transform_3, window_bounds = array<i64: 1, 256, 128>}, {transform_indices = @transform_4, window_bounds = array<i64: 1, 8, 128>}, {transform_indices = @transform_5, window_bounds = array<i64: 1, 128, 128>}, {transform_indices = @transform_6, window_bounds = array<i64: 1, 1, 128>}, {transform_indices = @transform_7, window_bounds = array<i64: 1, 128, 128>}, {transform_indices = @transform_8, window_bounds = array<i64: 4, 64, 128>}]} {
    %c0_i32 = arith.constant 0 : i32
    %0 = arith.cmpi eq, %arg1, %c0_i32 : i32
    %1 = arith.extui %0 : i1 to i32
    %c0_i32_0 = arith.constant 0 : i32
    %2 = arith.cmpi ne, %1, %c0_i32_0 : i32
    scf.if %2 {
      %c0_55 = arith.constant 0 : index
      %c0_56 = arith.constant 0 : index
      %c0_57 = arith.constant 0 : index
      %151 = vector.load %arg2[%c0_55, %c0_56, %c0_57] : memref<4x64x128xf32, #tpu.memory_space<vmem>>, vector<4x64x128xf32>
      %152 = vector.shape_cast %151 : vector<4x64x128xf32> to vector<256x128xf32>
      %c0_58 = arith.constant 0 : index
      %c0_59 = arith.constant 0 : index
      %153 = vector.load %arg11[%c0_58, %c0_59] : memref<256x128xf32, #tpu.memory_space<vmem>>, vector<256x128xf32>
      tpu.vector_store %arg11[%c0_58, %c0_59], %152 {strides = array<i32>} : memref<256x128xf32, #tpu.memory_space<vmem>>, vector<256x128xf32>,
    } else {
    }
    %c0 = arith.constant 0 : index
    %c0_1 = arith.constant 0 : index
    %3 = vector.load %arg11[%c0, %c0_1] : memref<256x128xf32, #tpu.memory_space<vmem>>, vector<256x128xf32>
    %c0_2 = arith.constant 0 : index
    %c0_3 = arith.constant 0 : index
    %c0_4 = arith.constant 0 : index
    %4 = vector.load %arg6[%c0_2, %c0_3, %c0_4] : memref<1x8x128xf32, #tpu.memory_space<vmem>>, vector<1x8x128xf32>
    %5 = vector.shape_cast %4 : vector<1x8x128xf32> to vector<8x128xf32>
    %6 = vector.extract_strided_slice %5 {offsets = [0, 0], sizes = [1, 128], strides = [1, 1]} : vector<8x128xf32> to vector<1x128xf32>
    %7 = vector.extract_strided_slice %5 {offsets = [1, 0], sizes = [1, 128], strides = [1, 1]} : vector<8x128xf32> to vector<1x128xf32>
    %8 = vector.extract_strided_slice %5 {offsets = [2, 0], sizes = [1, 128], strides = [1, 1]} : vector<8x128xf32> to vector<1x128xf32>
    %9 = vector.extract_strided_slice %5 {offsets = [3, 0], sizes = [1, 128], strides = [1, 1]} : vector<8x128xf32> to vector<1x128xf32>
    %10 = vector.extract_strided_slice %5 {offsets = [4, 0], sizes = [1, 128], strides = [1, 1]} : vector<8x128xf32> to vector<1x128xf32>
    %11 = vector.extract_strided_slice %5 {offsets = [5, 0], sizes = [1, 128], strides = [1, 1]} : vector<8x128xf32> to vector<1x128xf32>
    %12 = tpu.iota {dimensions = array<i32: 1>} : vector<1x128xi32>
    %c32_i32 = arith.constant 32 : i32
    %13 = vector.broadcast %c32_i32 : i32 to vector<1x128xi32>
    %14 = arith.cmpi slt, %12, %13 : vector<1x128xi32>
    %15 = arith.extui %14 : vector<1x128xi1> to vector<1x128xi32>
    %16 = arith.sitofp %15 : vector<1x128xi32> to vector<1x128xf32>
    %17 = arith.truncf %3 : vector<256x128xf32> to vector<256x128xbf16>
    %c0_5 = arith.constant 0 : index
    %c0_6 = arith.constant 0 : index
    %c0_7 = arith.constant 0 : index
    %18 = vector.load %arg3[%c0_5, %c0_6, %c0_7] : memref<1x128x768xbf16, #tpu.memory_space<vmem>>, vector<1x128x768xbf16>
    %19 = vector.shape_cast %18 : vector<1x128x768xbf16> to vector<128x768xbf16>
    %cst = arith.constant dense<0.000000e+00> : vector<256x768xf32>
    %20 = tpu.matmul %17, %19, %cst {dimension_numbers = #tpu.dot_dimension_numbers<[1], [0], [0], [1], [0, 0, 1, 1], [], []>} : vector<256x128xbf16>, vector<128x768xbf16>, vector<256x768xf32> -> vector<256x768xf32>
    %c0_8 = arith.constant 0 : index
    %c0_9 = arith.constant 0 : index
    %c0_10 = arith.constant 0 : index
    %21 = vector.load %arg4[%c0_8, %c0_9, %c0_10] : memref<1x1x768xf32, #tpu.memory_space<vmem>>, vector<1x1x768xf32>
    %22 = vector.shape_cast %21 : vector<1x1x768xf32> to vector<1x768xf32>
    %23 = vector.broadcast %22 : vector<1x768xf32> to vector<256x768xf32>
    %24 = arith.addf %20, %23 : vector<256x768xf32>
    %25 = vector.extract_strided_slice %24 {offsets = [0, 0], sizes = [256, 128], strides = [1, 1]} : vector<256x768xf32> to vector<256x128xf32>
    %cst_11 = arith.constant 0.176776692 : f32
    %26 = vector.broadcast %cst_11 : f32 to vector<256x128xf32>
    %27 = arith.mulf %25, %26 : vector<256x128xf32>
    %28 = vector.shape_cast %27 : vector<256x128xf32> to vector<4x64x128xf32>
    %29 = arith.truncf %28 : vector<4x64x128xf32> to vector<4x64x128xbf16>
    %30 = vector.extract_strided_slice %24 {offsets = [0, 256], sizes = [256, 128], strides = [1, 1]} : vector<256x768xf32> to vector<256x128xf32>
    %31 = vector.shape_cast %30 : vector<256x128xf32> to vector<4x64x128xf32>
    %32 = arith.truncf %31 : vector<4x64x128xf32> to vector<4x64x128xbf16>
    %33 = vector.extract_strided_slice %24 {offsets = [0, 512], sizes = [256, 128], strides = [1, 1]} : vector<256x768xf32> to vector<256x128xf32>
    %34 = vector.shape_cast %33 : vector<256x128xf32> to vector<4x64x128xf32>
    %35 = arith.truncf %34 : vector<4x64x128xf32> to vector<4x64x128xbf16>
    "tpu.trace_start"() <{level = 10 : i32, message = "bqd,bkd->bqk"}> : () -> ()
    %cst_12 = arith.constant dense<0.000000e+00> : vector<4x64x64xf32>
    %36 = tpu.matmul %29, %32, %cst_12 {dimension_numbers = #tpu.dot_dimension_numbers<[2], [2], [1], [1], [0, 0, 0, 1, 1, 1], [0], [0]>} : vector<4x64x128xbf16>, vector<4x64x128xbf16>, vector<4x64x64xf32> -> vector<4x64x64xf32>
    "tpu.trace_stop"() : () -> ()
    %cst_13 = arith.constant dense<0xFF800000> : vector<4x64xf32>
    %37 = vector.multi_reduction <maximumf>, %36, %cst_13 [2] : vector<4x64x64xf32> to vector<4x64xf32>
    %38 = vector.shape_cast %37 : vector<4x64xf32> to vector<4x64x1xf32>
    %39 = vector.broadcast %38 : vector<4x64x1xf32> to vector<4x64x64xf32>
    %40 = arith.subf %36, %39 : vector<4x64x64xf32>
    %41 = math.exp %40 : vector<4x64x64xf32>
    %cst_14 = arith.constant dense<0.000000e+00> : vector<4x64xf32>
    %42 = vector.multi_reduction <add>, %41, %cst_14 [2] : vector<4x64x64xf32> to vector<4x64xf32>
    %43 = vector.shape_cast %42 : vector<4x64xf32> to vector<4x64x1xf32>
    %44 = tpu.reciprocal %43 {approx = true} : vector<4x64x1xf32> -> vector<4x64x1xf32>
    %45 = vector.broadcast %44 : vector<4x64x1xf32> to vector<4x64x64xf32>
    %46 = arith.mulf %41, %45 : vector<4x64x64xf32>
    %47 = arith.truncf %46 : vector<4x64x64xf32> to vector<4x64x64xbf16>
    "tpu.trace_start"() <{level = 10 : i32, message = "bqk,bkd->bqd"}> : () -> ()
    %cst_15 = arith.constant dense<0.000000e+00> : vector<4x64x128xf32>
    %48 = tpu.matmul %47, %35, %cst_15 {dimension_numbers = #tpu.dot_dimension_numbers<[2], [1], [1], [2], [0, 0, 0, 1, 1, 2], [0], [0]>} : vector<4x64x64xbf16>, vector<4x64x128xbf16>, vector<4x64x128xf32> -> vector<4x64x128xf32>
    "tpu.trace_stop"() : () -> ()
    %49 = vector.shape_cast %48 : vector<4x64x128xf32> to vector<256x128xf32>
    %50 = arith.truncf %49 : vector<256x128xf32> to vector<256x128xbf16>
    %c0_16 = arith.constant 0 : index
    %c0_17 = arith.constant 0 : index
    %51 = vector.load %arg12[%c0_16, %c0_17] : memref<256x256xbf16, #tpu.memory_space<vmem>>, vector<256x128xbf16>
    tpu.vector_store %arg12[%c0_16, %c0_17], %50 {strides = array<i32>} : memref<256x256xbf16, #tpu.memory_space<vmem>>, vector<256x128xbf16>,
    %52 = vector.extract_strided_slice %24 {offsets = [0, 128], sizes = [256, 128], strides = [1, 1]} : vector<256x768xf32> to vector<256x128xf32>
    %cst_18 = arith.constant 0.176776692 : f32
    %53 = vector.broadcast %cst_18 : f32 to vector<256x128xf32>
    %54 = arith.mulf %52, %53 : vector<256x128xf32>
    %55 = vector.shape_cast %54 : vector<256x128xf32> to vector<4x64x128xf32>
    %56 = arith.truncf %55 : vector<4x64x128xf32> to vector<4x64x128xbf16>
    %57 = vector.extract_strided_slice %24 {offsets = [0, 384], sizes = [256, 128], strides = [1, 1]} : vector<256x768xf32> to vector<256x128xf32>
    %58 = vector.shape_cast %57 : vector<256x128xf32> to vector<4x64x128xf32>
    %59 = arith.truncf %58 : vector<4x64x128xf32> to vector<4x64x128xbf16>
    %60 = vector.extract_strided_slice %24 {offsets = [0, 640], sizes = [256, 128], strides = [1, 1]} : vector<256x768xf32> to vector<256x128xf32>
    %61 = vector.shape_cast %60 : vector<256x128xf32> to vector<4x64x128xf32>
    %62 = arith.truncf %61 : vector<4x64x128xf32> to vector<4x64x128xbf16>
    "tpu.trace_start"() <{level = 10 : i32, message = "bqd,bkd->bqk"}> : () -> ()
    %cst_19 = arith.constant dense<0.000000e+00> : vector<4x64x64xf32>
    %63 = tpu.matmul %56, %59, %cst_19 {dimension_numbers = #tpu.dot_dimension_numbers<[2], [2], [1], [1], [0, 0, 0, 1, 1, 1], [0], [0]>} : vector<4x64x128xbf16>, vector<4x64x128xbf16>, vector<4x64x64xf32> -> vector<4x64x64xf32>
    "tpu.trace_stop"() : () -> ()
    %cst_20 = arith.constant dense<0xFF800000> : vector<4x64xf32>
    %64 = vector.multi_reduction <maximumf>, %63, %cst_20 [2] : vector<4x64x64xf32> to vector<4x64xf32>
    %65 = vector.shape_cast %64 : vector<4x64xf32> to vector<4x64x1xf32>
    %66 = vector.broadcast %65 : vector<4x64x1xf32> to vector<4x64x64xf32>
    %67 = arith.subf %63, %66 : vector<4x64x64xf32>
    %68 = math.exp %67 : vector<4x64x64xf32>
    %cst_21 = arith.constant dense<0.000000e+00> : vector<4x64xf32>
    %69 = vector.multi_reduction <add>, %68, %cst_21 [2] : vector<4x64x64xf32> to vector<4x64xf32>
    %70 = vector.shape_cast %69 : vector<4x64xf32> to vector<4x64x1xf32>
    %71 = tpu.reciprocal %70 {approx = true} : vector<4x64x1xf32> -> vector<4x64x1xf32>
    %72 = vector.broadcast %71 : vector<4x64x1xf32> to vector<4x64x64xf32>
    %73 = arith.mulf %68, %72 : vector<4x64x64xf32>
    %74 = arith.truncf %73 : vector<4x64x64xf32> to vector<4x64x64xbf16>
    "tpu.trace_start"() <{level = 10 : i32, message = "bqk,bkd->bqd"}> : () -> ()
    %cst_22 = arith.constant dense<0.000000e+00> : vector<4x64x128xf32>
    %75 = tpu.matmul %74, %62, %cst_22 {dimension_numbers = #tpu.dot_dimension_numbers<[2], [1], [1], [2], [0, 0, 0, 1, 1, 2], [0], [0]>} : vector<4x64x64xbf16>, vector<4x64x128xbf16>, vector<4x64x128xf32> -> vector<4x64x128xf32>
    "tpu.trace_stop"() : () -> ()
    %76 = vector.shape_cast %75 : vector<4x64x128xf32> to vector<256x128xf32>
    %77 = arith.truncf %76 : vector<256x128xf32> to vector<256x128xbf16>
    %c0_23 = arith.constant 0 : index
    %c128 = arith.constant 128 : index
    %78 = vector.load %arg12[%c0_23, %c128] : memref<256x256xbf16, #tpu.memory_space<vmem>>, vector<256x128xbf16>
    tpu.vector_store %arg12[%c0_23, %c128], %77 {strides = array<i32>} : memref<256x256xbf16, #tpu.memory_space<vmem>>, vector<256x128xbf16>,
    %c0_24 = arith.constant 0 : index
    %c0_25 = arith.constant 0 : index
    %79 = vector.load %arg12[%c0_24, %c0_25] : memref<256x256xbf16, #tpu.memory_space<vmem>>, vector<256x256xbf16>
    %c0_26 = arith.constant 0 : index
    %c0_27 = arith.constant 0 : index
    %c0_28 = arith.constant 0 : index
    %80 = vector.load %arg5[%c0_26, %c0_27, %c0_28] : memref<1x256x128xbf16, #tpu.memory_space<vmem>>, vector<1x256x128xbf16>
    %81 = vector.shape_cast %80 : vector<1x256x128xbf16> to vector<256x128xbf16>
    %cst_29 = arith.constant dense<0.000000e+00> : vector<256x128xf32>
    %82 = tpu.matmul %79, %81, %cst_29 {dimension_numbers = #tpu.dot_dimension_numbers<[1], [0], [0], [1], [0, 0, 1, 1], [], []>} : vector<256x256xbf16>, vector<256x128xbf16>, vector<256x128xf32> -> vector<256x128xf32>
    %83 = vector.broadcast %6 : vector<1x128xf32> to vector<256x128xf32>
    %84 = arith.addf %82, %83 : vector<256x128xf32>
    %85 = arith.addf %84, %3 : vector<256x128xf32>
    %cst_30 = arith.constant dense<0.000000e+00> : vector<256xf32>
    %86 = vector.multi_reduction <add>, %85, %cst_30 [1] : vector<256x128xf32> to vector<256xf32>
    %87 = vector.shape_cast %86 : vector<256xf32> to vector<256x1xf32>
    %cst_31 = arith.constant 3.125000e-02 : f32
    %88 = vector.broadcast %cst_31 : f32 to vector<256x1xf32>
    %89 = arith.mulf %87, %88 : vector<256x1xf32>
    %90 = vector.broadcast %89 : vector<256x1xf32> to vector<256x128xf32>
    %91 = arith.subf %85, %90 : vector<256x128xf32>
    %92 = vector.broadcast %16 : vector<1x128xf32> to vector<256x128xf32>
    %93 = arith.mulf %91, %92 : vector<256x128xf32>
    %94 = arith.mulf %93, %93 : vector<256x128xf32>
    %cst_32 = arith.constant dense<0.000000e+00> : vector<256xf32>
    %95 = vector.multi_reduction <add>, %94, %cst_32 [1] : vector<256x128xf32> to vector<256xf32>
    %96 = vector.shape_cast %95 : vector<256xf32> to vector<256x1xf32>
    %cst_33 = arith.constant 3.125000e-02 : f32
    %97 = vector.broadcast %cst_33 : f32 to vector<256x1xf32>
    %98 = arith.mulf %96, %97 : vector<256x1xf32>
    %cst_34 = arith.constant 9.99999974E-6 : f32
    %99 = vector.broadcast %cst_34 : f32 to vector<256x1xf32>
    %100 = arith.addf %98, %99 : vector<256x1xf32>
    %101 = math.rsqrt %100 : vector<256x1xf32>
    %102 = vector.broadcast %101 : vector<256x1xf32> to vector<256x128xf32>
    %103 = arith.mulf %93, %102 : vector<256x128xf32>
    %104 = vector.broadcast %7 : vector<1x128xf32> to vector<256x128xf32>
    %105 = arith.mulf %103, %104 : vector<256x128xf32>
    %106 = vector.broadcast %8 : vector<1x128xf32> to vector<256x128xf32>
    %107 = arith.addf %105, %106 : vector<256x128xf32>
    %108 = arith.truncf %107 : vector<256x128xf32> to vector<256x128xbf16>
    %c0_35 = arith.constant 0 : index
    %c0_36 = arith.constant 0 : index
    %c0_37 = arith.constant 0 : index
    %109 = vector.load %arg7[%c0_35, %c0_36, %c0_37] : memref<1x128x128xbf16, #tpu.memory_space<vmem>>, vector<1x128x128xbf16>
    %110 = vector.shape_cast %109 : vector<1x128x128xbf16> to vector<128x128xbf16>
    %cst_38 = arith.constant dense<0.000000e+00> : vector<256x128xf32>
    %111 = tpu.matmul %108, %110, %cst_38 {dimension_numbers = #tpu.dot_dimension_numbers<[1], [0], [0], [1], [0, 0, 1, 1], [], []>} : vector<256x128xbf16>, vector<128x128xbf16>, vector<256x128xf32> -> vector<256x128xf32>
    %c0_39 = arith.constant 0 : index
    %c0_40 = arith.constant 0 : index
    %c0_41 = arith.constant 0 : index
    %112 = vector.load %arg8[%c0_39, %c0_40, %c0_41] : memref<1x1x128xf32, #tpu.memory_space<vmem>>, vector<1x1x128xf32>
    %113 = vector.shape_cast %112 : vector<1x1x128xf32> to vector<1x128xf32>
    %114 = vector.broadcast %113 : vector<1x128xf32> to vector<256x128xf32>
    %115 = arith.addf %111, %114 : vector<256x128xf32>
    %cst_42 = arith.constant 0.000000e+00 : f32
    %116 = vector.broadcast %cst_42 : f32 to vector<256x128xf32>
    %117 = arith.maximumf %115, %116 : vector<256x128xf32>
    %118 = arith.truncf %117 : vector<256x128xf32> to vector<256x128xbf16>
    %c0_43 = arith.constant 0 : index
    %c0_44 = arith.constant 0 : index
    %c0_45 = arith.constant 0 : index
    %119 = vector.load %arg9[%c0_43, %c0_44, %c0_45] : memref<1x128x128xbf16, #tpu.memory_space<vmem>>, vector<1x128x128xbf16>
    %120 = vector.shape_cast %119 : vector<1x128x128xbf16> to vector<128x128xbf16>
    %cst_46 = arith.constant dense<0.000000e+00> : vector<256x128xf32>
    %121 = tpu.matmul %118, %120, %cst_46 {dimension_numbers = #tpu.dot_dimension_numbers<[1], [0], [0], [1], [0, 0, 1, 1], [], []>} : vector<256x128xbf16>, vector<128x128xbf16>, vector<256x128xf32> -> vector<256x128xf32>
    %122 = vector.broadcast %9 : vector<1x128xf32> to vector<256x128xf32>
    %123 = arith.addf %121, %122 : vector<256x128xf32>
    %124 = arith.addf %123, %107 : vector<256x128xf32>
    %cst_47 = arith.constant dense<0.000000e+00> : vector<256xf32>
    %125 = vector.multi_reduction <add>, %124, %cst_47 [1] : vector<256x128xf32> to vector<256xf32>
    %126 = vector.shape_cast %125 : vector<256xf32> to vector<256x1xf32>
    %cst_48 = arith.constant 3.125000e-02 : f32
    %127 = vector.broadcast %cst_48 : f32 to vector<256x1xf32>
    %128 = arith.mulf %126, %127 : vector<256x1xf32>
    %129 = vector.broadcast %128 : vector<256x1xf32> to vector<256x128xf32>
    %130 = arith.subf %124, %129 : vector<256x128xf32>
    %131 = vector.broadcast %16 : vector<1x128xf32> to vector<256x128xf32>
    %132 = arith.mulf %130, %131 : vector<256x128xf32>
    %133 = arith.mulf %132, %132 : vector<256x128xf32>
    %cst_49 = arith.constant dense<0.000000e+00> : vector<256xf32>
    %134 = vector.multi_reduction <add>, %133, %cst_49 [1] : vector<256x128xf32> to vector<256xf32>
    %135 = vector.shape_cast %134 : vector<256xf32> to vector<256x1xf32>
    %cst_50 = arith.constant 3.125000e-02 : f32
    %136 = vector.broadcast %cst_50 : f32 to vector<256x1xf32>
    %137 = arith.mulf %135, %136 : vector<256x1xf32>
    %cst_51 = arith.constant 9.99999974E-6 : f32
    %138 = vector.broadcast %cst_51 : f32 to vector<256x1xf32>
    %139 = arith.addf %137, %138 : vector<256x1xf32>
    %140 = math.rsqrt %139 : vector<256x1xf32>
    %141 = vector.broadcast %140 : vector<256x1xf32> to vector<256x128xf32>
    %142 = arith.mulf %132, %141 : vector<256x128xf32>
    %143 = vector.broadcast %10 : vector<1x128xf32> to vector<256x128xf32>
    %144 = arith.mulf %142, %143 : vector<256x128xf32>
    %145 = vector.broadcast %11 : vector<1x128xf32> to vector<256x128xf32>
    %146 = arith.addf %144, %145 : vector<256x128xf32>
    %c0_52 = arith.constant 0 : index
    %c0_53 = arith.constant 0 : index
    %147 = vector.load %arg11[%c0_52, %c0_53] : memref<256x128xf32, #tpu.memory_space<vmem>>, vector<256x128xf32>
    tpu.vector_store %arg11[%c0_52, %c0_53], %146 {strides = array<i32>} : memref<256x128xf32, #tpu.memory_space<vmem>>, vector<256x128xf32>,
    %c1_i32 = arith.constant 1 : i32
    %148 = arith.cmpi eq, %arg1, %c1_i32 : i32
    %149 = arith.extui %148 : i1 to i32
    %c0_i32_54 = arith.constant 0 : i32
    %150 = arith.cmpi ne, %149, %c0_i32_54 : i32
    scf.if %150 {
      %151 = vector.shape_cast %146 : vector<256x128xf32> to vector<4x64x128xf32>
      %c0_55 = arith.constant 0 : index
      %c0_56 = arith.constant 0 : index
      %c0_57 = arith.constant 0 : index
      %152 = vector.load %arg10[%c0_55, %c0_56, %c0_57] : memref<4x64x128xf32, #tpu.memory_space<vmem>>, vector<4x64x128xf32>
      tpu.vector_store %arg10[%c0_55, %c0_56, %c0_57], %151 {strides = array<i32>} : memref<4x64x128xf32, #tpu.memory_space<vmem>>, vector<4x64x128xf32>,
    } else {
    }
    return
  }
  func.func @transform_0(%arg0: i32, %arg1: i32) -> (i32, i32, i32) {
    %c0_i32 = arith.constant 0 : i32
    %c0_i32_0 = arith.constant 0 : i32
    %c0_i32_1 = arith.constant 0 : i32
    return %arg0, %c0_i32, %c0_i32_0 : i32, i32, i32
  }
  func.func @transform_1(%arg0: i32, %arg1: i32) -> (i32, i32, i32) {
    %c0_i32 = arith.constant 0 : i32
    %c0_i32_0 = arith.constant 0 : i32
    %c0_i32_1 = arith.constant 0 : i32
    return %arg1, %c0_i32, %c0_i32_0 : i32, i32, i32
  }
  func.func @transform_2(%arg0: i32, %arg1: i32) -> (i32, i32, i32) {
    %c0_i32 = arith.constant 0 : i32
    %c0_i32_0 = arith.constant 0 : i32
    %c0_i32_1 = arith.constant 0 : i32
    return %arg1, %c0_i32, %c0_i32_0 : i32, i32, i32
  }
  func.func @transform_3(%arg0: i32, %arg1: i32) -> (i32, i32, i32) {
    %c0_i32 = arith.constant 0 : i32
    %c0_i32_0 = arith.constant 0 : i32
    %c0_i32_1 = arith.constant 0 : i32
    return %arg1, %c0_i32, %c0_i32_0 : i32, i32, i32
  }
  func.func @transform_4(%arg0: i32, %arg1: i32) -> (i32, i32, i32) {
    %c0_i32 = arith.constant 0 : i32
    %c0_i32_0 = arith.constant 0 : i32
    %c0_i32_1 = arith.constant 0 : i32
    return %arg1, %c0_i32, %c0_i32_0 : i32, i32, i32
  }
  func.func @transform_5(%arg0: i32, %arg1: i32) -> (i32, i32, i32) {
    %c0_i32 = arith.constant 0 : i32
    %c0_i32_0 = arith.constant 0 : i32
    %c0_i32_1 = arith.constant 0 : i32
    return %arg1, %c0_i32, %c0_i32_0 : i32, i32, i32
  }
  func.func @transform_6(%arg0: i32, %arg1: i32) -> (i32, i32, i32) {
    %c0_i32 = arith.constant 0 : i32
    %c0_i32_0 = arith.constant 0 : i32
    %c0_i32_1 = arith.constant 0 : i32
    return %arg1, %c0_i32, %c0_i32_0 : i32, i32, i32
  }
  func.func @transform_7(%arg0: i32, %arg1: i32) -> (i32, i32, i32) {
    %c0_i32 = arith.constant 0 : i32
    %c0_i32_0 = arith.constant 0 : i32
    %c0_i32_1 = arith.constant 0 : i32
    return %arg1, %c0_i32, %c0_i32_0 : i32, i32, i32
  }
  func.func @transform_8(%arg0: i32, %arg1: i32) -> (i32, i32, i32) {
    %c0_i32 = arith.constant 0 : i32
    %c0_i32_0 = arith.constant 0 : i32
    %c0_i32_1 = arith.constant 0 : i32
    return %arg0, %c0_i32, %c0_i32_0 : i32, i32, i32
  }
}

</mosaic_0001>

<llo_original>
// kernel: _forward.1
$region0: #{_forward.1}
  #allocation0 [shape = 'u32[]', space=smem, size = 0x4, offset = 0x4, fixed_abs, tag = 'smem constant byte address 0x4 - core index']
  #allocation1 [shape = 'u32[72,128]{1,0:T(1,128)}', space=vmem, size = 0x9000, scoped, tag = 'internal scratch']
  #allocation2 [shape = 'f32[256,128]{1,0:T(8,128)}', space=vmem, size = 0x20000, scoped, tag = 'scratch operand']
  #allocation3 [shape = 'bf16[256,256]{1,0:T(8,128)(2,1)}', space=vmem, size = 0x20000, scoped, tag = 'scratch operand']
  %s0 = inlined_call_operand.vmem [shape: f32[4,64,128], index: 0, kind: input, shape index: {}]
  %s1 = inlined_call_operand.vmem [shape: bf16[2,128,768], index: 1, kind: input, shape index: {}]
  %s2 = inlined_call_operand.vmem [shape: f32[2,1,768], index: 2, kind: input, shape index: {}]
  %s3 = inlined_call_operand.hbm [shape: bf16[2,256,128], index: 3, kind: input, shape index: {}]
  %s4 = inlined_call_operand.vmem [shape: f32[2,8,128], index: 4, kind: input, shape index: {}]
  %s5 = inlined_call_operand.vmem [shape: bf16[2,128,128], index: 5, kind: input, shape index: {}]
  %s6 = inlined_call_operand.vmem [shape: f32[2,1,128], index: 6, kind: input, shape index: {}]
  %s7 = inlined_call_operand.hbm [shape: bf16[2,128,128], index: 7, kind: input, shape index: {}]
  %s8 = inlined_call_operand.vmem [shape: f32[4,64,128], index: 8, kind: output, shape index: {}]
  %s9 = sld [smem:[#allocation0]]
  $region81: #{_forward.1} parent=0
    _
  %s11 = ssub.s32 1, %s9
  %s12 = scalar_select 0, %s11, %s9
  $region1: #{_forward.1} parent=0
    #allocation4 [shape = 'u8[131072]{0}', space=vmem, size = 0x20000, scoped, tag = 'input window, operand 3']
    #allocation5 [shape = 's32[2]{0}', space=sflag, size = 0x8, scoped, tag = 'scoped memory for _forward.1']
    #allocation6 [shape = 'u8[65536]{0}', space=vmem, size = 0x10000, scoped, tag = 'input window, operand 7']
    #allocation7 [shape = 's32[2]{0}', space=sflag, size = 0x8, scoped, tag = 'scoped memory for _forward.1']
    %13 = vsyncpa [#allocation5], 0
    %s14 = scalar_lea.sflag [#allocation5], 1
    %15 = vsyncpa %s14, 0
    %16 = vsyncpa [#allocation7], 0
    %s17 = scalar_lea.sflag [#allocation7], 1
    %18 = vsyncpa %s17, 0
    loop: start=0, step=1, limit=4
    $region2: #{_forward.1} parent=1 // loop_pre_header
      _
    $region3: #{_forward.1} parent=1 // loop_header
      %s20 = sphi 0, %s24
      %p21 = scmp.ge.s32.totalorder %s20, 4
      %s27 = sphi 0, %s39
      %s28 = sphi 0, %s35
      %s29 = sphi 0, %s27
      %s30 = sphi 0, %s28
      %s31 = sphi 0, %s29
      %s32 = sphi 0, %s30
      %s42 = sphi 0, %s44
      %s45 = sphi 0, %s42
      %s46 = sphi 0, %s45
      %s62 = sphi 0, %s46
      %s68 = sphi 0, %s70
      %s71 = sphi 0, %s68
      %s72 = sphi 0, %s71
      %s88 = sphi 0, %s72
      %s94 = sphi 0, %s96
      %s97 = sphi 0, %s94
      %s98 = sphi 0, %s97
      %s114 = sphi 0, %s98
      %s120 = sphi 0, %s122
      %s123 = sphi 0, %s120
      %s124 = sphi 0, %s123
      %s140 = sphi 0, %s124
      %s146 = sphi 0, %s148
      %s149 = sphi 0, %s146
      %s150 = sphi 0, %s149
      %s166 = sphi 0, %s150
      %s172 = sphi 0, %s174
      %s175 = sphi 0, %s172
      %s176 = sphi 0, %s175
      %s192 = sphi 0, %s176
      %s198 = sphi 0, %s200
      %s201 = sphi 0, %s198
      %s202 = sphi 0, %s201
      %s218 = sphi 0, %s202
      %s224 = sphi 0, %s226
      %s227 = sphi 0, %s224
      %s228 = sphi 0, %s227
      %s244 = sphi 0, %s228
      %s250 = sphi 0, %s252
      %s253 = sphi 0, %s250
      %s254 = sphi 0, %s253
      %s270 = sphi 0, %s254
    $region4: #{_forward.1} parent=1 // loop_header_branch
      %23 = sbr.rel (%p21) target = $region8
    $region5: #{_forward.1} parent=1 // loop_body
      %s25 = ssub.s32 %s20, 1
      %s26 = ssub.s32 %s20, 2
      %s33 = sadd.s32 1, %s28
      %p34 = scmp.ge.s32.totalorder %s33, 2
      %s35 = scalar_select %p34, 0, %s33
      %s36 = sadd.s32 1, %s27
      %s37 = scalar_select %p34, %s36, %s27
      %p38 = scmp.ge.s32.totalorder %s37, 1
      %s39 = scalar_select %p38, 0, %s37
      %s40 = ssub.s32 %s27, %s39
      %p41 = scmp.eq.s32.totalorder %s40, 0
      %s43 = sadd.s32 %s42, 1
      %s44 = scalar_select %p41, %s42, %s43
      %p47 = pneg %p41
      %p48 = scmp.eq.s32.totalorder %s20, 1
      %p49 = por %p47, %p48
      %p50 = scmp.ne.s32.totalorder %s42, %s45
      %p51 = scmp.eq.s32.totalorder %s20, 0
      %p52 = por %p50, %p51
      %p53 = scmp.ne.s32.totalorder %s42, %s45
      %p54 = scmp.eq.s32.totalorder %s25, 1
      %p55 = por %p53, %p54
      %p56 = scmp.ne.s32.totalorder %s45, %s46
      %p57 = scmp.eq.s32.totalorder %s25, 0
      %p58 = por %p56, %p57
      %p59 = scmp.ne.s32.totalorder %s45, %s46
      %p60 = scmp.eq.s32.totalorder %s26, 1
      %p61 = por %p59, %p60
      %p63 = scmp.ne.s32.totalorder %s46, %s62
      %p64 = scmp.eq.s32.totalorder %s26, 0
      %p65 = por %p63, %p64
      %s66 = ssub.s32 %s28, %s35
      %p67 = scmp.eq.s32.totalorder %s66, 0
      %s69 = sadd.s32 %s68, 1
      %s70 = scalar_select %p67, %s68, %s69
      %p73 = pneg %p67
      %p74 = scmp.eq.s32.totalorder %s20, 1
      %p75 = por %p73, %p74
      %p76 = scmp.ne.s32.totalorder %s68, %s71
      %p77 = scmp.eq.s32.totalorder %s20, 0
      %p78 = por %p76, %p77
      %p79 = scmp.ne.s32.totalorder %s68, %s71
      %p80 = scmp.eq.s32.totalorder %s25, 1
      %p81 = por %p79, %p80
      %p82 = scmp.ne.s32.totalorder %s71, %s72
      %p83 = scmp.eq.s32.totalorder %s25, 0
      %p84 = por %p82, %p83
      %p85 = scmp.ne.s32.totalorder %s71, %s72
      %p86 = scmp.eq.s32.totalorder %s26, 1
      %p87 = por %p85, %p86
      %p89 = scmp.ne.s32.totalorder %s72, %s88
      %p90 = scmp.eq.s32.totalorder %s26, 0
      %p91 = por %p89, %p90
      %s92 = ssub.s32 %s28, %s35
      %p93 = scmp.eq.s32.totalorder %s92, 0
      %s95 = sadd.s32 %s94, 1
      %s96 = scalar_select %p93, %s94, %s95
      %p99 = pneg %p93
      %p100 = scmp.eq.s32.totalorder %s20, 1
      %p101 = por %p99, %p100
      %p102 = scmp.ne.s32.totalorder %s94, %s97
      %p103 = scmp.eq.s32.totalorder %s20, 0
      %p104 = por %p102, %p103
      %p105 = scmp.ne.s32.totalorder %s94, %s97
      %p106 = scmp.eq.s32.totalorder %s25, 1
      %p107 = por %p105, %p106
      %p108 = scmp.ne.s32.totalorder %s97, %s98
      %p109 = scmp.eq.s32.totalorder %s25, 0
      %p110 = por %p108, %p109
      %p111 = scmp.ne.s32.totalorder %s97, %s98
      %p112 = scmp.eq.s32.totalorder %s26, 1
      %p113 = por %p111, %p112
      %p115 = scmp.ne.s32.totalorder %s98, %s114
      %p116 = scmp.eq.s32.totalorder %s26, 0
      %p117 = por %p115, %p116
      %s118 = ssub.s32 %s28, %s35
      %p119 = scmp.eq.s32.totalorder %s118, 0
      %s121 = sadd.s32 %s120, 1
      %s122 = scalar_select %p119, %s120, %s121
      %p125 = pneg %p119
      %p126 = scmp.eq.s32.totalorder %s20, 1
      %p127 = por %p125, %p126
      %p128 = scmp.ne.s32.totalorder %s120, %s123
      %p129 = scmp.eq.s32.totalorder %s20, 0
      %p130 = por %p128, %p129
      %p131 = scmp.ne.s32.totalorder %s120, %s123
      %p132 = scmp.eq.s32.totalorder %s25, 1
      %p133 = por %p131, %p132
      %p134 = scmp.ne.s32.totalorder %s123, %s124
      %p135 = scmp.eq.s32.totalorder %s25, 0
      %p136 = por %p134, %p135
      %p137 = scmp.ne.s32.totalorder %s123, %s124
      %p138 = scmp.eq.s32.totalorder %s26, 1
      %p139 = por %p137, %p138
      %p141 = scmp.ne.s32.totalorder %s124, %s140
      %p142 = scmp.eq.s32.totalorder %s26, 0
      %p143 = por %p141, %p142
      %s144 = ssub.s32 %s28, %s35
      %p145 = scmp.eq.s32.totalorder %s144, 0
      %s147 = sadd.s32 %s146, 1
      %s148 = scalar_select %p145, %s146, %s147
      %p151 = pneg %p145
      %p152 = scmp.eq.s32.totalorder %s20, 1
      %p153 = por %p151, %p152
      %p154 = scmp.ne.s32.totalorder %s146, %s149
      %p155 = scmp.eq.s32.totalorder %s20, 0
      %p156 = por %p154, %p155
      %p157 = scmp.ne.s32.totalorder %s146, %s149
      %p158 = scmp.eq.s32.totalorder %s25, 1
      %p159 = por %p157, %p158
      %p160 = scmp.ne.s32.totalorder %s149, %s150
      %p161 = scmp.eq.s32.totalorder %s25, 0
      %p162 = por %p160, %p161
      %p163 = scmp.ne.s32.totalorder %s149, %s150
      %p164 = scmp.eq.s32.totalorder %s26, 1
      %p165 = por %p163, %p164
      %p167 = scmp.ne.s32.totalorder %s150, %s166
      %p168 = scmp.eq.s32.totalorder %s26, 0
      %p169 = por %p167, %p168
      %s170 = ssub.s32 %s28, %s35
      %p171 = scmp.eq.s32.totalorder %s170, 0
      %s173 = sadd.s32 %s172, 1
      %s174 = scalar_select %p171, %s172, %s173
      %p177 = pneg %p171
      %p178 = scmp.eq.s32.totalorder %s20, 1
      %p179 = por %p177, %p178
      %p180 = scmp.ne.s32.totalorder %s172, %s175
      %p181 = scmp.eq.s32.totalorder %s20, 0
      %p182 = por %p180, %p181
      %p183 = scmp.ne.s32.totalorder %s172, %s175
      %p184 = scmp.eq.s32.totalorder %s25, 1
      %p185 = por %p183, %p184
      %p186 = scmp.ne.s32.totalorder %s175, %s176
      %p187 = scmp.eq.s32.totalorder %s25, 0
      %p188 = por %p186, %p187
      %p189 = scmp.ne.s32.totalorder %s175, %s176
      %p190 = scmp.eq.s32.totalorder %s26, 1
      %p191 = por %p189, %p190
      %p193 = scmp.ne.s32.totalorder %s176, %s192
      %p194 = scmp.eq.s32.totalorder %s26, 0
      %p195 = por %p193, %p194
      %s196 = ssub.s32 %s28, %s35
      %p197 = scmp.eq.s32.totalorder %s196, 0
      %s199 = sadd.s32 %s198, 1
      %s200 = scalar_select %p197, %s198, %s199
      %p203 = pneg %p197
      %p204 = scmp.eq.s32.totalorder %s20, 1
      %p205 = por %p203, %p204
      %p206 = scmp.ne.s32.totalorder %s198, %s201
      %p207 = scmp.eq.s32.totalorder %s20, 0
      %p208 = por %p206, %p207
      %p209 = scmp.ne.s32.totalorder %s198, %s201
      %p210 = scmp.eq.s32.totalorder %s25, 1
      %p211 = por %p209, %p210
      %p212 = scmp.ne.s32.totalorder %s201, %s202
      %p213 = scmp.eq.s32.totalorder %s25, 0
      %p214 = por %p212, %p213
      %p215 = scmp.ne.s32.totalorder %s201, %s202
      %p216 = scmp.eq.s32.totalorder %s26, 1
      %p217 = por %p215, %p216
      %p219 = scmp.ne.s32.totalorder %s202, %s218
      %p220 = scmp.eq.s32.totalorder %s26, 0
      %p221 = por %p219, %p220
      %s222 = ssub.s32 %s28, %s35
      %p223 = scmp.eq.s32.totalorder %s222, 0
      %s225 = sadd.s32 %s224, 1
      %s226 = scalar_select %p223, %s224, %s225
      %p229 = pneg %p223
      %p230 = scmp.eq.s32.totalorder %s20, 1
      %p231 = por %p229, %p230
      %p232 = scmp.ne.s32.totalorder %s224, %s227
      %p233 = scmp.eq.s32.totalorder %s20, 0
      %p234 = por %p232, %p233
      %p235 = scmp.ne.s32.totalorder %s224, %s227
      %p236 = scmp.eq.s32.totalorder %s25, 1
      %p237 = por %p235, %p236
      %p238 = scmp.ne.s32.totalorder %s227, %s228
      %p239 = scmp.eq.s32.totalorder %s25, 0
      %p240 = por %p238, %p239
      %p241 = scmp.ne.s32.totalorder %s227, %s228
      %p242 = scmp.eq.s32.totalorder %s26, 1
      %p243 = por %p241, %p242
      %p245 = scmp.ne.s32.totalorder %s228, %s244
      %p246 = scmp.eq.s32.totalorder %s26, 0
      %p247 = por %p245, %p246
      %s248 = ssub.s32 %s27, %s39
      %p249 = scmp.eq.s32.totalorder %s248, 0
      %s251 = sadd.s32 %s250, 1
      %s252 = scalar_select %p249, %s250, %s251
      %p255 = pneg %p249
      %p256 = scmp.eq.s32.totalorder %s20, 1
      %p257 = por %p255, %p256
      %p258 = scmp.ne.s32.totalorder %s250, %s253
      %p259 = scmp.eq.s32.totalorder %s20, 0
      %p260 = por %p258, %p259
      %p261 = scmp.ne.s32.totalorder %s250, %s253
      %p262 = scmp.eq.s32.totalorder %s25, 1
      %p263 = por %p261, %p262
      %p264 = scmp.ne.s32.totalorder %s253, %s254
      %p265 = scmp.eq.s32.totalorder %s25, 0
      %p266 = por %p264, %p265
      %p267 = scmp.ne.s32.totalorder %s253, %s254
      %p268 = scmp.eq.s32.totalorder %s26, 1
      %p269 = por %p267, %p268
      %p271 = scmp.ne.s32.totalorder %s254, %s270
      %p272 = scmp.eq.s32.totalorder %s26, 0
      %p273 = por %p271, %p272
      %p274 = scmp.le.s32.totalorder 1, %s20
      %p275 = scmp.lt.s32.totalorder %s20, 3
      %p276 = pnand %p274, %p275
      %p277 = pneg %p276
      // Predicated region
      $region9: #{_forward.1} parent=5 // pred_check
        _
      $region10: #{_forward.1} parent=5 // pred_check_branch
        %279 = sbr.rel (%p276) target = $region12
      $region11: #{_forward.1} parent=5 // pred_region
        %s280 = ssub.s32 %s20, 1
        // Predicated region
        $region13: #{_forward.1} parent=11 // pred_check
          %p281 = pneg %p58
        $region14: #{_forward.1} parent=11 // pred_check_branch
          %283 = sbr.rel (%p281) target = $region16
        $region15: #{_forward.1} parent=11 // pred_region
          %s284 = smul.u32 4, %s29
          %p285 = scmp.lt.s32.totalorder %s284, 3
          %s286 = scalar_select %p285, %s284, 3
          %s287 = smul.addr %s286, 8
          %s288 = smul.addr %s287, 8
          %s289 = scalar_lea.vmem %s0, %s288
          %s290 = smul.u32 4, %s29
        $region16: #{_forward.1} parent=11 // pred_fallthru
          _
      $region12: #{_forward.1} parent=5 // pred_fallthru
        _
      %p291 = scmp.lt.s32.totalorder %s20, 2
      // Predicated region
      $region17: #{_forward.1} parent=5 // pred_check
        %p292 = pneg %p291
      $region18: #{_forward.1} parent=5 // pred_check_branch
        %294 = sbr.rel (%p292) target = $region20
      $region19: #{_forward.1} parent=5 // pred_region
        // Predicated region
        $region21: #{_forward.1} parent=19 // pred_check
          %p295 = pneg %p78
        $region22: #{_forward.1} parent=19 // pred_check_branch
          %297 = sbr.rel (%p295) target = $region24
        $region23: #{_forward.1} parent=19 // pred_region
          %p298 = scmp.lt.s32.totalorder %s28, 1
          %s299 = scalar_select %p298, %s28, 1
          %s300 = smul.addr %s299, 96
          %s301 = smul.addr %s300, 4
          %s302 = scalar_lea.vmem %s1, %s301
        $region24: #{_forward.1} parent=19 // pred_fallthru
          _
        // Predicated region
        $region25: #{_forward.1} parent=19 // pred_check
          %p303 = pneg %p104
        $region26: #{_forward.1} parent=19 // pred_check_branch
          %305 = sbr.rel (%p303) target = $region28
        $region27: #{_forward.1} parent=19 // pred_region
          %p306 = scmp.lt.s32.totalorder %s28, 1
          %s307 = scalar_select %p306, %s28, 1
          %s308 = smul.addr %s307, 6
          %s309 = scalar_lea.vmem %s2, %s308
        $region28: #{_forward.1} parent=19 // pred_fallthru
          _
        // Predicated region
        $region29: #{_forward.1} parent=19 // pred_check
          %p310 = pneg %p130
        $region30: #{_forward.1} parent=19 // pred_check_branch
          %312 = sbr.rel (%p310) target = $region32
        $region31: #{_forward.1} parent=19 // pred_region
          %s313 = sand.u32 %s120, 1
          %s314 = scalar_lea.sflag [#allocation5], %s313
          %s315 = sand.u32 %s120, 1
          %s316 = smul.addr %s315, 128
          %s317 = scalar_lea.vmem [#allocation4], %s316
          %319 = vsyncadd %s314, 0
          %s320 = smul.addr %s28, 32
          %s321 = smul.addr %s320, 4
          %s322 = scalar_lea.hbm %s3, %s321
          %s323 = sshll.u32 %s322, 4
          %s324 = int_to_ptr.hbm [resolvable:$true] %s323
          %s325 = sshll.u32 %s317, 4
          %s326 = int_to_ptr.vmem [resolvable:$true] %s325
          %331 = dma.hbm_to_vmem [thread:$0]  %s324, 2048, %s326, %s314, 64, 64, 4
        $region32: #{_forward.1} parent=19 // pred_fallthru
          _
        // Predicated region
        $region33: #{_forward.1} parent=19 // pred_check
          %p332 = pneg %p156
        $region34: #{_forward.1} parent=19 // pred_check_branch
          %334 = sbr.rel (%p332) target = $region36
        $region35: #{_forward.1} parent=19 // pred_region
          %p335 = scmp.lt.s32.totalorder %s28, 1
          %s336 = scalar_select %p335, %s28, 1
          %s337 = smul.addr %s336, 8
          %s338 = scalar_lea.vmem %s4, %s337
        $region36: #{_forward.1} parent=19 // pred_fallthru
          _
        // Predicated region
        $region37: #{_forward.1} parent=19 // pred_check
          %p339 = pneg %p182
        $region38: #{_forward.1} parent=19 // pred_check_branch
          %341 = sbr.rel (%p339) target = $region40
        $region39: #{_forward.1} parent=19 // pred_region
          %p342 = scmp.lt.s32.totalorder %s28, 1
          %s343 = scalar_select %p342, %s28, 1
          %s344 = smul.addr %s343, 16
          %s345 = smul.addr %s344, 4
          %s346 = scalar_lea.vmem %s5, %s345
        $region40: #{_forward.1} parent=19 // pred_fallthru
          _
        // Predicated region
        $region41: #{_forward.1} parent=19 // pred_check
          %p347 = pneg %p208
        $region42: #{_forward.1} parent=19 // pred_check_branch
          %349 = sbr.rel (%p347) target = $region44
        $region43: #{_forward.1} parent=19 // pred_region
          %p350 = scmp.lt.s32.totalorder %s28, 1
          %s351 = scalar_select %p350, %s28, 1
          %s352 = scalar_lea.vmem %s6, %s351
        $region44: #{_forward.1} parent=19 // pred_fallthru
          _
        // Predicated region
        $region45: #{_forward.1} parent=19 // pred_check
          %p353 = pneg %p234
        $region46: #{_forward.1} parent=19 // pred_check_branch
          %355 = sbr.rel (%p353) target = $region48
        $region47: #{_forward.1} parent=19 // pred_region
          %s356 = sand.u32 %s224, 1
          %s357 = scalar_lea.sflag [#allocation7], %s356
          %s358 = sand.u32 %s224, 1
          %s359 = smul.addr %s358, 64
          %s360 = scalar_lea.vmem [#allocation6], %s359
          %362 = vsyncadd %s357, 0
          %s363 = smul.addr %s28, 16
          %s364 = smul.addr %s363, 4
          %s365 = scalar_lea.hbm %s7, %s364
          %s366 = sshll.u32 %s365, 4
          %s367 = int_to_ptr.hbm [resolvable:$true] %s366
          %s368 = sshll.u32 %s360, 4
          %s369 = int_to_ptr.vmem [resolvable:$true] %s368
          %374 = dma.hbm_to_vmem [thread:$0]  %s367, 1024, %s369, %s357, 64, 64, 4
        $region48: #{_forward.1} parent=19 // pred_fallthru
          _
      $region20: #{_forward.1} parent=5 // pred_fallthru
        _
      %p375 = scmp.le.s32.totalorder 1, %s20
      %p376 = scmp.lt.s32.totalorder %s20, 3
      %p377 = pnand %p375, %p376
      %p378 = pneg %p377
      // Predicated region
      $region49: #{_forward.1} parent=5 // pred_check
        _
      $region50: #{_forward.1} parent=5 // pred_check_branch
        %380 = sbr.rel (%p377) target = $region52
      $region51: #{_forward.1} parent=5 // pred_region
        %s381 = ssub.s32 %s20, 1
        %s382 = sand.u32 %s123, 1
        %s383 = scalar_lea.sflag [#allocation5], %s382
        %s384 = sand.u32 %s123, 1
        %s385 = smul.addr %s384, 128
        %s386 = scalar_lea.vmem [#allocation4], %s385
        // Predicated region
        $region53: #{_forward.1} parent=51 // pred_check
          %p387 = pneg %p136
        $region54: #{_forward.1} parent=51 // pred_check_branch
          %389 = sbr.rel (%p387) target = $region56
        $region55: #{_forward.1} parent=51 // pred_region
          %391 = dma.done %s383, 2048
        $region56: #{_forward.1} parent=51 // pred_fallthru
          _
        %s392 = sand.u32 %s227, 1
        %s393 = scalar_lea.sflag [#allocation7], %s392
        %s394 = sand.u32 %s227, 1
        %s395 = smul.addr %s394, 64
        %s396 = scalar_lea.vmem [#allocation6], %s395
        // Predicated region
        $region57: #{_forward.1} parent=51 // pred_check
          %p397 = pneg %p240
        $region58: #{_forward.1} parent=51 // pred_check_branch
          %399 = sbr.rel (%p397) target = $region60
        $region59: #{_forward.1} parent=51 // pred_region
          %401 = dma.done %s393, 1024
        $region60: #{_forward.1} parent=51 // pred_fallthru
          _
        %s402 = smul.u32 4, %s29
        %p403 = scmp.lt.s32.totalorder %s402, 3
        %s404 = scalar_select %p403, %s402, 3
        %s405 = smul.addr %s404, 8
        %s406 = smul.addr %s405, 8
        %s407 = scalar_lea.vmem %s0, %s406
        %p408 = pneg %p58
        %p409 = pneg %p55
        %p410 = scmp.lt.s32.totalorder %s30, 1
        %s411 = scalar_select %p410, %s30, 1
        %s412 = smul.addr %s411, 96
        %s413 = smul.addr %s412, 4
        %s414 = scalar_lea.vmem %s1, %s413
        %p415 = pneg %p84
        %p416 = pneg %p81
        %p417 = scmp.lt.s32.totalorder %s30, 1
        %s418 = scalar_select %p417, %s30, 1
        %s419 = smul.addr %s418, 6
        %s420 = scalar_lea.vmem %s2, %s419
        %p421 = pneg %p110
        %p422 = pneg %p107
        %s423 = sand.u32 %s123, 1
        %s424 = scalar_lea.sflag [#allocation5], %s423
        %s425 = sand.u32 %s123, 1
        %s426 = smul.addr %s425, 128
        %s427 = scalar_lea.vmem [#allocation4], %s426
        %p428 = pneg %p136
        %p429 = pneg %p133
        %p430 = scmp.lt.s32.totalorder %s30, 1
        %s431 = scalar_select %p430, %s30, 1
        %s432 = smul.addr %s431, 8
        %s433 = scalar_lea.vmem %s4, %s432
        %p434 = pneg %p162
        %p435 = pneg %p159
        %p436 = scmp.lt.s32.totalorder %s30, 1
        %s437 = scalar_select %p436, %s30, 1
        %s438 = smul.addr %s437, 16
        %s439 = smul.addr %s438, 4
        %s440 = scalar_lea.vmem %s5, %s439
        %p441 = pneg %p188
        %p442 = pneg %p185
        %p443 = scmp.lt.s32.totalorder %s30, 1
        %s444 = scalar_select %p443, %s30, 1
        %s445 = scalar_lea.vmem %s6, %s444
        %p446 = pneg %p214
        %p447 = pneg %p211
        %s448 = sand.u32 %s227, 1
        %s449 = scalar_lea.sflag [#allocation7], %s448
        %s450 = sand.u32 %s227, 1
        %s451 = smul.addr %s450, 64
        %s452 = scalar_lea.vmem [#allocation6], %s451
        %p453 = pneg %p240
        %p454 = pneg %p237
        %p455 = pneg %p266
        %p456 = pneg %p263
        %s457 = smul.u32 4, %s29
        %p458 = scmp.lt.s32.totalorder %s457, 3
        %s459 = scalar_select %p458, %s457, 3
        %s460 = smul.addr %s459, 8
        %s461 = smul.addr %s460, 8
        %s462 = scalar_lea.vmem %s8, %s461
        %s463 = smul.u32 4, %s29
        %p464 = scmp.lt.s32.totalorder %s463, 3
        %s465 = scalar_select %p464, %s463, 3
        %s466 = smul.addr %s465, 8
        %s467 = smul.addr %s466, 8
        %s468 = scalar_lea.vmem %s0, %s467
        %s469 = smul.u32 4, %s29
        %p470 = scmp.lt.s32.totalorder %s30, 1
        %s471 = scalar_select %p470, %s30, 1
        %s472 = smul.addr %s471, 96
        %s473 = smul.addr %s472, 4
        %s474 = scalar_lea.vmem %s1, %s473
        %p475 = scmp.lt.s32.totalorder %s30, 1
        %s476 = scalar_select %p475, %s30, 1
        %s477 = smul.addr %s476, 6
        %s478 = scalar_lea.vmem %s2, %s477
        %p479 = scmp.lt.s32.totalorder %s30, 1
        %s480 = scalar_select %p479, %s30, 1
        %s481 = smul.addr %s480, 8
        %s482 = scalar_lea.vmem %s4, %s481
        %p483 = scmp.lt.s32.totalorder %s30, 1
        %s484 = scalar_select %p483, %s30, 1
        %s485 = smul.addr %s484, 16
        %s486 = smul.addr %s485, 4
        %s487 = scalar_lea.vmem %s5, %s486
        %p488 = scmp.lt.s32.totalorder %s30, 1
        %s489 = scalar_select %p488, %s30, 1
        %s490 = scalar_lea.vmem %s6, %s489
        %s491 = smul.u32 4, %s29
        %p492 = scmp.lt.s32.totalorder %s491, 3
        %s493 = scalar_select %p492, %s491, 3
        %s494 = smul.addr %s493, 8
        %s495 = smul.addr %s494, 8
        %s496 = scalar_lea.vmem %s8, %s495
        %s497 = smul.u32 4, %s29
        %p499 = scmp.eq.s32.totalorder %s30, 0
        // Predicated region
        $region61: #{_forward.1} parent=51 // pred_check
          %p500 = pneg %p499
        $region62: #{_forward.1} parent=51 // pred_check_branch
          %502 = sbr.rel (%p500) target = $region64
        $region63: #{_forward.1} parent=51 // pred_region
          %v503 = vld [vmem:[%s468] sm:$0xff]
          %v504 = vld [vmem:[%s468 + $0x8] sm:$0xff]
          %v505 = vld [vmem:[%s468 + $0x10] sm:$0xff]
          %v506 = vld [vmem:[%s468 + $0x18] sm:$0xff]
          %v507 = vld [vmem:[%s468 + $0x20] sm:$0xff]
          %v508 = vld [vmem:[%s468 + $0x28] sm:$0xff]
          %v509 = vld [vmem:[%s468 + $0x30] sm:$0xff]
          %v510 = vld [vmem:[%s468 + $0x38] sm:$0xff]
          %v511 = vld [vmem:[%s468 + $0x40] sm:$0xff]
          %v512 = vld [vmem:[%s468 + $0x48] sm:$0xff]
          %v513 = vld [vmem:[%s468 + $0x50] sm:$0xff]
          %v514 = vld [vmem:[%s468 + $0x58] sm:$0xff]
          %v515 = vld [vmem:[%s468 + $0x60] sm:$0xff]
          %v516 = vld [vmem:[%s468 + $0x68] sm:$0xff]
          %v517 = vld [vmem:[%s468 + $0x70] sm:$0xff]
          %v518 = vld [vmem:[%s468 + $0x78] sm:$0xff]
          %v519 = vld [vmem:[%s468 + $0x80] sm:$0xff]
          %v520 = vld [vmem:[%s468 + $0x88] sm:$0xff]
          %v521 = vld [vmem:[%s468 + $0x90] sm:$0xff]
          %v522 = vld [vmem:[%s468 + $0x98] sm:$0xff]
          %v523 = vld [vmem:[%s468 + $0xa0] sm:$0xff]
          %v524 = vld [vmem:[%s468 + $0xa8] sm:$0xff]
          %v525 = vld [vmem:[%s468 + $0xb0] sm:$0xff]
          %v526 = vld [vmem:[%s468 + $0xb8] sm:$0xff]
          %v527 = vld [vmem:[%s468 + $0xc0] sm:$0xff]
          %v528 = vld [vmem:[%s468 + $0xc8] sm:$0xff]
          %v529 = vld [vmem:[%s468 + $0xd0] sm:$0xff]
          %v530 = vld [vmem:[%s468 + $0xd8] sm:$0xff]
          %v531 = vld [vmem:[%s468 + $0xe0] sm:$0xff]
          %v532 = vld [vmem:[%s468 + $0xe8] sm:$0xff]
          %v533 = vld [vmem:[%s468 + $0xf0] sm:$0xff]
          %v534 = vld [vmem:[%s468 + $0xf8] sm:$0xff]
          %535 = vst [vmem:[#allocation2] sm:$0xff] %v503
          %536 = vst [vmem:[#allocation2 + $0x8] sm:$0xff] %v504
          %537 = vst [vmem:[#allocation2 + $0x10] sm:$0xff] %v505
          %538 = vst [vmem:[#allocation2 + $0x18] sm:$0xff] %v506
          %539 = vst [vmem:[#allocation2 + $0x20] sm:$0xff] %v507
          %540 = vst [vmem:[#allocation2 + $0x28] sm:$0xff] %v508
          %541 = vst [vmem:[#allocation2 + $0x30] sm:$0xff] %v509
          %542 = vst [vmem:[#allocation2 + $0x38] sm:$0xff] %v510
          %543 = vst [vmem:[#allocation2 + $0x40] sm:$0xff] %v511
          %544 = vst [vmem:[#allocation2 + $0x48] sm:$0xff] %v512
          %545 = vst [vmem:[#allocation2 + $0x50] sm:$0xff] %v513
          %546 = vst [vmem:[#allocation2 + $0x58] sm:$0xff] %v514
          %547 = vst [vmem:[#allocation2 + $0x60] sm:$0xff] %v515
          %548 = vst [vmem:[#allocation2 + $0x68] sm:$0xff] %v516
          %549 = vst [vmem:[#allocation2 + $0x70] sm:$0xff] %v517
          %550 = vst [vmem:[#allocation2 + $0x78] sm:$0xff] %v518
          %551 = vst [vmem:[#allocation2 + $0x80] sm:$0xff] %v519
          %552 = vst [vmem:[#allocation2 + $0x88] sm:$0xff] %v520
          %553 = vst [vmem:[#allocation2 + $0x90] sm:$0xff] %v521
          %554 = vst [vmem:[#allocation2 + $0x98] sm:$0xff] %v522
          %555 = vst [vmem:[#allocation2 + $0xa0] sm:$0xff] %v523
          %556 = vst [vmem:[#allocation2 + $0xa8] sm:$0xff] %v524
          %557 = vst [vmem:[#allocation2 + $0xb0] sm:$0xff] %v525
          %558 = vst [vmem:[#allocation2 + $0xb8] sm:$0xff] %v526
          %559 = vst [vmem:[#allocation2 + $0xc0] sm:$0xff] %v527
          %560 = vst [vmem:[#allocation2 + $0xc8] sm:$0xff] %v528
          %561 = vst [vmem:[#allocation2 + $0xd0] sm:$0xff] %v529
          %562 = vst [vmem:[#allocation2 + $0xd8] sm:$0xff] %v530
          %563 = vst [vmem:[#allocation2 + $0xe0] sm:$0xff] %v531
          %564 = vst [vmem:[#allocation2 + $0xe8] sm:$0xff] %v532
          %565 = vst [vmem:[#allocation2 + $0xf0] sm:$0xff] %v533
          %566 = vst [vmem:[#allocation2 + $0xf8] sm:$0xff] %v534
        $region64: #{_forward.1} parent=51 // pred_fallthru
          _
        %v567 = vld [vmem:[#allocation2] sm:$0xff]
        %v568 = vld [vmem:[#allocation2 + $0x8] sm:$0xff]
        %v569 = vld [vmem:[#allocation2 + $0x10] sm:$0xff]
        %v570 = vld [vmem:[#allocation2 + $0x18] sm:$0xff]
        %v571 = vld [vmem:[#allocation2 + $0x20] sm:$0xff]
        %v572 = vld [vmem:[#allocation2 + $0x28] sm:$0xff]
        %v573 = vld [vmem:[#allocation2 + $0x30] sm:$0xff]
        %v574 = vld [vmem:[#allocation2 + $0x38] sm:$0xff]
        %v575 = vld [vmem:[#allocation2 + $0x40] sm:$0xff]
        %v576 = vld [vmem:[#allocation2 + $0x48] sm:$0xff]
        %v577 = vld [vmem:[#allocation2 + $0x50] sm:$0xff]
        %v578 = vld [vmem:[#allocation2 + $0x58] sm:$0xff]
        %v579 = vld [vmem:[#allocation2 + $0x60] sm:$0xff]
        %v580 = vld [vmem:[#allocation2 + $0x68] sm:$0xff]
        %v581 = vld [vmem:[#allocation2 + $0x70] sm:$0xff]
        %v582 = vld [vmem:[#allocation2 + $0x78] sm:$0xff]
        %v583 = vld [vmem:[#allocation2 + $0x80] sm:$0xff]
        %v584 = vld [vmem:[#allocation2 + $0x88] sm:$0xff]
        %v585 = vld [vmem:[#allocation2 + $0x90] sm:$0xff]
        %v586 = vld [vmem:[#allocation2 + $0x98] sm:$0xff]
        %v587 = vld [vmem:[#allocation2 + $0xa0] sm:$0xff]
        %v588 = vld [vmem:[#allocation2 + $0xa8] sm:$0xff]
        %v589 = vld [vmem:[#allocation2 + $0xb0] sm:$0xff]
        %v590 = vld [vmem:[#allocation2 + $0xb8] sm:$0xff]
        %v591 = vld [vmem:[#allocation2 + $0xc0] sm:$0xff]
        %v592 = vld [vmem:[#allocation2 + $0xc8] sm:$0xff]
        %v593 = vld [vmem:[#allocation2 + $0xd0] sm:$0xff]
        %v594 = vld [vmem:[#allocation2 + $0xd8] sm:$0xff]
        %v595 = vld [vmem:[#allocation2 + $0xe0] sm:$0xff]
        %v596 = vld [vmem:[#allocation2 + $0xe8] sm:$0xff]
        %v597 = vld [vmem:[#allocation2 + $0xf0] sm:$0xff]
        %v598 = vld [vmem:[#allocation2 + $0xf8] sm:$0xff]
        %v599 = vld [vmem:[%s482] sm:$0xff]
        %v600 = vlaneseq
        %v601 = vand.u32 %v600, 127
        %vm602 = vcmp.lt.s32.totalorder %v601, 32
        %v603 = vsel %vm602, 1, 0
        %v604 = vcvt.s32.f32 %v603
        %v605 = vpack.c.bf16 %v568, %v567
        %v606 = vpack.c.bf16 %v570, %v569
        %v607 = vpack.c.bf16 %v572, %v571
        %v608 = vpack.c.bf16 %v574, %v573
        %v609 = vpack.c.bf16 %v576, %v575
        %v610 = vpack.c.bf16 %v578, %v577
        %v611 = vpack.c.bf16 %v580, %v579
        %v612 = vpack.c.bf16 %v582, %v581
        %v613 = vpack.c.bf16 %v584, %v583
        %v614 = vpack.c.bf16 %v586, %v585
        %v615 = vpack.c.bf16 %v588, %v587
        %v616 = vpack.c.bf16 %v590, %v589
        %v617 = vpack.c.bf16 %v592, %v591
        %v618 = vpack.c.bf16 %v594, %v593
        %v619 = vpack.c.bf16 %v596, %v595
        %v620 = vpack.c.bf16 %v598, %v597
        %v621 = vld [vmem:[%s474] sm:$0xff]
        %v622 = vld [vmem:[%s474 + $0x8] sm:$0xff]
        %v623 = vld [vmem:[%s474 + $0x10] sm:$0xff]
        %v624 = vld [vmem:[%s474 + $0x18] sm:$0xff]
        %v625 = vld [vmem:[%s474 + $0x20] sm:$0xff]
        %v626 = vld [vmem:[%s474 + $0x28] sm:$0xff]
        %v627 = vld [vmem:[%s474 + $0x30] sm:$0xff]
        %v628 = vld [vmem:[%s474 + $0x38] sm:$0xff]
        %v629 = vld [vmem:[%s474 + $0x40] sm:$0xff]
        %v630 = vld [vmem:[%s474 + $0x48] sm:$0xff]
        %v631 = vld [vmem:[%s474 + $0x50] sm:$0xff]
        %v632 = vld [vmem:[%s474 + $0x58] sm:$0xff]
        %v633 = vld [vmem:[%s474 + $0x60] sm:$0xff]
        %v634 = vld [vmem:[%s474 + $0x68] sm:$0xff]
        %v635 = vld [vmem:[%s474 + $0x70] sm:$0xff]
        %v636 = vld [vmem:[%s474 + $0x78] sm:$0xff]
        %v637 = vld [vmem:[%s474 + $0x80] sm:$0xff]
        %v638 = vld [vmem:[%s474 + $0x88] sm:$0xff]
        %v639 = vld [vmem:[%s474 + $0x90] sm:$0xff]
        %v640 = vld [vmem:[%s474 + $0x98] sm:$0xff]
        %v641 = vld [vmem:[%s474 + $0xa0] sm:$0xff]
        %v642 = vld [vmem:[%s474 + $0xa8] sm:$0xff]
        %v643 = vld [vmem:[%s474 + $0xb0] sm:$0xff]
        %v644 = vld [vmem:[%s474 + $0xb8] sm:$0xff]
        %v645 = vld [vmem:[%s474 + $0xc0] sm:$0xff]
        %v646 = vld [vmem:[%s474 + $0xc8] sm:$0xff]
        %v647 = vld [vmem:[%s474 + $0xd0] sm:$0xff]
        %v648 = vld [vmem:[%s474 + $0xd8] sm:$0xff]
        %v649 = vld [vmem:[%s474 + $0xe0] sm:$0xff]
        %v650 = vld [vmem:[%s474 + $0xe8] sm:$0xff]
        %v651 = vld [vmem:[%s474 + $0xf0] sm:$0xff]
        %v652 = vld [vmem:[%s474 + $0xf8] sm:$0xff]
        %v653 = vld [vmem:[%s474 + $0x100] sm:$0xff]
        %v654 = vld [vmem:[%s474 + $0x108] sm:$0xff]
        %v655 = vld [vmem:[%s474 + $0x110] sm:$0xff]
        %v656 = vld [vmem:[%s474 + $0x118] sm:$0xff]
        %v657 = vld [vmem:[%s474 + $0x120] sm:$0xff]
        %v658 = vld [vmem:[%s474 + $0x128] sm:$0xff]
        %v659 = vld [vmem:[%s474 + $0x130] sm:$0xff]
        %v660 = vld [vmem:[%s474 + $0x138] sm:$0xff]
        %v661 = vld [vmem:[%s474 + $0x140] sm:$0xff]
        %v662 = vld [vmem:[%s474 + $0x148] sm:$0xff]
        %v663 = vld [vmem:[%s474 + $0x150] sm:$0xff]
        %v664 = vld [vmem:[%s474 + $0x158] sm:$0xff]
        %v665 = vld [vmem:[%s474 + $0x160] sm:$0xff]
        %v666 = vld [vmem:[%s474 + $0x168] sm:$0xff]
        %v667 = vld [vmem:[%s474 + $0x170] sm:$0xff]
        %v668 = vld [vmem:[%s474 + $0x178] sm:$0xff]
        %v669 = vld [vmem:[%s478] sm:$0x3f]
        %v671 = vperm.slane %v669, 0
        %v672 = vperm.slane %v669, 1
        %v673 = vperm.slane %v669, 2
        %v674 = vperm.slane %v669, 3
        %v675 = vperm.slane %v669, 4
        %v676 = vperm.slane %v669, 5
        %v731 = vunpack.c.l.b16 %v621
        %v732 = vunpack.c.h.b16 %v621
        %v733 = vunpack.c.l.b16 %v622
        %v734 = vunpack.c.h.b16 %v622
        %v735 = vunpack.c.l.b16 %v623
        %v736 = vunpack.c.h.b16 %v623
        %v737 = vunpack.c.l.b16 %v624
        %v738 = vunpack.c.h.b16 %v624
        %v739 = vunpack.c.l.b16 %v625
        %v740 = vunpack.c.h.b16 %v625
        %v741 = vunpack.c.l.b16 %v626
        %v742 = vunpack.c.h.b16 %v626
        %v743 = vunpack.c.l.b16 %v627
        %v744 = vunpack.c.h.b16 %v627
        %v745 = vunpack.c.l.b16 %v628
        %v746 = vunpack.c.h.b16 %v628
        %v747 = vunpack.c.l.b16 %v629
        %v748 = vunpack.c.h.b16 %v629
        %v749 = vunpack.c.l.b16 %v630
        %v750 = vunpack.c.h.b16 %v630
        %v751 = vunpack.c.l.b16 %v631
        %v752 = vunpack.c.h.b16 %v631
        %v753 = vunpack.c.l.b16 %v632
        %v754 = vunpack.c.h.b16 %v632
        %v755 = vunpack.c.l.b16 %v633
        %v756 = vunpack.c.h.b16 %v633
        %v757 = vunpack.c.l.b16 %v634
        %v758 = vunpack.c.h.b16 %v634
        %v759 = vunpack.c.l.b16 %v635
        %v760 = vunpack.c.h.b16 %v635
        %v761 = vunpack.c.l.b16 %v636
        %v762 = vunpack.c.h.b16 %v636
        %v763 = vunpack.c.l.b16 %v637
        %v764 = vunpack.c.h.b16 %v637
        %v765 = vunpack.c.l.b16 %v638
        %v766 = vunpack.c.h.b16 %v638
        %v767 = vunpack.c.l.b16 %v639
        %v768 = vunpack.c.h.b16 %v639
        %v769 = vunpack.c.l.b16 %v640
        %v770 = vunpack.c.h.b16 %v640
        %v771 = vunpack.c.l.b16 %v641
        %v772 = vunpack.c.h.b16 %v641
        %v773 = vunpack.c.l.b16 %v642
        %v774 = vunpack.c.h.b16 %v642
        %v775 = vunpack.c.l.b16 %v643
        %v776 = vunpack.c.h.b16 %v643
        %v777 = vunpack.c.l.b16 %v644
        %v778 = vunpack.c.h.b16 %v644
        %v779 = vunpack.c.l.b16 %v645
        %v780 = vunpack.c.h.b16 %v645
        %v781 = vunpack.c.l.b16 %v646
        %v782 = vunpack.c.h.b16 %v646
        %v783 = vunpack.c.l.b16 %v647
        %v784 = vunpack.c.h.b16 %v647
        %v785 = vunpack.c.l.b16 %v648
        %v786 = vunpack.c.h.b16 %v648
        %v787 = vunpack.c.l.b16 %v649
        %v788 = vunpack.c.h.b16 %v649
        %v789 = vunpack.c.l.b16 %v650
        %v790 = vunpack.c.h.b16 %v650
        %v791 = vunpack.c.l.b16 %v651
        %v792 = vunpack.c.h.b16 %v651
        %v793 = vunpack.c.l.b16 %v652
        %v794 = vunpack.c.h.b16 %v652
        %v795 = vunpack.c.l.b16 %v653
        %v796 = vunpack.c.h.b16 %v653
        %v797 = vunpack.c.l.b16 %v654
        %v798 = vunpack.c.h.b16 %v654
        %v799 = vunpack.c.l.b16 %v655
        %v800 = vunpack.c.h.b16 %v655
        %v801 = vunpack.c.l.b16 %v656
        %v802 = vunpack.c.h.b16 %v656
        %v803 = vunpack.c.l.b16 %v657
        %v804 = vunpack.c.h.b16 %v657
        %v805 = vunpack.c.l.b16 %v658
        %v806 = vunpack.c.h.b16 %v658
        %v807 = vunpack.c.l.b16 %v659
        %v808 = vunpack.c.h.b16 %v659
        %v809 = vunpack.c.l.b16 %v660
        %v810 = vunpack.c.h.b16 %v660
        %v811 = vunpack.c.l.b16 %v661
        %v812 = vunpack.c.h.b16 %v661
        %v813 = vunpack.c.l.b16 %v662
        %v814 = vunpack.c.h.b16 %v662
        %v815 = vunpack.c.l.b16 %v663
        %v816 = vunpack.c.h.b16 %v663
        %v817 = vunpack.c.l.b16 %v664
        %v818 = vunpack.c.h.b16 %v664
        %v819 = vunpack.c.l.b16 %v665
        %v820 = vunpack.c.h.b16 %v665
        %v821 = vunpack.c.l.b16 %v666
        %v822 = vunpack.c.h.b16 %v666
        %v823 = vunpack.c.l.b16 %v667
        %v824 = vunpack.c.h.b16 %v667
        %v825 = vunpack.c.l.b16 %v668
        %v826 = vunpack.c.h.b16 %v668
        %v827 = vpack.c.b16 %v737, %v731
        %v828 = vpack.c.b16 %v738, %v732
        %v829 = vpack.c.b16 %v739, %v733
        %v830 = vpack.c.b16 %v740, %v734
        %v831 = vpack.c.b16 %v741, %v735
        %v832 = vpack.c.b16 %v742, %v736
        %v833 = vpack.c.b16 %v749, %v743
        %v834 = vpack.c.b16 %v750, %v744
        %v835 = vpack.c.b16 %v751, %v745
        %v836 = vpack.c.b16 %v752, %v746
        %v837 = vpack.c.b16 %v753, %v747
        %v838 = vpack.c.b16 %v754, %v748
        %v839 = vpack.c.b16 %v761, %v755
        %v840 = vpack.c.b16 %v762, %v756
        %v841 = vpack.c.b16 %v763, %v757
        %v842 = vpack.c.b16 %v764, %v758
        %v843 = vpack.c.b16 %v765, %v759
        %v844 = vpack.c.b16 %v766, %v760
        %v845 = vpack.c.b16 %v773, %v767
        %v846 = vpack.c.b16 %v774, %v768
        %v847 = vpack.c.b16 %v775, %v769
        %v848 = vpack.c.b16 %v776, %v770
        %v849 = vpack.c.b16 %v777, %v771
        %v850 = vpack.c.b16 %v778, %v772
        %v851 = vpack.c.b16 %v785, %v779
        %v852 = vpack.c.b16 %v786, %v780
        %v853 = vpack.c.b16 %v787, %v781
        %v854 = vpack.c.b16 %v788, %v782
        %v855 = vpack.c.b16 %v789, %v783
        %v856 = vpack.c.b16 %v790, %v784
        %v857 = vpack.c.b16 %v797, %v791
        %v858 = vpack.c.b16 %v798, %v792
        %v859 = vpack.c.b16 %v799, %v793
        %v860 = vpack.c.b16 %v800, %v794
        %v861 = vpack.c.b16 %v801, %v795
        %v862 = vpack.c.b16 %v802, %v796
        %v863 = vpack.c.b16 %v809, %v803
        %v864 = vpack.c.b16 %v810, %v804
        %v865 = vpack.c.b16 %v811, %v805
        %v866 = vpack.c.b16 %v812, %v806
        %v867 = vpack.c.b16 %v813, %v807
        %v868 = vpack.c.b16 %v814, %v808
        %v869 = vpack.c.b16 %v821, %v815
        %v870 = vpack.c.b16 %v822, %v816
        %v871 = vpack.c.b16 %v823, %v817
        %v872 = vpack.c.b16 %v824, %v818
        %v873 = vpack.c.b16 %v825, %v819
        %v874 = vpack.c.b16 %v826, %v820
        %923 = vmatpush.bf16.msra.mxu0 %v869
        %924 = vmatpush.bf16.msra.mxu0 %v863
        %925 = vmatpush.bf16.msra.mxu0 %v857
        %926 = vmatpush.bf16.msra.mxu0 %v851
        %927 = vmatpush.bf16.msra.mxu0 %v845
        %928 = vmatpush.bf16.msra.mxu0 %v839
        %929 = vmatpush.bf16.msra.mxu0 %v833
        %930 = vmatpush.bf16.msra.mxu0 %v827
        %931 = vmatmul.bf16.gmra.mxu0 %v605
        %v932 = vpop.f32.mrf.mxu0
        %v933 = vadd.f32 %v671, %v932
        %v934 = vpop.f32.mrf.mxu0
        %v935 = vadd.f32 %v671, %v934
        %936 = vmatmul.bf16.gmra.mxu0 %v606
        %v937 = vpop.f32.mrf.mxu0
        %v938 = vadd.f32 %v671, %v937
        %v939 = vpop.f32.mrf.mxu0
        %v940 = vadd.f32 %v671, %v939
        %941 = vmatmul.bf16.gmra.mxu0 %v607
        %v942 = vpop.f32.mrf.mxu0
        %v943 = vadd.f32 %v671, %v942
        %v944 = vpop.f32.mrf.mxu0
        %v945 = vadd.f32 %v671, %v944
        %946 = vmatmul.bf16.gmra.mxu0 %v608
        %v947 = vpop.f32.mrf.mxu0
        %v948 = vadd.f32 %v671, %v947
        %v949 = vpop.f32.mrf.mxu0
        %v950 = vadd.f32 %v671, %v949
        %951 = vmatmul.bf16.gmra.mxu0 %v609
        %v952 = vpop.f32.mrf.mxu0
        %v953 = vadd.f32 %v671, %v952
        %v954 = vpop.f32.mrf.mxu0
        %v955 = vadd.f32 %v671, %v954
        %956 = vmatmul.bf16.gmra.mxu0 %v610
        %v957 = vpop.f32.mrf.mxu0
        %v958 = vadd.f32 %v671, %v957
        %v959 = vpop.f32.mrf.mxu0
        %v960 = vadd.f32 %v671, %v959
        %961 = vmatmul.bf16.gmra.mxu0 %v611
        %v962 = vpop.f32.mrf.mxu0
        %v963 = vadd.f32 %v671, %v962
        %v964 = vpop.f32.mrf.mxu0
        %v965 = vadd.f32 %v671, %v964
        %966 = vmatmul.bf16.gmra.mxu0 %v612
        %v967 = vpop.f32.mrf.mxu0
        %v968 = vadd.f32 %v671, %v967
        %v969 = vpop.f32.mrf.mxu0
        %v970 = vadd.f32 %v671, %v969
        %971 = vmatmul.bf16.gmra.mxu0 %v613
        %v972 = vpop.f32.mrf.mxu0
        %v973 = vadd.f32 %v671, %v972
        %v974 = vpop.f32.mrf.mxu0
        %v975 = vadd.f32 %v671, %v974
        %976 = vmatmul.bf16.gmra.mxu0 %v614
        %v977 = vpop.f32.mrf.mxu0
        %v978 = vadd.f32 %v671, %v977
        %v979 = vpop.f32.mrf.mxu0
        %v980 = vadd.f32 %v671, %v979
        %981 = vmatmul.bf16.gmra.mxu0 %v615
        %v982 = vpop.f32.mrf.mxu0
        %v983 = vadd.f32 %v671, %v982
        %v984 = vpop.f32.mrf.mxu0
        %v985 = vadd.f32 %v671, %v984
        %986 = vmatmul.bf16.gmra.mxu0 %v616
        %v987 = vpop.f32.mrf.mxu0
        %v988 = vadd.f32 %v671, %v987
        %v989 = vpop.f32.mrf.mxu0
        %v990 = vadd.f32 %v671, %v989
        %991 = vmatmul.bf16.gmra.mxu0 %v617
        %v992 = vpop.f32.mrf.mxu0
        %v993 = vadd.f32 %v671, %v992
        %v994 = vpop.f32.mrf.mxu0
        %v995 = vadd.f32 %v671, %v994
        %996 = vmatmul.bf16.gmra.mxu0 %v618
        %v997 = vpop.f32.mrf.mxu0
        %v998 = vadd.f32 %v671, %v997
        %v999 = vpop.f32.mrf.mxu0
        %v1000 = vadd.f32 %v671, %v999
        %1001 = vmatmul.bf16.gmra.mxu0 %v619
        %v1002 = vpop.f32.mrf.mxu0
        %v1003 = vadd.f32 %v671, %v1002
        %v1004 = vpop.f32.mrf.mxu0
        %v1005 = vadd.f32 %v671, %v1004
        %1006 = vmatmul.bf16.gmra.mxu0 %v620
        %v1007 = vpop.f32.mrf.mxu0
        %v1008 = vadd.f32 %v671, %v1007
        %v1009 = vpop.f32.mrf.mxu0
        %v1010 = vadd.f32 %v671, %v1009
        %1011 = vdwg.mxu0
        %1012 = vmatpush.bf16.msra.mxu0 %v870
        %1013 = vmatpush.bf16.msra.mxu0 %v864
        %1014 = vmatpush.bf16.msra.mxu0 %v858
        %1015 = vmatpush.bf16.msra.mxu0 %v852
        %1016 = vmatpush.bf16.msra.mxu0 %v846
        %1017 = vmatpush.bf16.msra.mxu0 %v840
        %1018 = vmatpush.bf16.msra.mxu0 %v834
        %1019 = vmatpush.bf16.msra.mxu0 %v828
        %1020 = vmatmul.bf16.gmra.mxu0 %v605
        %v1021 = vpop.f32.mrf.mxu0
        %v1022 = vadd.f32 %v672, %v1021
        %v1023 = vpop.f32.mrf.mxu0
        %v1024 = vadd.f32 %v672, %v1023
        %1025 = vmatmul.bf16.gmra.mxu0 %v606
        %v1026 = vpop.f32.mrf.mxu0
        %v1027 = vadd.f32 %v672, %v1026
        %v1028 = vpop.f32.mrf.mxu0
        %v1029 = vadd.f32 %v672, %v1028
        %1030 = vmatmul.bf16.gmra.mxu0 %v607
        %v1031 = vpop.f32.mrf.mxu0
        %v1032 = vadd.f32 %v672, %v1031
        %v1033 = vpop.f32.mrf.mxu0
        %v1034 = vadd.f32 %v672, %v1033
        %1035 = vmatmul.bf16.gmra.mxu0 %v608
        %v1036 = vpop.f32.mrf.mxu0
        %v1037 = vadd.f32 %v672, %v1036
        %v1038 = vpop.f32.mrf.mxu0
        %v1039 = vadd.f32 %v672, %v1038
        %1040 = vmatmul.bf16.gmra.mxu0 %v609
        %v1041 = vpop.f32.mrf.mxu0
        %v1042 = vadd.f32 %v672, %v1041
        %v1043 = vpop.f32.mrf.mxu0
        %v1044 = vadd.f32 %v672, %v1043
        %1045 = vmatmul.bf16.gmra.mxu0 %v610
        %v1046 = vpop.f32.mrf.mxu0
        %v1047 = vadd.f32 %v672, %v1046
        %v1048 = vpop.f32.mrf.mxu0
        %v1049 = vadd.f32 %v672, %v1048
        %1050 = vmatmul.bf16.gmra.mxu0 %v611
        %v1051 = vpop.f32.mrf.mxu0
        %v1052 = vadd.f32 %v672, %v1051
        %v1053 = vpop.f32.mrf.mxu0
        %v1054 = vadd.f32 %v672, %v1053
        %1055 = vmatmul.bf16.gmra.mxu0 %v612
        %v1056 = vpop.f32.mrf.mxu0
        %v1057 = vadd.f32 %v672, %v1056
        %v1058 = vpop.f32.mrf.mxu0
        %v1059 = vadd.f32 %v672, %v1058
        %1060 = vmatmul.bf16.gmra.mxu0 %v613
        %v1061 = vpop.f32.mrf.mxu0
        %v1062 = vadd.f32 %v672, %v1061
        %v1063 = vpop.f32.mrf.mxu0
        %v1064 = vadd.f32 %v672, %v1063
        %1065 = vmatmul.bf16.gmra.mxu0 %v614
        %v1066 = vpop.f32.mrf.mxu0
        %v1067 = vadd.f32 %v672, %v1066
        %v1068 = vpop.f32.mrf.mxu0
        %v1069 = vadd.f32 %v672, %v1068
        %1070 = vmatmul.bf16.gmra.mxu0 %v615
        %v1071 = vpop.f32.mrf.mxu0
        %v1072 = vadd.f32 %v672, %v1071
        %v1073 = vpop.f32.mrf.mxu0
        %v1074 = vadd.f32 %v672, %v1073
        %1075 = vmatmul.bf16.gmra.mxu0 %v616
        %v1076 = vpop.f32.mrf.mxu0
        %v1077 = vadd.f32 %v672, %v1076
        %v1078 = vpop.f32.mrf.mxu0
        %v1079 = vadd.f32 %v672, %v1078
        %1080 = vmatmul.bf16.gmra.mxu0 %v617
        %v1081 = vpop.f32.mrf.mxu0
        %v1082 = vadd.f32 %v672, %v1081
        %v1083 = vpop.f32.mrf.mxu0
        %v1084 = vadd.f32 %v672, %v1083
        %1085 = vmatmul.bf16.gmra.mxu0 %v618
        %v1086 = vpop.f32.mrf.mxu0
        %v1087 = vadd.f32 %v672, %v1086
        %v1088 = vpop.f32.mrf.mxu0
        %v1089 = vadd.f32 %v672, %v1088
        %1090 = vmatmul.bf16.gmra.mxu0 %v619
        %v1091 = vpop.f32.mrf.mxu0
        %v1092 = vadd.f32 %v672, %v1091
        %v1093 = vpop.f32.mrf.mxu0
        %v1094 = vadd.f32 %v672, %v1093
        %1095 = vmatmul.bf16.gmra.mxu0 %v620
        %v1096 = vpop.f32.mrf.mxu0
        %v1097 = vadd.f32 %v672, %v1096
        %v1098 = vpop.f32.mrf.mxu0
        %v1099 = vadd.f32 %v672, %v1098
        %1100 = vdwg.mxu0
        %1101 = vmatpush.bf16.msra.mxu0 %v871
        %1102 = vmatpush.bf16.msra.mxu0 %v865
        %1103 = vmatpush.bf16.msra.mxu0 %v859
        %1104 = vmatpush.bf16.msra.mxu0 %v853
        %1105 = vmatpush.bf16.msra.mxu0 %v847
        %1106 = vmatpush.bf16.msra.mxu0 %v841
        %1107 = vmatpush.bf16.msra.mxu0 %v835
        %1108 = vmatpush.bf16.msra.mxu0 %v829
        %1109 = vmatmul.bf16.gmra.mxu0 %v605
        %v1110 = vpop.f32.mrf.mxu0
        %v1111 = vadd.f32 %v673, %v1110
        %v1112 = vpop.f32.mrf.mxu0
        %v1113 = vadd.f32 %v673, %v1112
        %1114 = vmatmul.bf16.gmra.mxu0 %v606
        %v1115 = vpop.f32.mrf.mxu0
        %v1116 = vadd.f32 %v673, %v1115
        %v1117 = vpop.f32.mrf.mxu0
        %v1118 = vadd.f32 %v673, %v1117
        %1119 = vmatmul.bf16.gmra.mxu0 %v607
        %v1120 = vpop.f32.mrf.mxu0
        %v1121 = vadd.f32 %v673, %v1120
        %v1122 = vpop.f32.mrf.mxu0
        %v1123 = vadd.f32 %v673, %v1122
        %1124 = vmatmul.bf16.gmra.mxu0 %v608
        %v1125 = vpop.f32.mrf.mxu0
        %v1126 = vadd.f32 %v673, %v1125
        %v1127 = vpop.f32.mrf.mxu0
        %v1128 = vadd.f32 %v673, %v1127
        %1129 = vmatmul.bf16.gmra.mxu0 %v609
        %v1130 = vpop.f32.mrf.mxu0
        %v1131 = vadd.f32 %v673, %v1130
        %v1132 = vpop.f32.mrf.mxu0
        %v1133 = vadd.f32 %v673, %v1132
        %1134 = vmatmul.bf16.gmra.mxu0 %v610
        %v1135 = vpop.f32.mrf.mxu0
        %v1136 = vadd.f32 %v673, %v1135
        %v1137 = vpop.f32.mrf.mxu0
        %v1138 = vadd.f32 %v673, %v1137
        %1139 = vmatmul.bf16.gmra.mxu0 %v611
        %v1140 = vpop.f32.mrf.mxu0
        %v1141 = vadd.f32 %v673, %v1140
        %v1142 = vpop.f32.mrf.mxu0
        %v1143 = vadd.f32 %v673, %v1142
        %1144 = vmatmul.bf16.gmra.mxu0 %v612
        %v1145 = vpop.f32.mrf.mxu0
        %v1146 = vadd.f32 %v673, %v1145
        %v1147 = vpop.f32.mrf.mxu0
        %v1148 = vadd.f32 %v673, %v1147
        %1149 = vmatmul.bf16.gmra.mxu0 %v613
        %v1150 = vpop.f32.mrf.mxu0
        %v1151 = vadd.f32 %v673, %v1150
        %v1152 = vpop.f32.mrf.mxu0
        %v1153 = vadd.f32 %v673, %v1152
        %1154 = vmatmul.bf16.gmra.mxu0 %v614
        %v1155 = vpop.f32.mrf.mxu0
        %v1156 = vadd.f32 %v673, %v1155
        %v1157 = vpop.f32.mrf.mxu0
        %v1158 = vadd.f32 %v673, %v1157
        %1159 = vmatmul.bf16.gmra.mxu0 %v615
        %v1160 = vpop.f32.mrf.mxu0
        %v1161 = vadd.f32 %v673, %v1160
        %v1162 = vpop.f32.mrf.mxu0
        %v1163 = vadd.f32 %v673, %v1162
        %1164 = vmatmul.bf16.gmra.mxu0 %v616
        %v1165 = vpop.f32.mrf.mxu0
        %v1166 = vadd.f32 %v673, %v1165
        %v1167 = vpop.f32.mrf.mxu0
        %v1168 = vadd.f32 %v673, %v1167
        %1169 = vmatmul.bf16.gmra.mxu0 %v617
        %v1170 = vpop.f32.mrf.mxu0
        %v1171 = vadd.f32 %v673, %v1170
        %v1172 = vpop.f32.mrf.mxu0
        %v1173 = vadd.f32 %v673, %v1172
        %1174 = vmatmul.bf16.gmra.mxu0 %v618
        %v1175 = vpop.f32.mrf.mxu0
        %v1176 = vadd.f32 %v673, %v1175
        %v1177 = vpop.f32.mrf.mxu0
        %v1178 = vadd.f32 %v673, %v1177
        %1179 = vmatmul.bf16.gmra.mxu0 %v619
        %v1180 = vpop.f32.mrf.mxu0
        %v1181 = vadd.f32 %v673, %v1180
        %v1182 = vpop.f32.mrf.mxu0
        %v1183 = vadd.f32 %v673, %v1182
        %1184 = vmatmul.bf16.gmra.mxu0 %v620
        %v1185 = vpop.f32.mrf.mxu0
        %v1186 = vadd.f32 %v673, %v1185
        %v1187 = vpop.f32.mrf.mxu0
        %v1188 = vadd.f32 %v673, %v1187
        %1189 = vdwg.mxu0
        %1190 = vmatpush.bf16.msra.mxu0 %v872
        %1191 = vmatpush.bf16.msra.mxu0 %v866
        %1192 = vmatpush.bf16.msra.mxu0 %v860
        %1193 = vmatpush.bf16.msra.mxu0 %v854
        %1194 = vmatpush.bf16.msra.mxu0 %v848
        %1195 = vmatpush.bf16.msra.mxu0 %v842
        %1196 = vmatpush.bf16.msra.mxu0 %v836
        %1197 = vmatpush.bf16.msra.mxu0 %v830
        %1198 = vmatmul.bf16.gmra.mxu0 %v605
        %v1199 = vpop.f32.mrf.mxu0
        %v1200 = vadd.f32 %v674, %v1199
        %v1201 = vpop.f32.mrf.mxu0
        %v1202 = vadd.f32 %v674, %v1201
        %1203 = vmatmul.bf16.gmra.mxu0 %v606
        %v1204 = vpop.f32.mrf.mxu0
        %v1205 = vadd.f32 %v674, %v1204
        %v1206 = vpop.f32.mrf.mxu0
        %v1207 = vadd.f32 %v674, %v1206
        %1208 = vmatmul.bf16.gmra.mxu0 %v607
        %v1209 = vpop.f32.mrf.mxu0
        %v1210 = vadd.f32 %v674, %v1209
        %v1211 = vpop.f32.mrf.mxu0
        %v1212 = vadd.f32 %v674, %v1211
        %1213 = vmatmul.bf16.gmra.mxu0 %v608
        %v1214 = vpop.f32.mrf.mxu0
        %v1215 = vadd.f32 %v674, %v1214
        %v1216 = vpop.f32.mrf.mxu0
        %v1217 = vadd.f32 %v674, %v1216
        %1218 = vmatmul.bf16.gmra.mxu0 %v609
        %v1219 = vpop.f32.mrf.mxu0
        %v1220 = vadd.f32 %v674, %v1219
        %v1221 = vpop.f32.mrf.mxu0
        %v1222 = vadd.f32 %v674, %v1221
        %1223 = vmatmul.bf16.gmra.mxu0 %v610
        %v1224 = vpop.f32.mrf.mxu0
        %v1225 = vadd.f32 %v674, %v1224
        %v1226 = vpop.f32.mrf.mxu0
        %v1227 = vadd.f32 %v674, %v1226
        %1228 = vmatmul.bf16.gmra.mxu0 %v611
        %v1229 = vpop.f32.mrf.mxu0
        %v1230 = vadd.f32 %v674, %v1229
        %v1231 = vpop.f32.mrf.mxu0
        %v1232 = vadd.f32 %v674, %v1231
        %1233 = vmatmul.bf16.gmra.mxu0 %v612
        %v1234 = vpop.f32.mrf.mxu0
        %v1235 = vadd.f32 %v674, %v1234
        %v1236 = vpop.f32.mrf.mxu0
        %v1237 = vadd.f32 %v674, %v1236
        %1238 = vmatmul.bf16.gmra.mxu0 %v613
        %v1239 = vpop.f32.mrf.mxu0
        %v1240 = vadd.f32 %v674, %v1239
        %v1241 = vpop.f32.mrf.mxu0
        %v1242 = vadd.f32 %v674, %v1241
        %1243 = vmatmul.bf16.gmra.mxu0 %v614
        %v1244 = vpop.f32.mrf.mxu0
        %v1245 = vadd.f32 %v674, %v1244
        %v1246 = vpop.f32.mrf.mxu0
        %v1247 = vadd.f32 %v674, %v1246
        %1248 = vmatmul.bf16.gmra.mxu0 %v615
        %v1249 = vpop.f32.mrf.mxu0
        %v1250 = vadd.f32 %v674, %v1249
        %v1251 = vpop.f32.mrf.mxu0
        %v1252 = vadd.f32 %v674, %v1251
        %1253 = vmatmul.bf16.gmra.mxu0 %v616
        %v1254 = vpop.f32.mrf.mxu0
        %v1255 = vadd.f32 %v674, %v1254
        %v1256 = vpop.f32.mrf.mxu0
        %v1257 = vadd.f32 %v674, %v1256
        %1258 = vmatmul.bf16.gmra.mxu0 %v617
        %v1259 = vpop.f32.mrf.mxu0
        %v1260 = vadd.f32 %v674, %v1259
        %v1261 = vpop.f32.mrf.mxu0
        %v1262 = vadd.f32 %v674, %v1261
        %1263 = vmatmul.bf16.gmra.mxu0 %v618
        %v1264 = vpop.f32.mrf.mxu0
        %v1265 = vadd.f32 %v674, %v1264
        %v1266 = vpop.f32.mrf.mxu0
        %v1267 = vadd.f32 %v674, %v1266
        %1268 = vmatmul.bf16.gmra.mxu0 %v619
        %v1269 = vpop.f32.mrf.mxu0
        %v1270 = vadd.f32 %v674, %v1269
        %v1271 = vpop.f32.mrf.mxu0
        %v1272 = vadd.f32 %v674, %v1271
        %1273 = vmatmul.bf16.gmra.mxu0 %v620
        %v1274 = vpop.f32.mrf.mxu0
        %v1275 = vadd.f32 %v674, %v1274
        %v1276 = vpop.f32.mrf.mxu0
        %v1277 = vadd.f32 %v674, %v1276
        %1278 = vdwg.mxu0
        %1279 = vmatpush.bf16.msra.mxu0 %v873
        %1280 = vmatpush.bf16.msra.mxu0 %v867
        %1281 = vmatpush.bf16.msra.mxu0 %v861
        %1282 = vmatpush.bf16.msra.mxu0 %v855
        %1283 = vmatpush.bf16.msra.mxu0 %v849
        %1284 = vmatpush.bf16.msra.mxu0 %v843
        %1285 = vmatpush.bf16.msra.mxu0 %v837
        %1286 = vmatpush.bf16.msra.mxu0 %v831
        %1287 = vmatmul.bf16.gmra.mxu0 %v605
        %v1288 = vpop.f32.mrf.mxu0
        %v1289 = vadd.f32 %v675, %v1288
        %v1290 = vpop.f32.mrf.mxu0
        %v1291 = vadd.f32 %v675, %v1290
        %1292 = vmatmul.bf16.gmra.mxu0 %v606
        %v1293 = vpop.f32.mrf.mxu0
        %v1294 = vadd.f32 %v675, %v1293
        %v1295 = vpop.f32.mrf.mxu0
        %v1296 = vadd.f32 %v675, %v1295
        %1297 = vmatmul.bf16.gmra.mxu0 %v607
        %v1298 = vpop.f32.mrf.mxu0
        %v1299 = vadd.f32 %v675, %v1298
        %v1300 = vpop.f32.mrf.mxu0
        %v1301 = vadd.f32 %v675, %v1300
        %1302 = vmatmul.bf16.gmra.mxu0 %v608
        %v1303 = vpop.f32.mrf.mxu0
        %v1304 = vadd.f32 %v675, %v1303
        %v1305 = vpop.f32.mrf.mxu0
        %v1306 = vadd.f32 %v675, %v1305
        %1307 = vmatmul.bf16.gmra.mxu0 %v609
        %v1308 = vpop.f32.mrf.mxu0
        %v1309 = vadd.f32 %v675, %v1308
        %v1310 = vpop.f32.mrf.mxu0
        %v1311 = vadd.f32 %v675, %v1310
        %1312 = vmatmul.bf16.gmra.mxu0 %v610
        %v1313 = vpop.f32.mrf.mxu0
        %v1314 = vadd.f32 %v675, %v1313
        %v1315 = vpop.f32.mrf.mxu0
        %v1316 = vadd.f32 %v675, %v1315
        %1317 = vmatmul.bf16.gmra.mxu0 %v611
        %v1318 = vpop.f32.mrf.mxu0
        %v1319 = vadd.f32 %v675, %v1318
        %v1320 = vpop.f32.mrf.mxu0
        %v1321 = vadd.f32 %v675, %v1320
        %1322 = vmatmul.bf16.gmra.mxu0 %v612
        %v1323 = vpop.f32.mrf.mxu0
        %v1324 = vadd.f32 %v675, %v1323
        %v1325 = vpop.f32.mrf.mxu0
        %v1326 = vadd.f32 %v675, %v1325
        %1327 = vmatmul.bf16.gmra.mxu0 %v613
        %v1328 = vpop.f32.mrf.mxu0
        %v1329 = vadd.f32 %v675, %v1328
        %v1330 = vpop.f32.mrf.mxu0
        %v1331 = vadd.f32 %v675, %v1330
        %1332 = vmatmul.bf16.gmra.mxu0 %v614
        %v1333 = vpop.f32.mrf.mxu0
        %v1334 = vadd.f32 %v675, %v1333
        %v1335 = vpop.f32.mrf.mxu0
        %v1336 = vadd.f32 %v675, %v1335
        %1337 = vmatmul.bf16.gmra.mxu0 %v615
        %v1338 = vpop.f32.mrf.mxu0
        %v1339 = vadd.f32 %v675, %v1338
        %v1340 = vpop.f32.mrf.mxu0
        %v1341 = vadd.f32 %v675, %v1340
        %1342 = vmatmul.bf16.gmra.mxu0 %v616
        %v1343 = vpop.f32.mrf.mxu0
        %v1344 = vadd.f32 %v675, %v1343
        %v1345 = vpop.f32.mrf.mxu0
        %v1346 = vadd.f32 %v675, %v1345
        %1347 = vmatmul.bf16.gmra.mxu0 %v617
        %v1348 = vpop.f32.mrf.mxu0
        %v1349 = vadd.f32 %v675, %v1348
        %v1350 = vpop.f32.mrf.mxu0
        %v1351 = vadd.f32 %v675, %v1350
        %1352 = vmatmul.bf16.gmra.mxu0 %v618
        %v1353 = vpop.f32.mrf.mxu0
        %v1354 = vadd.f32 %v675, %v1353
        %v1355 = vpop.f32.mrf.mxu0
        %v1356 = vadd.f32 %v675, %v1355
        %1357 = vmatmul.bf16.gmra.mxu0 %v619
        %v1358 = vpop.f32.mrf.mxu0
        %v1359 = vadd.f32 %v675, %v1358
        %v1360 = vpop.f32.mrf.mxu0
        %v1361 = vadd.f32 %v675, %v1360
        %1362 = vmatmul.bf16.gmra.mxu0 %v620
        %v1363 = vpop.f32.mrf.mxu0
        %v1364 = vadd.f32 %v675, %v1363
        %v1365 = vpop.f32.mrf.mxu0
        %v1366 = vadd.f32 %v675, %v1365
        %1367 = vdwg.mxu0
        %1368 = vmatpush.bf16.msra.mxu0 %v874
        %1369 = vmatpush.bf16.msra.mxu0 %v868
        %1370 = vmatpush.bf16.msra.mxu0 %v862
        %1371 = vmatpush.bf16.msra.mxu0 %v856
        %1372 = vmatpush.bf16.msra.mxu0 %v850
        %1373 = vmatpush.bf16.msra.mxu0 %v844
        %1374 = vmatpush.bf16.msra.mxu0 %v838
        %1375 = vmatpush.bf16.msra.mxu0 %v832
        %1376 = vmatmul.bf16.gmra.mxu0 %v605
        %v1377 = vpop.f32.mrf.mxu0
        %v1378 = vadd.f32 %v676, %v1377
        %v1379 = vpop.f32.mrf.mxu0
        %v1380 = vadd.f32 %v676, %v1379
        %1381 = vmatmul.bf16.gmra.mxu0 %v606
        %v1382 = vpop.f32.mrf.mxu0
        %v1383 = vadd.f32 %v676, %v1382
        %v1384 = vpop.f32.mrf.mxu0
        %v1385 = vadd.f32 %v676, %v1384
        %1386 = vmatmul.bf16.gmra.mxu0 %v607
        %v1387 = vpop.f32.mrf.mxu0
        %v1388 = vadd.f32 %v676, %v1387
        %v1389 = vpop.f32.mrf.mxu0
        %v1390 = vadd.f32 %v676, %v1389
        %1391 = vmatmul.bf16.gmra.mxu0 %v608
        %v1392 = vpop.f32.mrf.mxu0
        %v1393 = vadd.f32 %v676, %v1392
        %v1394 = vpop.f32.mrf.mxu0
        %v1395 = vadd.f32 %v676, %v1394
        %1396 = vmatmul.bf16.gmra.mxu0 %v609
        %v1397 = vpop.f32.mrf.mxu0
        %v1398 = vadd.f32 %v676, %v1397
        %v1399 = vpop.f32.mrf.mxu0
        %v1400 = vadd.f32 %v676, %v1399
        %1401 = vmatmul.bf16.gmra.mxu0 %v610
        %v1402 = vpop.f32.mrf.mxu0
        %v1403 = vadd.f32 %v676, %v1402
        %v1404 = vpop.f32.mrf.mxu0
        %v1405 = vadd.f32 %v676, %v1404
        %1406 = vmatmul.bf16.gmra.mxu0 %v611
        %v1407 = vpop.f32.mrf.mxu0
        %v1408 = vadd.f32 %v676, %v1407
        %v1409 = vpop.f32.mrf.mxu0
        %v1410 = vadd.f32 %v676, %v1409
        %1411 = vmatmul.bf16.gmra.mxu0 %v612
        %v1412 = vpop.f32.mrf.mxu0
        %v1413 = vadd.f32 %v676, %v1412
        %v1414 = vpop.f32.mrf.mxu0
        %v1415 = vadd.f32 %v676, %v1414
        %1416 = vmatmul.bf16.gmra.mxu0 %v613
        %v1417 = vpop.f32.mrf.mxu0
        %v1418 = vadd.f32 %v676, %v1417
        %v1419 = vpop.f32.mrf.mxu0
        %v1420 = vadd.f32 %v676, %v1419
        %1421 = vmatmul.bf16.gmra.mxu0 %v614
        %v1422 = vpop.f32.mrf.mxu0
        %v1423 = vadd.f32 %v676, %v1422
        %v1424 = vpop.f32.mrf.mxu0
        %v1425 = vadd.f32 %v676, %v1424
        %1426 = vmatmul.bf16.gmra.mxu0 %v615
        %v1427 = vpop.f32.mrf.mxu0
        %v1428 = vadd.f32 %v676, %v1427
        %v1429 = vpop.f32.mrf.mxu0
        %v1430 = vadd.f32 %v676, %v1429
        %1431 = vmatmul.bf16.gmra.mxu0 %v616
        %v1432 = vpop.f32.mrf.mxu0
        %v1433 = vadd.f32 %v676, %v1432
        %v1434 = vpop.f32.mrf.mxu0
        %v1435 = vadd.f32 %v676, %v1434
        %1436 = vmatmul.bf16.gmra.mxu0 %v617
        %v1437 = vpop.f32.mrf.mxu0
        %v1438 = vadd.f32 %v676, %v1437
        %v1439 = vpop.f32.mrf.mxu0
        %v1440 = vadd.f32 %v676, %v1439
        %1441 = vmatmul.bf16.gmra.mxu0 %v618
        %v1442 = vpop.f32.mrf.mxu0
        %v1443 = vadd.f32 %v676, %v1442
        %v1444 = vpop.f32.mrf.mxu0
        %v1445 = vadd.f32 %v676, %v1444
        %1446 = vmatmul.bf16.gmra.mxu0 %v619
        %v1447 = vpop.f32.mrf.mxu0
        %v1448 = vadd.f32 %v676, %v1447
        %v1449 = vpop.f32.mrf.mxu0
        %v1450 = vadd.f32 %v676, %v1449
        %1451 = vmatmul.bf16.gmra.mxu0 %v620
        %v1452 = vpop.f32.mrf.mxu0
        %v1453 = vadd.f32 %v676, %v1452
        %v1454 = vpop.f32.mrf.mxu0
        %v1455 = vadd.f32 %v676, %v1454
        %1456 = vdwg.mxu0
        %v1457 = vmul.f32 %v933, 0.17677669
        %v1458 = vmul.f32 %v935, 0.17677669
        %v1459 = vmul.f32 %v938, 0.17677669
        %v1460 = vmul.f32 %v940, 0.17677669
        %v1461 = vmul.f32 %v943, 0.17677669
        %v1462 = vmul.f32 %v945, 0.17677669
        %v1463 = vmul.f32 %v948, 0.17677669
        %v1464 = vmul.f32 %v950, 0.17677669
        %v1465 = vmul.f32 %v953, 0.17677669
        %v1466 = vmul.f32 %v955, 0.17677669
        %v1467 = vmul.f32 %v958, 0.17677669
        %v1468 = vmul.f32 %v960, 0.17677669
        %v1469 = vmul.f32 %v963, 0.17677669
        %v1470 = vmul.f32 %v965, 0.17677669
        %v1471 = vmul.f32 %v968, 0.17677669
        %v1472 = vmul.f32 %v970, 0.17677669
        %v1473 = vmul.f32 %v973, 0.17677669
        %v1474 = vmul.f32 %v975, 0.17677669
        %v1475 = vmul.f32 %v978, 0.17677669
        %v1476 = vmul.f32 %v980, 0.17677669
        %v1477 = vmul.f32 %v983, 0.17677669
        %v1478 = vmul.f32 %v985, 0.17677669
        %v1479 = vmul.f32 %v988, 0.17677669
        %v1480 = vmul.f32 %v990, 0.17677669
        %v1481 = vmul.f32 %v993, 0.17677669
        %v1482 = vmul.f32 %v995, 0.17677669
        %v1483 = vmul.f32 %v998, 0.17677669
        %v1484 = vmul.f32 %v1000, 0.17677669
        %v1485 = vmul.f32 %v1003, 0.17677669
        %v1486 = vmul.f32 %v1005, 0.17677669
        %v1487 = vmul.f32 %v1008, 0.17677669
        %v1488 = vmul.f32 %v1010, 0.17677669
        %v1489 = vpack.c.bf16 %v1457, %v1457
        %v1490 = vpack.c.bf16 %v1458, %v1458
        %v1491 = vpack.c.bf16 %v1459, %v1459
        %v1492 = vpack.c.bf16 %v1460, %v1460
        %v1493 = vpack.c.bf16 %v1461, %v1461
        %v1494 = vpack.c.bf16 %v1462, %v1462
        %v1495 = vpack.c.bf16 %v1463, %v1463
        %v1496 = vpack.c.bf16 %v1464, %v1464
        %v1497 = vpack.c.bf16 %v1465, %v1465
        %v1498 = vpack.c.bf16 %v1466, %v1466
        %v1499 = vpack.c.bf16 %v1467, %v1467
        %v1500 = vpack.c.bf16 %v1468, %v1468
        %v1501 = vpack.c.bf16 %v1469, %v1469
        %v1502 = vpack.c.bf16 %v1470, %v1470
        %v1503 = vpack.c.bf16 %v1471, %v1471
        %v1504 = vpack.c.bf16 %v1472, %v1472
        %v1505 = vpack.c.bf16 %v1473, %v1473
        %v1506 = vpack.c.bf16 %v1474, %v1474
        %v1507 = vpack.c.bf16 %v1475, %v1475
        %v1508 = vpack.c.bf16 %v1476, %v1476
        %v1509 = vpack.c.bf16 %v1477, %v1477
        %v1510 = vpack.c.bf16 %v1478, %v1478
        %v1511 = vpack.c.bf16 %v1479, %v1479
        %v1512 = vpack.c.bf16 %v1480, %v1480
        %v1513 = vpack.c.bf16 %v1481, %v1481
        %v1514 = vpack.c.bf16 %v1482, %v1482
        %v1515 = vpack.c.bf16 %v1483, %v1483
        %v1516 = vpack.c.bf16 %v1484, %v1484
        %v1517 = vpack.c.bf16 %v1485, %v1485
        %v1518 = vpack.c.bf16 %v1486, %v1486
        %v1519 = vpack.c.bf16 %v1487, %v1487
        %v1520 = vpack.c.bf16 %v1488, %v1488
        %v1521 = vpack.c.bf16 %v1111, %v1111
        %v1522 = vpack.c.bf16 %v1113, %v1113
        %v1523 = vpack.c.bf16 %v1116, %v1116
        %v1524 = vpack.c.bf16 %v1118, %v1118
        %v1525 = vpack.c.bf16 %v1121, %v1121
        %v1526 = vpack.c.bf16 %v1123, %v1123
        %v1527 = vpack.c.bf16 %v1126, %v1126
        %v1528 = vpack.c.bf16 %v1128, %v1128
        %v1529 = vpack.c.bf16 %v1131, %v1131
        %v1530 = vpack.c.bf16 %v1133, %v1133
        %v1531 = vpack.c.bf16 %v1136, %v1136
        %v1532 = vpack.c.bf16 %v1138, %v1138
        %v1533 = vpack.c.bf16 %v1141, %v1141
        %v1534 = vpack.c.bf16 %v1143, %v1143
        %v1535 = vpack.c.bf16 %v1146, %v1146
        %v1536 = vpack.c.bf16 %v1148, %v1148
        %v1537 = vpack.c.bf16 %v1151, %v1151
        %v1538 = vpack.c.bf16 %v1153, %v1153
        %v1539 = vpack.c.bf16 %v1156, %v1156
        %v1540 = vpack.c.bf16 %v1158, %v1158
        %v1541 = vpack.c.bf16 %v1161, %v1161
        %v1542 = vpack.c.bf16 %v1163, %v1163
        %v1543 = vpack.c.bf16 %v1166, %v1166
        %v1544 = vpack.c.bf16 %v1168, %v1168
        %v1545 = vpack.c.bf16 %v1171, %v1171
        %v1546 = vpack.c.bf16 %v1173, %v1173
        %v1547 = vpack.c.bf16 %v1176, %v1176
        %v1548 = vpack.c.bf16 %v1178, %v1178
        %v1549 = vpack.c.bf16 %v1181, %v1181
        %v1550 = vpack.c.bf16 %v1183, %v1183
        %v1551 = vpack.c.bf16 %v1186, %v1186
        %v1552 = vpack.c.bf16 %v1188, %v1188
        %v1553 = vpack.c.bf16 %v1289, %v1289
        %v1554 = vpack.c.bf16 %v1291, %v1291
        %v1555 = vpack.c.bf16 %v1294, %v1294
        %v1556 = vpack.c.bf16 %v1296, %v1296
        %v1557 = vpack.c.bf16 %v1299, %v1299
        %v1558 = vpack.c.bf16 %v1301, %v1301
        %v1559 = vpack.c.bf16 %v1304, %v1304
        %v1560 = vpack.c.bf16 %v1306, %v1306
        %v1561 = vpack.c.bf16 %v1309, %v1309
        %v1562 = vpack.c.bf16 %v1311, %v1311
        %v1563 = vpack.c.bf16 %v1314, %v1314
        %v1564 = vpack.c.bf16 %v1316, %v1316
        %v1565 = vpack.c.bf16 %v1319, %v1319
        %v1566 = vpack.c.bf16 %v1321, %v1321
        %v1567 = vpack.c.bf16 %v1324, %v1324
        %v1568 = vpack.c.bf16 %v1326, %v1326
        %v1569 = vpack.c.bf16 %v1329, %v1329
        %v1570 = vpack.c.bf16 %v1331, %v1331
        %v1571 = vpack.c.bf16 %v1334, %v1334
        %v1572 = vpack.c.bf16 %v1336, %v1336
        %v1573 = vpack.c.bf16 %v1339, %v1339
        %v1574 = vpack.c.bf16 %v1341, %v1341
        %v1575 = vpack.c.bf16 %v1344, %v1344
        %v1576 = vpack.c.bf16 %v1346, %v1346
        %v1577 = vpack.c.bf16 %v1349, %v1349
        %v1578 = vpack.c.bf16 %v1351, %v1351
        %v1579 = vpack.c.bf16 %v1354, %v1354
        %v1580 = vpack.c.bf16 %v1356, %v1356
        %v1581 = vpack.c.bf16 %v1359, %v1359
        %v1582 = vpack.c.bf16 %v1361, %v1361
        %v1583 = vpack.c.bf16 %v1364, %v1364
        %v1584 = vpack.c.bf16 %v1366, %v1366
        %v1593 = vunpack.c.l.b16 %v1489
        %v1594 = vunpack.c.l.b16 %v1490
        %v1595 = vunpack.c.l.b16 %v1491
        %v1596 = vunpack.c.l.b16 %v1492
        %v1597 = vunpack.c.l.b16 %v1493
        %v1598 = vunpack.c.l.b16 %v1494
        %v1599 = vunpack.c.l.b16 %v1495
        %v1600 = vunpack.c.l.b16 %v1496
        %v1601 = vpack.c.b16 %v1594, %v1593
        %v1602 = vpack.c.b16 %v1596, %v1595
        %v1603 = vpack.c.b16 %v1598, %v1597
        %v1604 = vpack.c.b16 %v1600, %v1599
        %v1617 = vunpack.c.l.b16 %v1521
        %v1618 = vunpack.c.l.b16 %v1522
        %v1619 = vunpack.c.l.b16 %v1523
        %v1620 = vunpack.c.l.b16 %v1524
        %v1621 = vunpack.c.l.b16 %v1525
        %v1622 = vunpack.c.l.b16 %v1526
        %v1623 = vunpack.c.l.b16 %v1527
        %v1624 = vunpack.c.l.b16 %v1528
        %v1625 = vpack.c.b16 %v1618, %v1617
        %v1626 = vpack.c.b16 %v1620, %v1619
        %v1627 = vpack.c.b16 %v1622, %v1621
        %v1628 = vpack.c.b16 %v1624, %v1623
        %1633 = vmatpush.bf16.xpose.msra.mxu0 0
        %1634 = vmatpush.bf16.xpose.msra.mxu0 0
        %1635 = vmatpush.bf16.xpose.msra.mxu0 0
        %1636 = vmatpush.bf16.xpose.msra.mxu0 0
        %1637 = vmatpush.bf16.xpose.msra.mxu0 %v1628
        %1638 = vmatpush.bf16.xpose.msra.mxu0 %v1627
        %1639 = vmatpush.bf16.xpose.msra.mxu0 %v1626
        %1640 = vmatpush.bf16.xpose.msra.mxu0 %v1625
        %1641 = vmatmul.bf16.gmra.mxu0 %v1601
        %v1642 = vpop.f32.mrf.mxu0
        %v1643 = vadd.f32 0.0, %v1642
        %v1644 = vpop.f32.mrf.mxu0
        %v1645 = vadd.f32 0.0, %v1644
        %1646 = vmatmul.bf16.gmra.mxu0 %v1602
        %v1647 = vpop.f32.mrf.mxu0
        %v1648 = vadd.f32 0.0, %v1647
        %v1649 = vpop.f32.mrf.mxu0
        %v1650 = vadd.f32 0.0, %v1649
        %1651 = vmatmul.bf16.gmra.mxu0 %v1603
        %v1652 = vpop.f32.mrf.mxu0
        %v1653 = vadd.f32 0.0, %v1652
        %v1654 = vpop.f32.mrf.mxu0
        %v1655 = vadd.f32 0.0, %v1654
        %1656 = vmatmul.bf16.gmra.mxu0 %v1604
        %v1657 = vpop.f32.mrf.mxu0
        %v1658 = vadd.f32 0.0, %v1657
        %v1659 = vpop.f32.mrf.mxu0
        %v1660 = vadd.f32 0.0, %v1659
        %1661 = vdwg.mxu0
        %v1670 = vunpack.c.l.b16 %v1497
        %v1671 = vunpack.c.l.b16 %v1498
        %v1672 = vunpack.c.l.b16 %v1499
        %v1673 = vunpack.c.l.b16 %v1500
        %v1674 = vunpack.c.l.b16 %v1501
        %v1675 = vunpack.c.l.b16 %v1502
        %v1676 = vunpack.c.l.b16 %v1503
        %v1677 = vunpack.c.l.b16 %v1504
        %v1678 = vpack.c.b16 %v1671, %v1670
        %v1679 = vpack.c.b16 %v1673, %v1672
        %v1680 = vpack.c.b16 %v1675, %v1674
        %v1681 = vpack.c.b16 %v1677, %v1676
        %v1694 = vunpack.c.l.b16 %v1529
        %v1695 = vunpack.c.l.b16 %v1530
        %v1696 = vunpack.c.l.b16 %v1531
        %v1697 = vunpack.c.l.b16 %v1532
        %v1698 = vunpack.c.l.b16 %v1533
        %v1699 = vunpack.c.l.b16 %v1534
        %v1700 = vunpack.c.l.b16 %v1535
        %v1701 = vunpack.c.l.b16 %v1536
        %v1702 = vpack.c.b16 %v1695, %v1694
        %v1703 = vpack.c.b16 %v1697, %v1696
        %v1704 = vpack.c.b16 %v1699, %v1698
        %v1705 = vpack.c.b16 %v1701, %v1700
        %1710 = vmatpush.bf16.xpose.msra.mxu0 0
        %1711 = vmatpush.bf16.xpose.msra.mxu0 0
        %1712 = vmatpush.bf16.xpose.msra.mxu0 0
        %1713 = vmatpush.bf16.xpose.msra.mxu0 0
        %1714 = vmatpush.bf16.xpose.msra.mxu0 %v1705
        %1715 = vmatpush.bf16.xpose.msra.mxu0 %v1704
        %1716 = vmatpush.bf16.xpose.msra.mxu0 %v1703
        %1717 = vmatpush.bf16.xpose.msra.mxu0 %v1702
        %1718 = vmatmul.bf16.gmra.mxu0 %v1678
        %v1719 = vpop.f32.mrf.mxu0
        %v1720 = vadd.f32 0.0, %v1719
        %v1721 = vpop.f32.mrf.mxu0
        %v1722 = vadd.f32 0.0, %v1721
        %1723 = vmatmul.bf16.gmra.mxu0 %v1679
        %v1724 = vpop.f32.mrf.mxu0
        %v1725 = vadd.f32 0.0, %v1724
        %v1726 = vpop.f32.mrf.mxu0
        %v1727 = vadd.f32 0.0, %v1726
        %1728 = vmatmul.bf16.gmra.mxu0 %v1680
        %v1729 = vpop.f32.mrf.mxu0
        %v1730 = vadd.f32 0.0, %v1729
        %v1731 = vpop.f32.mrf.mxu0
        %v1732 = vadd.f32 0.0, %v1731
        %1733 = vmatmul.bf16.gmra.mxu0 %v1681
        %v1734 = vpop.f32.mrf.mxu0
        %v1735 = vadd.f32 0.0, %v1734
        %v1736 = vpop.f32.mrf.mxu0
        %v1737 = vadd.f32 0.0, %v1736
        %1738 = vdwg.mxu0
        %v1747 = vunpack.c.l.b16 %v1505
        %v1748 = vunpack.c.l.b16 %v1506
        %v1749 = vunpack.c.l.b16 %v1507
        %v1750 = vunpack.c.l.b16 %v1508
        %v1751 = vunpack.c.l.b16 %v1509
        %v1752 = vunpack.c.l.b16 %v1510
        %v1753 = vunpack.c.l.b16 %v1511
        %v1754 = vunpack.c.l.b16 %v1512
        %v1755 = vpack.c.b16 %v1748, %v1747
        %v1756 = vpack.c.b16 %v1750, %v1749
        %v1757 = vpack.c.b16 %v1752, %v1751
        %v1758 = vpack.c.b16 %v1754, %v1753
        %v1771 = vunpack.c.l.b16 %v1537
        %v1772 = vunpack.c.l.b16 %v1538
        %v1773 = vunpack.c.l.b16 %v1539
        %v1774 = vunpack.c.l.b16 %v1540
        %v1775 = vunpack.c.l.b16 %v1541
        %v1776 = vunpack.c.l.b16 %v1542
        %v1777 = vunpack.c.l.b16 %v1543
        %v1778 = vunpack.c.l.b16 %v1544
        %v1779 = vpack.c.b16 %v1772, %v1771
        %v1780 = vpack.c.b16 %v1774, %v1773
        %v1781 = vpack.c.b16 %v1776, %v1775
        %v1782 = vpack.c.b16 %v1778, %v1777
        %1787 = vmatpush.bf16.xpose.msra.mxu0 0
        %1788 = vmatpush.bf16.xpose.msra.mxu0 0
        %1789 = vmatpush.bf16.xpose.msra.mxu0 0
        %1790 = vmatpush.bf16.xpose.msra.mxu0 0
        %1791 = vmatpush.bf16.xpose.msra.mxu0 %v1782
        %1792 = vmatpush.bf16.xpose.msra.mxu0 %v1781
        %1793 = vmatpush.bf16.xpose.msra.mxu0 %v1780
        %1794 = vmatpush.bf16.xpose.msra.mxu0 %v1779
        %1795 = vmatmul.bf16.gmra.mxu0 %v1755
        %v1796 = vpop.f32.mrf.mxu0
        %v1797 = vadd.f32 0.0, %v1796
        %v1798 = vpop.f32.mrf.mxu0
        %v1799 = vadd.f32 0.0, %v1798
        %1800 = vmatmul.bf16.gmra.mxu0 %v1756
        %v1801 = vpop.f32.mrf.mxu0
        %v1802 = vadd.f32 0.0, %v1801
        %v1803 = vpop.f32.mrf.mxu0
        %v1804 = vadd.f32 0.0, %v1803
        %1805 = vmatmul.bf16.gmra.mxu0 %v1757
        %v1806 = vpop.f32.mrf.mxu0
        %v1807 = vadd.f32 0.0, %v1806
        %v1808 = vpop.f32.mrf.mxu0
        %v1809 = vadd.f32 0.0, %v1808
        %1810 = vmatmul.bf16.gmra.mxu0 %v1758
        %v1811 = vpop.f32.mrf.mxu0
        %v1812 = vadd.f32 0.0, %v1811
        %v1813 = vpop.f32.mrf.mxu0
        %v1814 = vadd.f32 0.0, %v1813
        %1815 = vdwg.mxu0
        %v1824 = vunpack.c.l.b16 %v1513
        %v1825 = vunpack.c.l.b16 %v1514
        %v1826 = vunpack.c.l.b16 %v1515
        %v1827 = vunpack.c.l.b16 %v1516
        %v1828 = vunpack.c.l.b16 %v1517
        %v1829 = vunpack.c.l.b16 %v1518
        %v1830 = vunpack.c.l.b16 %v1519
        %v1831 = vunpack.c.l.b16 %v1520
        %v1832 = vpack.c.b16 %v1825, %v1824
        %v1833 = vpack.c.b16 %v1827, %v1826
        %v1834 = vpack.c.b16 %v1829, %v1828
        %v1835 = vpack.c.b16 %v1831, %v1830
        %v1848 = vunpack.c.l.b16 %v1545
        %v1849 = vunpack.c.l.b16 %v1546
        %v1850 = vunpack.c.l.b16 %v1547
        %v1851 = vunpack.c.l.b16 %v1548
        %v1852 = vunpack.c.l.b16 %v1549
        %v1853 = vunpack.c.l.b16 %v1550
        %v1854 = vunpack.c.l.b16 %v1551
        %v1855 = vunpack.c.l.b16 %v1552
        %v1856 = vpack.c.b16 %v1849, %v1848
        %v1857 = vpack.c.b16 %v1851, %v1850
        %v1858 = vpack.c.b16 %v1853, %v1852
        %v1859 = vpack.c.b16 %v1855, %v1854
        %1864 = vmatpush.bf16.xpose.msra.mxu0 0
        %1865 = vmatpush.bf16.xpose.msra.mxu0 0
        %1866 = vmatpush.bf16.xpose.msra.mxu0 0
        %1867 = vmatpush.bf16.xpose.msra.mxu0 0
        %1868 = vmatpush.bf16.xpose.msra.mxu0 %v1859
        %1869 = vmatpush.bf16.xpose.msra.mxu0 %v1858
        %1870 = vmatpush.bf16.xpose.msra.mxu0 %v1857
        %1871 = vmatpush.bf16.xpose.msra.mxu0 %v1856
        %1872 = vmatmul.bf16.gmra.mxu0 %v1832
        %v1873 = vpop.f32.mrf.mxu0
        %v1874 = vadd.f32 0.0, %v1873
        %v1875 = vpop.f32.mrf.mxu0
        %v1876 = vadd.f32 0.0, %v1875
        %1877 = vmatmul.bf16.gmra.mxu0 %v1833
        %v1878 = vpop.f32.mrf.mxu0
        %v1879 = vadd.f32 0.0, %v1878
        %v1880 = vpop.f32.mrf.mxu0
        %v1881 = vadd.f32 0.0, %v1880
        %1882 = vmatmul.bf16.gmra.mxu0 %v1834
        %v1883 = vpop.f32.mrf.mxu0
        %v1884 = vadd.f32 0.0, %v1883
        %v1885 = vpop.f32.mrf.mxu0
        %v1886 = vadd.f32 0.0, %v1885
        %1887 = vmatmul.bf16.gmra.mxu0 %v1835
        %v1888 = vpop.f32.mrf.mxu0
        %v1889 = vadd.f32 0.0, %v1888
        %v1890 = vpop.f32.mrf.mxu0
        %v1891 = vadd.f32 0.0, %v1890
        %1892 = vdwg.mxu0
        %vm1893 = vcmask 523264
        %v1894 = vsel %vm1893, %v1643, -inf
        %1895 = vmax.xlane.f32.xlu0 %v1894
        %v1896 = vpop.xlane.xlu0 %1895
        %v1897 = vsel %vm1893, %v1645, -inf
        %1898 = vmax.xlane.f32.xlu0 %v1897
        %v1899 = vpop.xlane.xlu0 %1898
        %v1900 = vsel %vm1893, %v1648, -inf
        %1901 = vmax.xlane.f32.xlu0 %v1900
        %v1902 = vpop.xlane.xlu0 %1901
        %v1903 = vsel %vm1893, %v1650, -inf
        %1904 = vmax.xlane.f32.xlu0 %v1903
        %v1905 = vpop.xlane.xlu0 %1904
        %v1906 = vsel %vm1893, %v1653, -inf
        %1907 = vmax.xlane.f32.xlu0 %v1906
        %v1908 = vpop.xlane.xlu0 %1907
        %v1909 = vsel %vm1893, %v1655, -inf
        %1910 = vmax.xlane.f32.xlu0 %v1909
        %v1911 = vpop.xlane.xlu0 %1910
        %v1912 = vsel %vm1893, %v1658, -inf
        %1913 = vmax.xlane.f32.xlu0 %v1912
        %v1914 = vpop.xlane.xlu0 %1913
        %v1915 = vsel %vm1893, %v1660, -inf
        %1916 = vmax.xlane.f32.xlu0 %v1915
        %v1917 = vpop.xlane.xlu0 %1916
        %v1918 = vsel %vm1893, %v1720, -inf
        %1919 = vmax.xlane.f32.xlu0 %v1918
        %v1920 = vpop.xlane.xlu0 %1919
        %v1921 = vsel %vm1893, %v1722, -inf
        %1922 = vmax.xlane.f32.xlu0 %v1921
        %v1923 = vpop.xlane.xlu0 %1922
        %v1924 = vsel %vm1893, %v1725, -inf
        %1925 = vmax.xlane.f32.xlu0 %v1924
        %v1926 = vpop.xlane.xlu0 %1925
        %v1927 = vsel %vm1893, %v1727, -inf
        %1928 = vmax.xlane.f32.xlu0 %v1927
        %v1929 = vpop.xlane.xlu0 %1928
        %v1930 = vsel %vm1893, %v1730, -inf
        %1931 = vmax.xlane.f32.xlu0 %v1930
        %v1932 = vpop.xlane.xlu0 %1931
        %v1933 = vsel %vm1893, %v1732, -inf
        %1934 = vmax.xlane.f32.xlu0 %v1933
        %v1935 = vpop.xlane.xlu0 %1934
        %v1936 = vsel %vm1893, %v1735, -inf
        %1937 = vmax.xlane.f32.xlu0 %v1936
        %v1938 = vpop.xlane.xlu0 %1937
        %v1939 = vsel %vm1893, %v1737, -inf
        %1940 = vmax.xlane.f32.xlu0 %v1939
        %v1941 = vpop.xlane.xlu0 %1940
        %v1942 = vsel %vm1893, %v1797, -inf
        %1943 = vmax.xlane.f32.xlu0 %v1942
        %v1944 = vpop.xlane.xlu0 %1943
        %v1945 = vsel %vm1893, %v1799, -inf
        %1946 = vmax.xlane.f32.xlu0 %v1945
        %v1947 = vpop.xlane.xlu0 %1946
        %v1948 = vsel %vm1893, %v1802, -inf
        %1949 = vmax.xlane.f32.xlu0 %v1948
        %v1950 = vpop.xlane.xlu0 %1949
        %v1951 = vsel %vm1893, %v1804, -inf
        %1952 = vmax.xlane.f32.xlu0 %v1951
        %v1953 = vpop.xlane.xlu0 %1952
        %v1954 = vsel %vm1893, %v1807, -inf
        %1955 = vmax.xlane.f32.xlu0 %v1954
        %v1956 = vpop.xlane.xlu0 %1955
        %v1957 = vsel %vm1893, %v1809, -inf
        %1958 = vmax.xlane.f32.xlu0 %v1957
        %v1959 = vpop.xlane.xlu0 %1958
        %v1960 = vsel %vm1893, %v1812, -inf
        %1961 = vmax.xlane.f32.xlu0 %v1960
        %v1962 = vpop.xlane.xlu0 %1961
        %v1963 = vsel %vm1893, %v1814, -inf
        %1964 = vmax.xlane.f32.xlu0 %v1963
        %v1965 = vpop.xlane.xlu0 %1964
        %v1966 = vsel %vm1893, %v1874, -inf
        %1967 = vmax.xlane.f32.xlu0 %v1966
        %v1968 = vpop.xlane.xlu0 %1967
        %v1969 = vsel %vm1893, %v1876, -inf
        %1970 = vmax.xlane.f32.xlu0 %v1969
        %v1971 = vpop.xlane.xlu0 %1970
        %v1972 = vsel %vm1893, %v1879, -inf
        %1973 = vmax.xlane.f32.xlu0 %v1972
        %v1974 = vpop.xlane.xlu0 %1973
        %v1975 = vsel %vm1893, %v1881, -inf
        %1976 = vmax.xlane.f32.xlu0 %v1975
        %v1977 = vpop.xlane.xlu0 %1976
        %v1978 = vsel %vm1893, %v1884, -inf
        %1979 = vmax.xlane.f32.xlu0 %v1978
        %v1980 = vpop.xlane.xlu0 %1979
        %v1981 = vsel %vm1893, %v1886, -inf
        %1982 = vmax.xlane.f32.xlu0 %v1981
        %v1983 = vpop.xlane.xlu0 %1982
        %v1984 = vsel %vm1893, %v1889, -inf
        %1985 = vmax.xlane.f32.xlu0 %v1984
        %v1986 = vpop.xlane.xlu0 %1985
        %v1987 = vsel %vm1893, %v1891, -inf
        %1988 = vmax.xlane.f32.xlu0 %v1987
        %v1989 = vpop.xlane.xlu0 %1988
        %v1990 = vsub.f32 %v1643, %v1896
        %v1991 = vsub.f32 %v1645, %v1899
        %v1992 = vsub.f32 %v1648, %v1902
        %v1993 = vsub.f32 %v1650, %v1905
        %v1994 = vsub.f32 %v1653, %v1908
        %v1995 = vsub.f32 %v1655, %v1911
        %v1996 = vsub.f32 %v1658, %v1914
        %v1997 = vsub.f32 %v1660, %v1917
        %v1998 = vsub.f32 %v1720, %v1920
        %v1999 = vsub.f32 %v1722, %v1923
        %v2000 = vsub.f32 %v1725, %v1926
        %v2001 = vsub.f32 %v1727, %v1929
        %v2002 = vsub.f32 %v1730, %v1932
        %v2003 = vsub.f32 %v1732, %v1935
        %v2004 = vsub.f32 %v1735, %v1938
        %v2005 = vsub.f32 %v1737, %v1941
        %v2006 = vsub.f32 %v1797, %v1944
        %v2007 = vsub.f32 %v1799, %v1947
        %v2008 = vsub.f32 %v1802, %v1950
        %v2009 = vsub.f32 %v1804, %v1953
        %v2010 = vsub.f32 %v1807, %v1956
        %v2011 = vsub.f32 %v1809, %v1959
        %v2012 = vsub.f32 %v1812, %v1962
        %v2013 = vsub.f32 %v1814, %v1965
        %v2014 = vsub.f32 %v1874, %v1968
        %v2015 = vsub.f32 %v1876, %v1971
        %v2016 = vsub.f32 %v1879, %v1974
        %v2017 = vsub.f32 %v1881, %v1977
        %v2018 = vsub.f32 %v1884, %v1980
        %v2019 = vsub.f32 %v1886, %v1983
        %v2020 = vsub.f32 %v1889, %v1986
        %v2021 = vsub.f32 %v1891, %v1989
        %v2022 = vmul.f32 %v1990, 1.442695
        %v2023 = vpow.pop %v2022
        %v2024 = vmul.f32 %v1991, 1.442695
        %v2025 = vpow.pop %v2024
        %v2026 = vmul.f32 %v1992, 1.442695
        %v2027 = vpow.pop %v2026
        %v2028 = vmul.f32 %v1993, 1.442695
        %v2029 = vpow.pop %v2028
        %v2030 = vmul.f32 %v1994, 1.442695
        %v2031 = vpow.pop %v2030
        %v2032 = vmul.f32 %v1995, 1.442695
        %v2033 = vpow.pop %v2032
        %v2034 = vmul.f32 %v1996, 1.442695
        %v2035 = vpow.pop %v2034
        %v2036 = vmul.f32 %v1997, 1.442695
        %v2037 = vpow.pop %v2036
        %v2038 = vmul.f32 %v1998, 1.442695
        %v2039 = vpow.pop %v2038
        %v2040 = vmul.f32 %v1999, 1.442695
        %v2041 = vpow.pop %v2040
        %v2042 = vmul.f32 %v2000, 1.442695
        %v2043 = vpow.pop %v2042
        %v2044 = vmul.f32 %v2001, 1.442695
        %v2045 = vpow.pop %v2044
        %v2046 = vmul.f32 %v2002, 1.442695
        %v2047 = vpow.pop %v2046
        %v2048 = vmul.f32 %v2003, 1.442695
        %v2049 = vpow.pop %v2048
        %v2050 = vmul.f32 %v2004, 1.442695
        %v2051 = vpow.pop %v2050
        %v2052 = vmul.f32 %v2005, 1.442695
        %v2053 = vpow.pop %v2052
        %v2054 = vmul.f32 %v2006, 1.442695
        %v2055 = vpow.pop %v2054
        %v2056 = vmul.f32 %v2007, 1.442695
        %v2057 = vpow.pop %v2056
        %v2058 = vmul.f32 %v2008, 1.442695
        %v2059 = vpow.pop %v2058
        %v2060 = vmul.f32 %v2009, 1.442695
        %v2061 = vpow.pop %v2060
        %v2062 = vmul.f32 %v2010, 1.442695
        %v2063 = vpow.pop %v2062
        %v2064 = vmul.f32 %v2011, 1.442695
        %v2065 = vpow.pop %v2064
        %v2066 = vmul.f32 %v2012, 1.442695
        %v2067 = vpow.pop %v2066
        %v2068 = vmul.f32 %v2013, 1.442695
        %v2069 = vpow.pop %v2068
        %v2070 = vmul.f32 %v2014, 1.442695
        %v2071 = vpow.pop %v2070
        %v2072 = vmul.f32 %v2015, 1.442695
        %v2073 = vpow.pop %v2072
        %v2074 = vmul.f32 %v2016, 1.442695
        %v2075 = vpow.pop %v2074
        %v2076 = vmul.f32 %v2017, 1.442695
        %v2077 = vpow.pop %v2076
        %v2078 = vmul.f32 %v2018, 1.442695
        %v2079 = vpow.pop %v2078
        %v2080 = vmul.f32 %v2019, 1.442695
        %v2081 = vpow.pop %v2080
        %v2082 = vmul.f32 %v2020, 1.442695
        %v2083 = vpow.pop %v2082
        %v2084 = vmul.f32 %v2021, 1.442695
        %v2085 = vpow.pop %v2084
        %v2086 = vsel %vm1893, %v2023, 0.0
        %2087 = vadd.xlane.f32.xlu0 %v2086
        %v2088 = vpop.xlane.xlu0 %2087
        %v2089 = vsel %vm1893, %v2025, 0.0
        %2090 = vadd.xlane.f32.xlu0 %v2089
        %v2091 = vpop.xlane.xlu0 %2090
        %v2092 = vsel %vm1893, %v2027, 0.0
        %2093 = vadd.xlane.f32.xlu0 %v2092
        %v2094 = vpop.xlane.xlu0 %2093
        %v2095 = vsel %vm1893, %v2029, 0.0
        %2096 = vadd.xlane.f32.xlu0 %v2095
        %v2097 = vpop.xlane.xlu0 %2096
        %v2098 = vsel %vm1893, %v2031, 0.0
        %2099 = vadd.xlane.f32.xlu0 %v2098
        %v2100 = vpop.xlane.xlu0 %2099
        %v2101 = vsel %vm1893, %v2033, 0.0
        %2102 = vadd.xlane.f32.xlu0 %v2101
        %v2103 = vpop.xlane.xlu0 %2102
        %v2104 = vsel %vm1893, %v2035, 0.0
        %2105 = vadd.xlane.f32.xlu0 %v2104
        %v2106 = vpop.xlane.xlu0 %2105
        %v2107 = vsel %vm1893, %v2037, 0.0
        %2108 = vadd.xlane.f32.xlu0 %v2107
        %v2109 = vpop.xlane.xlu0 %2108
        %v2110 = vsel %vm1893, %v2039, 0.0
        %2111 = vadd.xlane.f32.xlu0 %v2110
        %v2112 = vpop.xlane.xlu0 %2111
        %v2113 = vsel %vm1893, %v2041, 0.0
        %2114 = vadd.xlane.f32.xlu0 %v2113
        %v2115 = vpop.xlane.xlu0 %2114
        %v2116 = vsel %vm1893, %v2043, 0.0
        %2117 = vadd.xlane.f32.xlu0 %v2116
        %v2118 = vpop.xlane.xlu0 %2117
        %v2119 = vsel %vm1893, %v2045, 0.0
        %2120 = vadd.xlane.f32.xlu0 %v2119
        %v2121 = vpop.xlane.xlu0 %2120
        %v2122 = vsel %vm1893, %v2047, 0.0
        %2123 = vadd.xlane.f32.xlu0 %v2122
        %v2124 = vpop.xlane.xlu0 %2123
        %v2125 = vsel %vm1893, %v2049, 0.0
        %2126 = vadd.xlane.f32.xlu0 %v2125
        %v2127 = vpop.xlane.xlu0 %2126
        %v2128 = vsel %vm1893, %v2051, 0.0
        %2129 = vadd.xlane.f32.xlu0 %v2128
        %v2130 = vpop.xlane.xlu0 %2129
        %v2131 = vsel %vm1893, %v2053, 0.0
        %2132 = vadd.xlane.f32.xlu0 %v2131
        %v2133 = vpop.xlane.xlu0 %2132
        %v2134 = vsel %vm1893, %v2055, 0.0
        %2135 = vadd.xlane.f32.xlu0 %v2134
        %v2136 = vpop.xlane.xlu0 %2135
        %v2137 = vsel %vm1893, %v2057, 0.0
        %2138 = vadd.xlane.f32.xlu0 %v2137
        %v2139 = vpop.xlane.xlu0 %2138
        %v2140 = vsel %vm1893, %v2059, 0.0
        %2141 = vadd.xlane.f32.xlu0 %v2140
        %v2142 = vpop.xlane.xlu0 %2141
        %v2143 = vsel %vm1893, %v2061, 0.0
        %2144 = vadd.xlane.f32.xlu0 %v2143
        %v2145 = vpop.xlane.xlu0 %2144
        %v2146 = vsel %vm1893, %v2063, 0.0
        %2147 = vadd.xlane.f32.xlu0 %v2146
        %v2148 = vpop.xlane.xlu0 %2147
        %v2149 = vsel %vm1893, %v2065, 0.0
        %2150 = vadd.xlane.f32.xlu0 %v2149
        %v2151 = vpop.xlane.xlu0 %2150
        %v2152 = vsel %vm1893, %v2067, 0.0
        %2153 = vadd.xlane.f32.xlu0 %v2152
        %v2154 = vpop.xlane.xlu0 %2153
        %v2155 = vsel %vm1893, %v2069, 0.0
        %2156 = vadd.xlane.f32.xlu0 %v2155
        %v2157 = vpop.xlane.xlu0 %2156
        %v2158 = vsel %vm1893, %v2071, 0.0
        %2159 = vadd.xlane.f32.xlu0 %v2158
        %v2160 = vpop.xlane.xlu0 %2159
        %v2161 = vsel %vm1893, %v2073, 0.0
        %2162 = vadd.xlane.f32.xlu0 %v2161
        %v2163 = vpop.xlane.xlu0 %2162
        %v2164 = vsel %vm1893, %v2075, 0.0
        %2165 = vadd.xlane.f32.xlu0 %v2164
        %v2166 = vpop.xlane.xlu0 %2165
        %v2167 = vsel %vm1893, %v2077, 0.0
        %2168 = vadd.xlane.f32.xlu0 %v2167
        %v2169 = vpop.xlane.xlu0 %2168
        %v2170 = vsel %vm1893, %v2079, 0.0
        %2171 = vadd.xlane.f32.xlu0 %v2170
        %v2172 = vpop.xlane.xlu0 %2171
        %v2173 = vsel %vm1893, %v2081, 0.0
        %2174 = vadd.xlane.f32.xlu0 %v2173
        %v2175 = vpop.xlane.xlu0 %2174
        %v2176 = vsel %vm1893, %v2083, 0.0
        %2177 = vadd.xlane.f32.xlu0 %v2176
        %v2178 = vpop.xlane.xlu0 %2177
        %v2179 = vsel %vm1893, %v2085, 0.0
        %2180 = vadd.xlane.f32.xlu0 %v2179
        %v2181 = vpop.xlane.xlu0 %2180
        %v2182 = vrcp.pop %v2088
        %v2183 = vrcp.pop %v2091
        %v2184 = vrcp.pop %v2094
        %v2185 = vrcp.pop %v2097
        %v2186 = vrcp.pop %v2100
        %v2187 = vrcp.pop %v2103
        %v2188 = vrcp.pop %v2106
        %v2189 = vrcp.pop %v2109
        %v2190 = vrcp.pop %v2112
        %v2191 = vrcp.pop %v2115
        %v2192 = vrcp.pop %v2118
        %v2193 = vrcp.pop %v2121
        %v2194 = vrcp.pop %v2124
        %v2195 = vrcp.pop %v2127
        %v2196 = vrcp.pop %v2130
        %v2197 = vrcp.pop %v2133
        %v2198 = vrcp.pop %v2136
        %v2199 = vrcp.pop %v2139
        %v2200 = vrcp.pop %v2142
        %v2201 = vrcp.pop %v2145
        %v2202 = vrcp.pop %v2148
        %v2203 = vrcp.pop %v2151
        %v2204 = vrcp.pop %v2154
        %v2205 = vrcp.pop %v2157
        %v2206 = vrcp.pop %v2160
        %v2207 = vrcp.pop %v2163
        %v2208 = vrcp.pop %v2166
        %v2209 = vrcp.pop %v2169
        %v2210 = vrcp.pop %v2172
        %v2211 = vrcp.pop %v2175
        %v2212 = vrcp.pop %v2178
        %v2213 = vrcp.pop %v2181
        %v2214 = vmul.f32 %v2023, %v2182
        %v2215 = vmul.f32 %v2025, %v2183
        %v2216 = vmul.f32 %v2027, %v2184
        %v2217 = vmul.f32 %v2029, %v2185
        %v2218 = vmul.f32 %v2031, %v2186
        %v2219 = vmul.f32 %v2033, %v2187
        %v2220 = vmul.f32 %v2035, %v2188
        %v2221 = vmul.f32 %v2037, %v2189
        %v2222 = vmul.f32 %v2039, %v2190
        %v2223 = vmul.f32 %v2041, %v2191
        %v2224 = vmul.f32 %v2043, %v2192
        %v2225 = vmul.f32 %v2045, %v2193
        %v2226 = vmul.f32 %v2047, %v2194
        %v2227 = vmul.f32 %v2049, %v2195
        %v2228 = vmul.f32 %v2051, %v2196
        %v2229 = vmul.f32 %v2053, %v2197
        %v2230 = vmul.f32 %v2055, %v2198
        %v2231 = vmul.f32 %v2057, %v2199
        %v2232 = vmul.f32 %v2059, %v2200
        %v2233 = vmul.f32 %v2061, %v2201
        %v2234 = vmul.f32 %v2063, %v2202
        %v2235 = vmul.f32 %v2065, %v2203
        %v2236 = vmul.f32 %v2067, %v2204
        %v2237 = vmul.f32 %v2069, %v2205
        %v2238 = vmul.f32 %v2071, %v2206
        %v2239 = vmul.f32 %v2073, %v2207
        %v2240 = vmul.f32 %v2075, %v2208
        %v2241 = vmul.f32 %v2077, %v2209
        %v2242 = vmul.f32 %v2079, %v2210
        %v2243 = vmul.f32 %v2081, %v2211
        %v2244 = vmul.f32 %v2083, %v2212
        %v2245 = vmul.f32 %v2085, %v2213
        %v2246 = vpack.c.bf16 %v2214, %v2214
        %v2247 = vpack.c.bf16 %v2215, %v2215
        %v2248 = vpack.c.bf16 %v2216, %v2216
        %v2249 = vpack.c.bf16 %v2217, %v2217
        %v2250 = vpack.c.bf16 %v2218, %v2218
        %v2251 = vpack.c.bf16 %v2219, %v2219
        %v2252 = vpack.c.bf16 %v2220, %v2220
        %v2253 = vpack.c.bf16 %v2221, %v2221
        %v2254 = vpack.c.bf16 %v2222, %v2222
        %v2255 = vpack.c.bf16 %v2223, %v2223
        %v2256 = vpack.c.bf16 %v2224, %v2224
        %v2257 = vpack.c.bf16 %v2225, %v2225
        %v2258 = vpack.c.bf16 %v2226, %v2226
        %v2259 = vpack.c.bf16 %v2227, %v2227
        %v2260 = vpack.c.bf16 %v2228, %v2228
        %v2261 = vpack.c.bf16 %v2229, %v2229
        %v2262 = vpack.c.bf16 %v2230, %v2230
        %v2263 = vpack.c.bf16 %v2231, %v2231
        %v2264 = vpack.c.bf16 %v2232, %v2232
        %v2265 = vpack.c.bf16 %v2233, %v2233
        %v2266 = vpack.c.bf16 %v2234, %v2234
        %v2267 = vpack.c.bf16 %v2235, %v2235
        %v2268 = vpack.c.bf16 %v2236, %v2236
        %v2269 = vpack.c.bf16 %v2237, %v2237
        %v2270 = vpack.c.bf16 %v2238, %v2238
        %v2271 = vpack.c.bf16 %v2239, %v2239
        %v2272 = vpack.c.bf16 %v2240, %v2240
        %v2273 = vpack.c.bf16 %v2241, %v2241
        %v2274 = vpack.c.bf16 %v2242, %v2242
        %v2275 = vpack.c.bf16 %v2243, %v2243
        %v2276 = vpack.c.bf16 %v2244, %v2244
        %v2277 = vpack.c.bf16 %v2245, %v2245
        %v2286 = vunpack.c.l.b16 %v2246
        %v2287 = vunpack.c.l.b16 %v2247
        %v2288 = vunpack.c.l.b16 %v2248
        %v2289 = vunpack.c.l.b16 %v2249
        %v2290 = vunpack.c.l.b16 %v2250
        %v2291 = vunpack.c.l.b16 %v2251
        %v2292 = vunpack.c.l.b16 %v2252
        %v2293 = vunpack.c.l.b16 %v2253
        %v2294 = vpack.c.b16 %v2287, %v2286
        %v2295 = vpack.c.b16 %v2289, %v2288
        %v2296 = vpack.c.b16 %v2291, %v2290
        %v2297 = vpack.c.b16 %v2293, %v2292
        %v2306 = vunpack.c.l.b16 %v1553
        %v2307 = vunpack.c.l.b16 %v1554
        %v2308 = vunpack.c.l.b16 %v1555
        %v2309 = vunpack.c.l.b16 %v1556
        %v2310 = vunpack.c.l.b16 %v1557
        %v2311 = vunpack.c.l.b16 %v1558
        %v2312 = vunpack.c.l.b16 %v1559
        %v2313 = vunpack.c.l.b16 %v1560
        %v2314 = vpack.c.b16 %v2307, %v2306
        %v2315 = vpack.c.b16 %v2309, %v2308
        %v2316 = vpack.c.b16 %v2311, %v2310
        %v2317 = vpack.c.b16 %v2313, %v2312
        %v2323 = vsel %vm1893, %v2294, 0
        %v2326 = vsel %vm1893, %v2295, 0
        %v2329 = vsel %vm1893, %v2296, 0
        %v2332 = vsel %vm1893, %v2297, 0
        %2334 = vmatpush.bf16.msra.mxu0 0
        %2335 = vmatpush.bf16.msra.mxu0 0
        %2336 = vmatpush.bf16.msra.mxu0 0
        %2337 = vmatpush.bf16.msra.mxu0 0
        %2338 = vmatpush.bf16.msra.mxu0 %v2317
        %2339 = vmatpush.bf16.msra.mxu0 %v2316
        %2340 = vmatpush.bf16.msra.mxu0 %v2315
        %2341 = vmatpush.bf16.msra.mxu0 %v2314
        %2342 = vmatmul.bf16.gmra.mxu0 %v2323
        %v2343 = vpop.f32.mrf.mxu0
        %v2344 = vadd.f32 0.0, %v2343
        %v2345 = vpop.f32.mrf.mxu0
        %v2346 = vadd.f32 0.0, %v2345
        %2347 = vmatmul.bf16.gmra.mxu0 %v2326
        %v2348 = vpop.f32.mrf.mxu0
        %v2349 = vadd.f32 0.0, %v2348
        %v2350 = vpop.f32.mrf.mxu0
        %v2351 = vadd.f32 0.0, %v2350
        %2352 = vmatmul.bf16.gmra.mxu0 %v2329
        %v2353 = vpop.f32.mrf.mxu0
        %v2354 = vadd.f32 0.0, %v2353
        %v2355 = vpop.f32.mrf.mxu0
        %v2356 = vadd.f32 0.0, %v2355
        %2357 = vmatmul.bf16.gmra.mxu0 %v2332
        %v2358 = vpop.f32.mrf.mxu0
        %v2359 = vadd.f32 0.0, %v2358
        %v2360 = vpop.f32.mrf.mxu0
        %v2361 = vadd.f32 0.0, %v2360
        %2362 = vdwg.mxu0
        %v2371 = vunpack.c.l.b16 %v2254
        %v2372 = vunpack.c.l.b16 %v2255
        %v2373 = vunpack.c.l.b16 %v2256
        %v2374 = vunpack.c.l.b16 %v2257
        %v2375 = vunpack.c.l.b16 %v2258
        %v2376 = vunpack.c.l.b16 %v2259
        %v2377 = vunpack.c.l.b16 %v2260
        %v2378 = vunpack.c.l.b16 %v2261
        %v2379 = vpack.c.b16 %v2372, %v2371
        %v2380 = vpack.c.b16 %v2374, %v2373
        %v2381 = vpack.c.b16 %v2376, %v2375
        %v2382 = vpack.c.b16 %v2378, %v2377
        %v2391 = vunpack.c.l.b16 %v1561
        %v2392 = vunpack.c.l.b16 %v1562
        %v2393 = vunpack.c.l.b16 %v1563
        %v2394 = vunpack.c.l.b16 %v1564
        %v2395 = vunpack.c.l.b16 %v1565
        %v2396 = vunpack.c.l.b16 %v1566
        %v2397 = vunpack.c.l.b16 %v1567
        %v2398 = vunpack.c.l.b16 %v1568
        %v2399 = vpack.c.b16 %v2392, %v2391
        %v2400 = vpack.c.b16 %v2394, %v2393
        %v2401 = vpack.c.b16 %v2396, %v2395
        %v2402 = vpack.c.b16 %v2398, %v2397
        %v2408 = vsel %vm1893, %v2379, 0
        %v2411 = vsel %vm1893, %v2380, 0
        %v2414 = vsel %vm1893, %v2381, 0
        %v2417 = vsel %vm1893, %v2382, 0
        %2419 = vmatpush.bf16.msra.mxu0 0
        %2420 = vmatpush.bf16.msra.mxu0 0
        %2421 = vmatpush.bf16.msra.mxu0 0
        %2422 = vmatpush.bf16.msra.mxu0 0
        %2423 = vmatpush.bf16.msra.mxu0 %v2402
        %2424 = vmatpush.bf16.msra.mxu0 %v2401
        %2425 = vmatpush.bf16.msra.mxu0 %v2400
        %2426 = vmatpush.bf16.msra.mxu0 %v2399
        %2427 = vmatmul.bf16.gmra.mxu0 %v2408
        %v2428 = vpop.f32.mrf.mxu0
        %v2429 = vadd.f32 0.0, %v2428
        %v2430 = vpop.f32.mrf.mxu0
        %v2431 = vadd.f32 0.0, %v2430
        %2432 = vmatmul.bf16.gmra.mxu0 %v2411
        %v2433 = vpop.f32.mrf.mxu0
        %v2434 = vadd.f32 0.0, %v2433
        %v2435 = vpop.f32.mrf.mxu0
        %v2436 = vadd.f32 0.0, %v2435
        %2437 = vmatmul.bf16.gmra.mxu0 %v2414
        %v2438 = vpop.f32.mrf.mxu0
        %v2439 = vadd.f32 0.0, %v2438
        %v2440 = vpop.f32.mrf.mxu0
        %v2441 = vadd.f32 0.0, %v2440
        %2442 = vmatmul.bf16.gmra.mxu0 %v2417
        %v2443 = vpop.f32.mrf.mxu0
        %v2444 = vadd.f32 0.0, %v2443
        %v2445 = vpop.f32.mrf.mxu0
        %v2446 = vadd.f32 0.0, %v2445
        %2447 = vdwg.mxu0
        %v2456 = vunpack.c.l.b16 %v2262
        %v2457 = vunpack.c.l.b16 %v2263
        %v2458 = vunpack.c.l.b16 %v2264
        %v2459 = vunpack.c.l.b16 %v2265
        %v2460 = vunpack.c.l.b16 %v2266
        %v2461 = vunpack.c.l.b16 %v2267
        %v2462 = vunpack.c.l.b16 %v2268
        %v2463 = vunpack.c.l.b16 %v2269
        %v2464 = vpack.c.b16 %v2457, %v2456
        %v2465 = vpack.c.b16 %v2459, %v2458
        %v2466 = vpack.c.b16 %v2461, %v2460
        %v2467 = vpack.c.b16 %v2463, %v2462
        %v2476 = vunpack.c.l.b16 %v1569
        %v2477 = vunpack.c.l.b16 %v1570
        %v2478 = vunpack.c.l.b16 %v1571
        %v2479 = vunpack.c.l.b16 %v1572
        %v2480 = vunpack.c.l.b16 %v1573
        %v2481 = vunpack.c.l.b16 %v1574
        %v2482 = vunpack.c.l.b16 %v1575
        %v2483 = vunpack.c.l.b16 %v1576
        %v2484 = vpack.c.b16 %v2477, %v2476
        %v2485 = vpack.c.b16 %v2479, %v2478
        %v2486 = vpack.c.b16 %v2481, %v2480
        %v2487 = vpack.c.b16 %v2483, %v2482
        %v2493 = vsel %vm1893, %v2464, 0
        %v2496 = vsel %vm1893, %v2465, 0
        %v2499 = vsel %vm1893, %v2466, 0
        %v2502 = vsel %vm1893, %v2467, 0
        %2504 = vmatpush.bf16.msra.mxu0 0
        %2505 = vmatpush.bf16.msra.mxu0 0
        %2506 = vmatpush.bf16.msra.mxu0 0
        %2507 = vmatpush.bf16.msra.mxu0 0
        %2508 = vmatpush.bf16.msra.mxu0 %v2487
        %2509 = vmatpush.bf16.msra.mxu0 %v2486
        %2510 = vmatpush.bf16.msra.mxu0 %v2485
        %2511 = vmatpush.bf16.msra.mxu0 %v2484
        %2512 = vmatmul.bf16.gmra.mxu0 %v2493
        %v2513 = vpop.f32.mrf.mxu0
        %v2514 = vadd.f32 0.0, %v2513
        %v2515 = vpop.f32.mrf.mxu0
        %v2516 = vadd.f32 0.0, %v2515
        %2517 = vmatmul.bf16.gmra.mxu0 %v2496
        %v2518 = vpop.f32.mrf.mxu0
        %v2519 = vadd.f32 0.0, %v2518
        %v2520 = vpop.f32.mrf.mxu0
        %v2521 = vadd.f32 0.0, %v2520
        %2522 = vmatmul.bf16.gmra.mxu0 %v2499
        %v2523 = vpop.f32.mrf.mxu0
        %v2524 = vadd.f32 0.0, %v2523
        %v2525 = vpop.f32.mrf.mxu0
        %v2526 = vadd.f32 0.0, %v2525
        %2527 = vmatmul.bf16.gmra.mxu0 %v2502
        %v2528 = vpop.f32.mrf.mxu0
        %v2529 = vadd.f32 0.0, %v2528
        %v2530 = vpop.f32.mrf.mxu0
        %v2531 = vadd.f32 0.0, %v2530
        %2532 = vdwg.mxu0
        %v2541 = vunpack.c.l.b16 %v2270
        %v2542 = vunpack.c.l.b16 %v2271
        %v2543 = vunpack.c.l.b16 %v2272
        %v2544 = vunpack.c.l.b16 %v2273
        %v2545 = vunpack.c.l.b16 %v2274
        %v2546 = vunpack.c.l.b16 %v2275
        %v2547 = vunpack.c.l.b16 %v2276
        %v2548 = vunpack.c.l.b16 %v2277
        %v2549 = vpack.c.b16 %v2542, %v2541
        %v2550 = vpack.c.b16 %v2544, %v2543
        %v2551 = vpack.c.b16 %v2546, %v2545
        %v2552 = vpack.c.b16 %v2548, %v2547
        %v2561 = vunpack.c.l.b16 %v1577
        %v2562 = vunpack.c.l.b16 %v1578
        %v2563 = vunpack.c.l.b16 %v1579
        %v2564 = vunpack.c.l.b16 %v1580
        %v2565 = vunpack.c.l.b16 %v1581
        %v2566 = vunpack.c.l.b16 %v1582
        %v2567 = vunpack.c.l.b16 %v1583
        %v2568 = vunpack.c.l.b16 %v1584
        %v2569 = vpack.c.b16 %v2562, %v2561
        %v2570 = vpack.c.b16 %v2564, %v2563
        %v2571 = vpack.c.b16 %v2566, %v2565
        %v2572 = vpack.c.b16 %v2568, %v2567
        %v2578 = vsel %vm1893, %v2549, 0
        %v2581 = vsel %vm1893, %v2550, 0
        %v2584 = vsel %vm1893, %v2551, 0
        %v2587 = vsel %vm1893, %v2552, 0
        %2589 = vmatpush.bf16.msra.mxu0 0
        %2590 = vmatpush.bf16.msra.mxu0 0
        %2591 = vmatpush.bf16.msra.mxu0 0
        %2592 = vmatpush.bf16.msra.mxu0 0
        %2593 = vmatpush.bf16.msra.mxu0 %v2572
        %2594 = vmatpush.bf16.msra.mxu0 %v2571
        %2595 = vmatpush.bf16.msra.mxu0 %v2570
        %2596 = vmatpush.bf16.msra.mxu0 %v2569
        %2597 = vmatmul.bf16.gmra.mxu0 %v2578
        %v2598 = vpop.f32.mrf.mxu0
        %v2599 = vadd.f32 0.0, %v2598
        %v2600 = vpop.f32.mrf.mxu0
        %v2601 = vadd.f32 0.0, %v2600
        %2602 = vmatmul.bf16.gmra.mxu0 %v2581
        %v2603 = vpop.f32.mrf.mxu0
        %v2604 = vadd.f32 0.0, %v2603
        %v2605 = vpop.f32.mrf.mxu0
        %v2606 = vadd.f32 0.0, %v2605
        %2607 = vmatmul.bf16.gmra.mxu0 %v2584
        %v2608 = vpop.f32.mrf.mxu0
        %v2609 = vadd.f32 0.0, %v2608
        %v2610 = vpop.f32.mrf.mxu0
        %v2611 = vadd.f32 0.0, %v2610
        %2612 = vmatmul.bf16.gmra.mxu0 %v2587
        %v2613 = vpop.f32.mrf.mxu0
        %v2614 = vadd.f32 0.0, %v2613
        %v2615 = vpop.f32.mrf.mxu0
        %v2616 = vadd.f32 0.0, %v2615
        %2617 = vdwg.mxu0
        %v2618 = vpack.c.bf16 %v2344, %v2344
        %v2619 = vpack.c.bf16 %v2346, %v2346
        %v2620 = vpack.c.bf16 %v2349, %v2349
        %v2621 = vpack.c.bf16 %v2351, %v2351
        %v2622 = vpack.c.bf16 %v2354, %v2354
        %v2623 = vpack.c.bf16 %v2356, %v2356
        %v2624 = vpack.c.bf16 %v2359, %v2359
        %v2625 = vpack.c.bf16 %v2361, %v2361
        %v2626 = vpack.c.bf16 %v2429, %v2429
        %v2627 = vpack.c.bf16 %v2431, %v2431
        %v2628 = vpack.c.bf16 %v2434, %v2434
        %v2629 = vpack.c.bf16 %v2436, %v2436
        %v2630 = vpack.c.bf16 %v2439, %v2439
        %v2631 = vpack.c.bf16 %v2441, %v2441
        %v2632 = vpack.c.bf16 %v2444, %v2444
        %v2633 = vpack.c.bf16 %v2446, %v2446
        %v2634 = vpack.c.bf16 %v2514, %v2514
        %v2635 = vpack.c.bf16 %v2516, %v2516
        %v2636 = vpack.c.bf16 %v2519, %v2519
        %v2637 = vpack.c.bf16 %v2521, %v2521
        %v2638 = vpack.c.bf16 %v2524, %v2524
        %v2639 = vpack.c.bf16 %v2526, %v2526
        %v2640 = vpack.c.bf16 %v2529, %v2529
        %v2641 = vpack.c.bf16 %v2531, %v2531
        %v2642 = vpack.c.bf16 %v2599, %v2599
        %v2643 = vpack.c.bf16 %v2601, %v2601
        %v2644 = vpack.c.bf16 %v2604, %v2604
        %v2645 = vpack.c.bf16 %v2606, %v2606
        %v2646 = vpack.c.bf16 %v2609, %v2609
        %v2647 = vpack.c.bf16 %v2611, %v2611
        %v2648 = vpack.c.bf16 %v2614, %v2614
        %v2649 = vpack.c.bf16 %v2616, %v2616
        %2650 = vst [vmem:[#allocation3] sm:$0xf] %v2618
        %2651 = vst [vmem:[#allocation3 + $0x8] sm:$0xf] %v2619
        %2652 = vst [vmem:[#allocation3 + $0x10] sm:$0xf] %v2620
        %2653 = vst [vmem:[#allocation3 + $0x18] sm:$0xf] %v2621
        %2654 = vst [vmem:[#allocation3 + $0x20] sm:$0xf] %v2622
        %2655 = vst [vmem:[#allocation3 + $0x28] sm:$0xf] %v2623
        %2656 = vst [vmem:[#allocation3 + $0x30] sm:$0xf] %v2624
        %2657 = vst [vmem:[#allocation3 + $0x38] sm:$0xf] %v2625
        %2658 = vst [vmem:[#allocation3 + $0x40] sm:$0xf] %v2626
        %2659 = vst [vmem:[#allocation3 + $0x48] sm:$0xf] %v2627
        %2660 = vst [vmem:[#allocation3 + $0x50] sm:$0xf] %v2628
        %2661 = vst [vmem:[#allocation3 + $0x58] sm:$0xf] %v2629
        %2662 = vst [vmem:[#allocation3 + $0x60] sm:$0xf] %v2630
        %2663 = vst [vmem:[#allocation3 + $0x68] sm:$0xf] %v2631
        %2664 = vst [vmem:[#allocation3 + $0x70] sm:$0xf] %v2632
        %2665 = vst [vmem:[#allocation3 + $0x78] sm:$0xf] %v2633
        %2666 = vst [vmem:[#allocation3 + $0x80] sm:$0xf] %v2634
        %2667 = vst [vmem:[#allocation3 + $0x88] sm:$0xf] %v2635
        %2668 = vst [vmem:[#allocation3 + $0x90] sm:$0xf] %v2636
        %2669 = vst [vmem:[#allocation3 + $0x98] sm:$0xf] %v2637
        %2670 = vst [vmem:[#allocation3 + $0xa0] sm:$0xf] %v2638
        %2671 = vst [vmem:[#allocation3 + $0xa8] sm:$0xf] %v2639
        %2672 = vst [vmem:[#allocation3 + $0xb0] sm:$0xf] %v2640
        %2673 = vst [vmem:[#allocation3 + $0xb8] sm:$0xf] %v2641
        %2674 = vst [vmem:[#allocation3 + $0xc0] sm:$0xf] %v2642
        %2675 = vst [vmem:[#allocation3 + $0xc8] sm:$0xf] %v2643
        %2676 = vst [vmem:[#allocation3 + $0xd0] sm:$0xf] %v2644
        %2677 = vst [vmem:[#allocation3 + $0xd8] sm:$0xf] %v2645
        %2678 = vst [vmem:[#allocation3 + $0xe0] sm:$0xf] %v2646
        %2679 = vst [vmem:[#allocation3 + $0xe8] sm:$0xf] %v2647
        %2680 = vst [vmem:[#allocation3 + $0xf0] sm:$0xf] %v2648
        %2681 = vst [vmem:[#allocation3 + $0xf8] sm:$0xf] %v2649
        %v2682 = vmul.f32 %v1022, 0.17677669
        %v2683 = vmul.f32 %v1024, 0.17677669
        %v2684 = vmul.f32 %v1027, 0.17677669
        %v2685 = vmul.f32 %v1029, 0.17677669
        %v2686 = vmul.f32 %v1032, 0.17677669
        %v2687 = vmul.f32 %v1034, 0.17677669
        %v2688 = vmul.f32 %v1037, 0.17677669
        %v2689 = vmul.f32 %v1039, 0.17677669
        %v2690 = vmul.f32 %v1042, 0.17677669
        %v2691 = vmul.f32 %v1044, 0.17677669
        %v2692 = vmul.f32 %v1047, 0.17677669
        %v2693 = vmul.f32 %v1049, 0.17677669
        %v2694 = vmul.f32 %v1052, 0.17677669
        %v2695 = vmul.f32 %v1054, 0.17677669
        %v2696 = vmul.f32 %v1057, 0.17677669
        %v2697 = vmul.f32 %v1059, 0.17677669
        %v2698 = vmul.f32 %v1062, 0.17677669
        %v2699 = vmul.f32 %v1064, 0.17677669
        %v2700 = vmul.f32 %v1067, 0.17677669
        %v2701 = vmul.f32 %v1069, 0.17677669
        %v2702 = vmul.f32 %v1072, 0.17677669
        %v2703 = vmul.f32 %v1074, 0.17677669
        %v2704 = vmul.f32 %v1077, 0.17677669
        %v2705 = vmul.f32 %v1079, 0.17677669
        %v2706 = vmul.f32 %v1082, 0.17677669
        %v2707 = vmul.f32 %v1084, 0.17677669
        %v2708 = vmul.f32 %v1087, 0.17677669
        %v2709 = vmul.f32 %v1089, 0.17677669
        %v2710 = vmul.f32 %v1092, 0.17677669
        %v2711 = vmul.f32 %v1094, 0.17677669
        %v2712 = vmul.f32 %v1097, 0.17677669
        %v2713 = vmul.f32 %v1099, 0.17677669
        %v2714 = vpack.c.bf16 %v2682, %v2682
        %v2715 = vpack.c.bf16 %v2683, %v2683
        %v2716 = vpack.c.bf16 %v2684, %v2684
        %v2717 = vpack.c.bf16 %v2685, %v2685
        %v2718 = vpack.c.bf16 %v2686, %v2686
        %v2719 = vpack.c.bf16 %v2687, %v2687
        %v2720 = vpack.c.bf16 %v2688, %v2688
        %v2721 = vpack.c.bf16 %v2689, %v2689
        %v2722 = vpack.c.bf16 %v2690, %v2690
        %v2723 = vpack.c.bf16 %v2691, %v2691
        %v2724 = vpack.c.bf16 %v2692, %v2692
        %v2725 = vpack.c.bf16 %v2693, %v2693
        %v2726 = vpack.c.bf16 %v2694, %v2694
        %v2727 = vpack.c.bf16 %v2695, %v2695
        %v2728 = vpack.c.bf16 %v2696, %v2696
        %v2729 = vpack.c.bf16 %v2697, %v2697
        %v2730 = vpack.c.bf16 %v2698, %v2698
        %v2731 = vpack.c.bf16 %v2699, %v2699
        %v2732 = vpack.c.bf16 %v2700, %v2700
        %v2733 = vpack.c.bf16 %v2701, %v2701
        %v2734 = vpack.c.bf16 %v2702, %v2702
        %v2735 = vpack.c.bf16 %v2703, %v2703
        %v2736 = vpack.c.bf16 %v2704, %v2704
        %v2737 = vpack.c.bf16 %v2705, %v2705
        %v2738 = vpack.c.bf16 %v2706, %v2706
        %v2739 = vpack.c.bf16 %v2707, %v2707
        %v2740 = vpack.c.bf16 %v2708, %v2708
        %v2741 = vpack.c.bf16 %v2709, %v2709
        %v2742 = vpack.c.bf16 %v2710, %v2710
        %v2743 = vpack.c.bf16 %v2711, %v2711
        %v2744 = vpack.c.bf16 %v2712, %v2712
        %v2745 = vpack.c.bf16 %v2713, %v2713
        %v2746 = vpack.c.bf16 %v1200, %v1200
        %v2747 = vpack.c.bf16 %v1202, %v1202
        %v2748 = vpack.c.bf16 %v1205, %v1205
        %v2749 = vpack.c.bf16 %v1207, %v1207
        %v2750 = vpack.c.bf16 %v1210, %v1210
        %v2751 = vpack.c.bf16 %v1212, %v1212
        %v2752 = vpack.c.bf16 %v1215, %v1215
        %v2753 = vpack.c.bf16 %v1217, %v1217
        %v2754 = vpack.c.bf16 %v1220, %v1220
        %v2755 = vpack.c.bf16 %v1222, %v1222
        %v2756 = vpack.c.bf16 %v1225, %v1225
        %v2757 = vpack.c.bf16 %v1227, %v1227
        %v2758 = vpack.c.bf16 %v1230, %v1230
        %v2759 = vpack.c.bf16 %v1232, %v1232
        %v2760 = vpack.c.bf16 %v1235, %v1235
        %v2761 = vpack.c.bf16 %v1237, %v1237
        %v2762 = vpack.c.bf16 %v1240, %v1240
        %v2763 = vpack.c.bf16 %v1242, %v1242
        %v2764 = vpack.c.bf16 %v1245, %v1245
        %v2765 = vpack.c.bf16 %v1247, %v1247
        %v2766 = vpack.c.bf16 %v1250, %v1250
        %v2767 = vpack.c.bf16 %v1252, %v1252
        %v2768 = vpack.c.bf16 %v1255, %v1255
        %v2769 = vpack.c.bf16 %v1257, %v1257
        %v2770 = vpack.c.bf16 %v1260, %v1260
        %v2771 = vpack.c.bf16 %v1262, %v1262
        %v2772 = vpack.c.bf16 %v1265, %v1265
        %v2773 = vpack.c.bf16 %v1267, %v1267
        %v2774 = vpack.c.bf16 %v1270, %v1270
        %v2775 = vpack.c.bf16 %v1272, %v1272
        %v2776 = vpack.c.bf16 %v1275, %v1275
        %v2777 = vpack.c.bf16 %v1277, %v1277
        %v2778 = vpack.c.bf16 %v1378, %v1378
        %v2779 = vpack.c.bf16 %v1380, %v1380
        %v2780 = vpack.c.bf16 %v1383, %v1383
        %v2781 = vpack.c.bf16 %v1385, %v1385
        %v2782 = vpack.c.bf16 %v1388, %v1388
        %v2783 = vpack.c.bf16 %v1390, %v1390
        %v2784 = vpack.c.bf16 %v1393, %v1393
        %v2785 = vpack.c.bf16 %v1395, %v1395
        %v2786 = vpack.c.bf16 %v1398, %v1398
        %v2787 = vpack.c.bf16 %v1400, %v1400
        %v2788 = vpack.c.bf16 %v1403, %v1403
        %v2789 = vpack.c.bf16 %v1405, %v1405
        %v2790 = vpack.c.bf16 %v1408, %v1408
        %v2791 = vpack.c.bf16 %v1410, %v1410
        %v2792 = vpack.c.bf16 %v1413, %v1413
        %v2793 = vpack.c.bf16 %v1415, %v1415
        %v2794 = vpack.c.bf16 %v1418, %v1418
        %v2795 = vpack.c.bf16 %v1420, %v1420
        %v2796 = vpack.c.bf16 %v1423, %v1423
        %v2797 = vpack.c.bf16 %v1425, %v1425
        %v2798 = vpack.c.bf16 %v1428, %v1428
        %v2799 = vpack.c.bf16 %v1430, %v1430
        %v2800 = vpack.c.bf16 %v1433, %v1433
        %v2801 = vpack.c.bf16 %v1435, %v1435
        %v2802 = vpack.c.bf16 %v1438, %v1438
        %v2803 = vpack.c.bf16 %v1440, %v1440
        %v2804 = vpack.c.bf16 %v1443, %v1443
        %v2805 = vpack.c.bf16 %v1445, %v1445
        %v2806 = vpack.c.bf16 %v1448, %v1448
        %v2807 = vpack.c.bf16 %v1450, %v1450
        %v2808 = vpack.c.bf16 %v1453, %v1453
        %v2809 = vpack.c.bf16 %v1455, %v1455
        %v2818 = vunpack.c.l.b16 %v2714
        %v2819 = vunpack.c.l.b16 %v2715
        %v2820 = vunpack.c.l.b16 %v2716
        %v2821 = vunpack.c.l.b16 %v2717
        %v2822 = vunpack.c.l.b16 %v2718
        %v2823 = vunpack.c.l.b16 %v2719
        %v2824 = vunpack.c.l.b16 %v2720
        %v2825 = vunpack.c.l.b16 %v2721
        %v2826 = vpack.c.b16 %v2819, %v2818
        %v2827 = vpack.c.b16 %v2821, %v2820
        %v2828 = vpack.c.b16 %v2823, %v2822
        %v2829 = vpack.c.b16 %v2825, %v2824
        %v2842 = vunpack.c.l.b16 %v2746
        %v2843 = vunpack.c.l.b16 %v2747
        %v2844 = vunpack.c.l.b16 %v2748
        %v2845 = vunpack.c.l.b16 %v2749
        %v2846 = vunpack.c.l.b16 %v2750
        %v2847 = vunpack.c.l.b16 %v2751
        %v2848 = vunpack.c.l.b16 %v2752
        %v2849 = vunpack.c.l.b16 %v2753
        %v2850 = vpack.c.b16 %v2843, %v2842
        %v2851 = vpack.c.b16 %v2845, %v2844
        %v2852 = vpack.c.b16 %v2847, %v2846
        %v2853 = vpack.c.b16 %v2849, %v2848
        %2858 = vmatpush.bf16.xpose.msra.mxu0 0
        %2859 = vmatpush.bf16.xpose.msra.mxu0 0
        %2860 = vmatpush.bf16.xpose.msra.mxu0 0
        %2861 = vmatpush.bf16.xpose.msra.mxu0 0
        %2862 = vmatpush.bf16.xpose.msra.mxu0 %v2853
        %2863 = vmatpush.bf16.xpose.msra.mxu0 %v2852
        %2864 = vmatpush.bf16.xpose.msra.mxu0 %v2851
        %2865 = vmatpush.bf16.xpose.msra.mxu0 %v2850
        %2866 = vmatmul.bf16.gmra.mxu0 %v2826
        %v2867 = vpop.f32.mrf.mxu0
        %v2868 = vadd.f32 0.0, %v2867
        %v2869 = vpop.f32.mrf.mxu0
        %v2870 = vadd.f32 0.0, %v2869
        %2871 = vmatmul.bf16.gmra.mxu0 %v2827
        %v2872 = vpop.f32.mrf.mxu0
        %v2873 = vadd.f32 0.0, %v2872
        %v2874 = vpop.f32.mrf.mxu0
        %v2875 = vadd.f32 0.0, %v2874
        %2876 = vmatmul.bf16.gmra.mxu0 %v2828
        %v2877 = vpop.f32.mrf.mxu0
        %v2878 = vadd.f32 0.0, %v2877
        %v2879 = vpop.f32.mrf.mxu0
        %v2880 = vadd.f32 0.0, %v2879
        %2881 = vmatmul.bf16.gmra.mxu0 %v2829
        %v2882 = vpop.f32.mrf.mxu0
        %v2883 = vadd.f32 0.0, %v2882
        %v2884 = vpop.f32.mrf.mxu0
        %v2885 = vadd.f32 0.0, %v2884
        %2886 = vdwg.mxu0
        %v2895 = vunpack.c.l.b16 %v2722
        %v2896 = vunpack.c.l.b16 %v2723
        %v2897 = vunpack.c.l.b16 %v2724
        %v2898 = vunpack.c.l.b16 %v2725
        %v2899 = vunpack.c.l.b16 %v2726
        %v2900 = vunpack.c.l.b16 %v2727
        %v2901 = vunpack.c.l.b16 %v2728
        %v2902 = vunpack.c.l.b16 %v2729
        %v2903 = vpack.c.b16 %v2896, %v2895
        %v2904 = vpack.c.b16 %v2898, %v2897
        %v2905 = vpack.c.b16 %v2900, %v2899
        %v2906 = vpack.c.b16 %v2902, %v2901
        %v2919 = vunpack.c.l.b16 %v2754
        %v2920 = vunpack.c.l.b16 %v2755
        %v2921 = vunpack.c.l.b16 %v2756
        %v2922 = vunpack.c.l.b16 %v2757
        %v2923 = vunpack.c.l.b16 %v2758
        %v2924 = vunpack.c.l.b16 %v2759
        %v2925 = vunpack.c.l.b16 %v2760
        %v2926 = vunpack.c.l.b16 %v2761
        %v2927 = vpack.c.b16 %v2920, %v2919
        %v2928 = vpack.c.b16 %v2922, %v2921
        %v2929 = vpack.c.b16 %v2924, %v2923
        %v2930 = vpack.c.b16 %v2926, %v2925
        %2935 = vmatpush.bf16.xpose.msra.mxu0 0
        %2936 = vmatpush.bf16.xpose.msra.mxu0 0
        %2937 = vmatpush.bf16.xpose.msra.mxu0 0
        %2938 = vmatpush.bf16.xpose.msra.mxu0 0
        %2939 = vmatpush.bf16.xpose.msra.mxu0 %v2930
        %2940 = vmatpush.bf16.xpose.msra.mxu0 %v2929
        %2941 = vmatpush.bf16.xpose.msra.mxu0 %v2928
        %2942 = vmatpush.bf16.xpose.msra.mxu0 %v2927
        %2943 = vmatmul.bf16.gmra.mxu0 %v2903
        %v2944 = vpop.f32.mrf.mxu0
        %v2945 = vadd.f32 0.0, %v2944
        %v2946 = vpop.f32.mrf.mxu0
        %v2947 = vadd.f32 0.0, %v2946
        %2948 = vmatmul.bf16.gmra.mxu0 %v2904
        %v2949 = vpop.f32.mrf.mxu0
        %v2950 = vadd.f32 0.0, %v2949
        %v2951 = vpop.f32.mrf.mxu0
        %v2952 = vadd.f32 0.0, %v2951
        %2953 = vmatmul.bf16.gmra.mxu0 %v2905
        %v2954 = vpop.f32.mrf.mxu0
        %v2955 = vadd.f32 0.0, %v2954
        %v2956 = vpop.f32.mrf.mxu0
        %v2957 = vadd.f32 0.0, %v2956
        %2958 = vmatmul.bf16.gmra.mxu0 %v2906
        %v2959 = vpop.f32.mrf.mxu0
        %v2960 = vadd.f32 0.0, %v2959
        %v2961 = vpop.f32.mrf.mxu0
        %v2962 = vadd.f32 0.0, %v2961
        %2963 = vdwg.mxu0
        %v2972 = vunpack.c.l.b16 %v2730
        %v2973 = vunpack.c.l.b16 %v2731
        %v2974 = vunpack.c.l.b16 %v2732
        %v2975 = vunpack.c.l.b16 %v2733
        %v2976 = vunpack.c.l.b16 %v2734
        %v2977 = vunpack.c.l.b16 %v2735
        %v2978 = vunpack.c.l.b16 %v2736
        %v2979 = vunpack.c.l.b16 %v2737
        %v2980 = vpack.c.b16 %v2973, %v2972
        %v2981 = vpack.c.b16 %v2975, %v2974
        %v2982 = vpack.c.b16 %v2977, %v2976
        %v2983 = vpack.c.b16 %v2979, %v2978
        %v2996 = vunpack.c.l.b16 %v2762
        %v2997 = vunpack.c.l.b16 %v2763
        %v2998 = vunpack.c.l.b16 %v2764
        %v2999 = vunpack.c.l.b16 %v2765
        %v3000 = vunpack.c.l.b16 %v2766
        %v3001 = vunpack.c.l.b16 %v2767
        %v3002 = vunpack.c.l.b16 %v2768
        %v3003 = vunpack.c.l.b16 %v2769
        %v3004 = vpack.c.b16 %v2997, %v2996
        %v3005 = vpack.c.b16 %v2999, %v2998
        %v3006 = vpack.c.b16 %v3001, %v3000
        %v3007 = vpack.c.b16 %v3003, %v3002
        %3012 = vmatpush.bf16.xpose.msra.mxu0 0
        %3013 = vmatpush.bf16.xpose.msra.mxu0 0
        %3014 = vmatpush.bf16.xpose.msra.mxu0 0
        %3015 = vmatpush.bf16.xpose.msra.mxu0 0
        %3016 = vmatpush.bf16.xpose.msra.mxu0 %v3007
        %3017 = vmatpush.bf16.xpose.msra.mxu0 %v3006
        %3018 = vmatpush.bf16.xpose.msra.mxu0 %v3005
        %3019 = vmatpush.bf16.xpose.msra.mxu0 %v3004
        %3020 = vmatmul.bf16.gmra.mxu0 %v2980
        %v3021 = vpop.f32.mrf.mxu0
        %v3022 = vadd.f32 0.0, %v3021
        %v3023 = vpop.f32.mrf.mxu0
        %v3024 = vadd.f32 0.0, %v3023
        %3025 = vmatmul.bf16.gmra.mxu0 %v2981
        %v3026 = vpop.f32.mrf.mxu0
        %v3027 = vadd.f32 0.0, %v3026
        %v3028 = vpop.f32.mrf.mxu0
        %v3029 = vadd.f32 0.0, %v3028
        %3030 = vmatmul.bf16.gmra.mxu0 %v2982
        %v3031 = vpop.f32.mrf.mxu0
        %v3032 = vadd.f32 0.0, %v3031
        %v3033 = vpop.f32.mrf.mxu0
        %v3034 = vadd.f32 0.0, %v3033
        %3035 = vmatmul.bf16.gmra.mxu0 %v2983
        %v3036 = vpop.f32.mrf.mxu0
        %v3037 = vadd.f32 0.0, %v3036
        %v3038 = vpop.f32.mrf.mxu0
        %v3039 = vadd.f32 0.0, %v3038
        %3040 = vdwg.mxu0
        %v3049 = vunpack.c.l.b16 %v2738
        %v3050 = vunpack.c.l.b16 %v2739
        %v3051 = vunpack.c.l.b16 %v2740
        %v3052 = vunpack.c.l.b16 %v2741
        %v3053 = vunpack.c.l.b16 %v2742
        %v3054 = vunpack.c.l.b16 %v2743
        %v3055 = vunpack.c.l.b16 %v2744
        %v3056 = vunpack.c.l.b16 %v2745
        %v3057 = vpack.c.b16 %v3050, %v3049
        %v3058 = vpack.c.b16 %v3052, %v3051
        %v3059 = vpack.c.b16 %v3054, %v3053
        %v3060 = vpack.c.b16 %v3056, %v3055
        %v3073 = vunpack.c.l.b16 %v2770
        %v3074 = vunpack.c.l.b16 %v2771
        %v3075 = vunpack.c.l.b16 %v2772
        %v3076 = vunpack.c.l.b16 %v2773
        %v3077 = vunpack.c.l.b16 %v2774
        %v3078 = vunpack.c.l.b16 %v2775
        %v3079 = vunpack.c.l.b16 %v2776
        %v3080 = vunpack.c.l.b16 %v2777
        %v3081 = vpack.c.b16 %v3074, %v3073
        %v3082 = vpack.c.b16 %v3076, %v3075
        %v3083 = vpack.c.b16 %v3078, %v3077
        %v3084 = vpack.c.b16 %v3080, %v3079
        %3089 = vmatpush.bf16.xpose.msra.mxu0 0
        %3090 = vmatpush.bf16.xpose.msra.mxu0 0
        %3091 = vmatpush.bf16.xpose.msra.mxu0 0
        %3092 = vmatpush.bf16.xpose.msra.mxu0 0
        %3093 = vmatpush.bf16.xpose.msra.mxu0 %v3084
        %3094 = vmatpush.bf16.xpose.msra.mxu0 %v3083
        %3095 = vmatpush.bf16.xpose.msra.mxu0 %v3082
        %3096 = vmatpush.bf16.xpose.msra.mxu0 %v3081
        %3097 = vmatmul.bf16.gmra.mxu0 %v3057
        %v3098 = vpop.f32.mrf.mxu0
        %v3099 = vadd.f32 0.0, %v3098
        %v3100 = vpop.f32.mrf.mxu0
        %v3101 = vadd.f32 0.0, %v3100
        %3102 = vmatmul.bf16.gmra.mxu0 %v3058
        %v3103 = vpop.f32.mrf.mxu0
        %v3104 = vadd.f32 0.0, %v3103
        %v3105 = vpop.f32.mrf.mxu0
        %v3106 = vadd.f32 0.0, %v3105
        %3107 = vmatmul.bf16.gmra.mxu0 %v3059
        %v3108 = vpop.f32.mrf.mxu0
        %v3109 = vadd.f32 0.0, %v3108
        %v3110 = vpop.f32.mrf.mxu0
        %v3111 = vadd.f32 0.0, %v3110
        %3112 = vmatmul.bf16.gmra.mxu0 %v3060
        %v3113 = vpop.f32.mrf.mxu0
        %v3114 = vadd.f32 0.0, %v3113
        %v3115 = vpop.f32.mrf.mxu0
        %v3116 = vadd.f32 0.0, %v3115
        %3117 = vdwg.mxu0
        %v3118 = vsel %vm1893, %v2868, -inf
        %3119 = vmax.xlane.f32.xlu0 %v3118
        %v3120 = vpop.xlane.xlu0 %3119
        %v3121 = vsel %vm1893, %v2870, -inf
        %3122 = vmax.xlane.f32.xlu0 %v3121
        %v3123 = vpop.xlane.xlu0 %3122
        %v3124 = vsel %vm1893, %v2873, -inf
        %3125 = vmax.xlane.f32.xlu0 %v3124
        %v3126 = vpop.xlane.xlu0 %3125
        %v3127 = vsel %vm1893, %v2875, -inf
        %3128 = vmax.xlane.f32.xlu0 %v3127
        %v3129 = vpop.xlane.xlu0 %3128
        %v3130 = vsel %vm1893, %v2878, -inf
        %3131 = vmax.xlane.f32.xlu0 %v3130
        %v3132 = vpop.xlane.xlu0 %3131
        %v3133 = vsel %vm1893, %v2880, -inf
        %3134 = vmax.xlane.f32.xlu0 %v3133
        %v3135 = vpop.xlane.xlu0 %3134
        %v3136 = vsel %vm1893, %v2883, -inf
        %3137 = vmax.xlane.f32.xlu0 %v3136
        %v3138 = vpop.xlane.xlu0 %3137
        %v3139 = vsel %vm1893, %v2885, -inf
        %3140 = vmax.xlane.f32.xlu0 %v3139
        %v3141 = vpop.xlane.xlu0 %3140
        %v3142 = vsel %vm1893, %v2945, -inf
        %3143 = vmax.xlane.f32.xlu0 %v3142
        %v3144 = vpop.xlane.xlu0 %3143
        %v3145 = vsel %vm1893, %v2947, -inf
        %3146 = vmax.xlane.f32.xlu0 %v3145
        %v3147 = vpop.xlane.xlu0 %3146
        %v3148 = vsel %vm1893, %v2950, -inf
        %3149 = vmax.xlane.f32.xlu0 %v3148
        %v3150 = vpop.xlane.xlu0 %3149
        %v3151 = vsel %vm1893, %v2952, -inf
        %3152 = vmax.xlane.f32.xlu0 %v3151
        %v3153 = vpop.xlane.xlu0 %3152
        %v3154 = vsel %vm1893, %v2955, -inf
        %3155 = vmax.xlane.f32.xlu0 %v3154
        %v3156 = vpop.xlane.xlu0 %3155
        %v3157 = vsel %vm1893, %v2957, -inf
        %3158 = vmax.xlane.f32.xlu0 %v3157
        %v3159 = vpop.xlane.xlu0 %3158
        %v3160 = vsel %vm1893, %v2960, -inf
        %3161 = vmax.xlane.f32.xlu0 %v3160
        %v3162 = vpop.xlane.xlu0 %3161
        %v3163 = vsel %vm1893, %v2962, -inf
        %3164 = vmax.xlane.f32.xlu0 %v3163
        %v3165 = vpop.xlane.xlu0 %3164
        %v3166 = vsel %vm1893, %v3022, -inf
        %3167 = vmax.xlane.f32.xlu0 %v3166
        %v3168 = vpop.xlane.xlu0 %3167
        %v3169 = vsel %vm1893, %v3024, -inf
        %3170 = vmax.xlane.f32.xlu0 %v3169
        %v3171 = vpop.xlane.xlu0 %3170
        %v3172 = vsel %vm1893, %v3027, -inf
        %3173 = vmax.xlane.f32.xlu0 %v3172
        %v3174 = vpop.xlane.xlu0 %3173
        %v3175 = vsel %vm1893, %v3029, -inf
        %3176 = vmax.xlane.f32.xlu0 %v3175
        %v3177 = vpop.xlane.xlu0 %3176
        %v3178 = vsel %vm1893, %v3032, -inf
        %3179 = vmax.xlane.f32.xlu0 %v3178
        %v3180 = vpop.xlane.xlu0 %3179
        %v3181 = vsel %vm1893, %v3034, -inf
        %3182 = vmax.xlane.f32.xlu0 %v3181
        %v3183 = vpop.xlane.xlu0 %3182
        %v3184 = vsel %vm1893, %v3037, -inf
        %3185 = vmax.xlane.f32.xlu0 %v3184
        %v3186 = vpop.xlane.xlu0 %3185
        %v3187 = vsel %vm1893, %v3039, -inf
        %3188 = vmax.xlane.f32.xlu0 %v3187
        %v3189 = vpop.xlane.xlu0 %3188
        %v3190 = vsel %vm1893, %v3099, -inf
        %3191 = vmax.xlane.f32.xlu0 %v3190
        %v3192 = vpop.xlane.xlu0 %3191
        %v3193 = vsel %vm1893, %v3101, -inf
        %3194 = vmax.xlane.f32.xlu0 %v3193
        %v3195 = vpop.xlane.xlu0 %3194
        %v3196 = vsel %vm1893, %v3104, -inf
        %3197 = vmax.xlane.f32.xlu0 %v3196
        %v3198 = vpop.xlane.xlu0 %3197
        %v3199 = vsel %vm1893, %v3106, -inf
        %3200 = vmax.xlane.f32.xlu0 %v3199
        %v3201 = vpop.xlane.xlu0 %3200
        %v3202 = vsel %vm1893, %v3109, -inf
        %3203 = vmax.xlane.f32.xlu0 %v3202
        %v3204 = vpop.xlane.xlu0 %3203
        %v3205 = vsel %vm1893, %v3111, -inf
        %3206 = vmax.xlane.f32.xlu0 %v3205
        %v3207 = vpop.xlane.xlu0 %3206
        %v3208 = vsel %vm1893, %v3114, -inf
        %3209 = vmax.xlane.f32.xlu0 %v3208
        %v3210 = vpop.xlane.xlu0 %3209
        %v3211 = vsel %vm1893, %v3116, -inf
        %3212 = vmax.xlane.f32.xlu0 %v3211
        %v3213 = vpop.xlane.xlu0 %3212
        %v3214 = vsub.f32 %v2868, %v3120
        %v3215 = vsub.f32 %v2870, %v3123
        %v3216 = vsub.f32 %v2873, %v3126
        %v3217 = vsub.f32 %v2875, %v3129
        %v3218 = vsub.f32 %v2878, %v3132
        %v3219 = vsub.f32 %v2880, %v3135
        %v3220 = vsub.f32 %v2883, %v3138
        %v3221 = vsub.f32 %v2885, %v3141
        %v3222 = vsub.f32 %v2945, %v3144
        %v3223 = vsub.f32 %v2947, %v3147
        %v3224 = vsub.f32 %v2950, %v3150
        %v3225 = vsub.f32 %v2952, %v3153
        %v3226 = vsub.f32 %v2955, %v3156
        %v3227 = vsub.f32 %v2957, %v3159
        %v3228 = vsub.f32 %v2960, %v3162
        %v3229 = vsub.f32 %v2962, %v3165
        %v3230 = vsub.f32 %v3022, %v3168
        %v3231 = vsub.f32 %v3024, %v3171
        %v3232 = vsub.f32 %v3027, %v3174
        %v3233 = vsub.f32 %v3029, %v3177
        %v3234 = vsub.f32 %v3032, %v3180
        %v3235 = vsub.f32 %v3034, %v3183
        %v3236 = vsub.f32 %v3037, %v3186
        %v3237 = vsub.f32 %v3039, %v3189
        %v3238 = vsub.f32 %v3099, %v3192
        %v3239 = vsub.f32 %v3101, %v3195
        %v3240 = vsub.f32 %v3104, %v3198
        %v3241 = vsub.f32 %v3106, %v3201
        %v3242 = vsub.f32 %v3109, %v3204
        %v3243 = vsub.f32 %v3111, %v3207
        %v3244 = vsub.f32 %v3114, %v3210
        %v3245 = vsub.f32 %v3116, %v3213
        %v3246 = vmul.f32 %v3214, 1.442695
        %v3247 = vpow.pop %v3246
        %v3248 = vmul.f32 %v3215, 1.442695
        %v3249 = vpow.pop %v3248
        %v3250 = vmul.f32 %v3216, 1.442695
        %v3251 = vpow.pop %v3250
        %v3252 = vmul.f32 %v3217, 1.442695
        %v3253 = vpow.pop %v3252
        %v3254 = vmul.f32 %v3218, 1.442695
        %v3255 = vpow.pop %v3254
        %v3256 = vmul.f32 %v3219, 1.442695
        %v3257 = vpow.pop %v3256
        %v3258 = vmul.f32 %v3220, 1.442695
        %v3259 = vpow.pop %v3258
        %v3260 = vmul.f32 %v3221, 1.442695
        %v3261 = vpow.pop %v3260
        %v3262 = vmul.f32 %v3222, 1.442695
        %v3263 = vpow.pop %v3262
        %v3264 = vmul.f32 %v3223, 1.442695
        %v3265 = vpow.pop %v3264
        %v3266 = vmul.f32 %v3224, 1.442695
        %v3267 = vpow.pop %v3266
        %v3268 = vmul.f32 %v3225, 1.442695
        %v3269 = vpow.pop %v3268
        %v3270 = vmul.f32 %v3226, 1.442695
        %v3271 = vpow.pop %v3270
        %v3272 = vmul.f32 %v3227, 1.442695
        %v3273 = vpow.pop %v3272
        %v3274 = vmul.f32 %v3228, 1.442695
        %v3275 = vpow.pop %v3274
        %v3276 = vmul.f32 %v3229, 1.442695
        %v3277 = vpow.pop %v3276
        %v3278 = vmul.f32 %v3230, 1.442695
        %v3279 = vpow.pop %v3278
        %v3280 = vmul.f32 %v3231, 1.442695
        %v3281 = vpow.pop %v3280
        %v3282 = vmul.f32 %v3232, 1.442695
        %v3283 = vpow.pop %v3282
        %v3284 = vmul.f32 %v3233, 1.442695
        %v3285 = vpow.pop %v3284
        %v3286 = vmul.f32 %v3234, 1.442695
        %v3287 = vpow.pop %v3286
        %v3288 = vmul.f32 %v3235, 1.442695
        %v3289 = vpow.pop %v3288
        %v3290 = vmul.f32 %v3236, 1.442695
        %v3291 = vpow.pop %v3290
        %v3292 = vmul.f32 %v3237, 1.442695
        %v3293 = vpow.pop %v3292
        %v3294 = vmul.f32 %v3238, 1.442695
        %v3295 = vpow.pop %v3294
        %v3296 = vmul.f32 %v3239, 1.442695
        %v3297 = vpow.pop %v3296
        %v3298 = vmul.f32 %v3240, 1.442695
        %v3299 = vpow.pop %v3298
        %v3300 = vmul.f32 %v3241, 1.442695
        %v3301 = vpow.pop %v3300
        %v3302 = vmul.f32 %v3242, 1.442695
        %v3303 = vpow.pop %v3302
        %v3304 = vmul.f32 %v3243, 1.442695
        %v3305 = vpow.pop %v3304
        %v3306 = vmul.f32 %v3244, 1.442695
        %v3307 = vpow.pop %v3306
        %v3308 = vmul.f32 %v3245, 1.442695
        %v3309 = vpow.pop %v3308
        %v3310 = vsel %vm1893, %v3247, 0.0
        %3311 = vadd.xlane.f32.xlu0 %v3310
        %v3312 = vpop.xlane.xlu0 %3311
        %v3313 = vsel %vm1893, %v3249, 0.0
        %3314 = vadd.xlane.f32.xlu0 %v3313
        %v3315 = vpop.xlane.xlu0 %3314
        %v3316 = vsel %vm1893, %v3251, 0.0
        %3317 = vadd.xlane.f32.xlu0 %v3316
        %v3318 = vpop.xlane.xlu0 %3317
        %v3319 = vsel %vm1893, %v3253, 0.0
        %3320 = vadd.xlane.f32.xlu0 %v3319
        %v3321 = vpop.xlane.xlu0 %3320
        %v3322 = vsel %vm1893, %v3255, 0.0
        %3323 = vadd.xlane.f32.xlu0 %v3322
        %v3324 = vpop.xlane.xlu0 %3323
        %v3325 = vsel %vm1893, %v3257, 0.0
        %3326 = vadd.xlane.f32.xlu0 %v3325
        %v3327 = vpop.xlane.xlu0 %3326
        %v3328 = vsel %vm1893, %v3259, 0.0
        %3329 = vadd.xlane.f32.xlu0 %v3328
        %v3330 = vpop.xlane.xlu0 %3329
        %v3331 = vsel %vm1893, %v3261, 0.0
        %3332 = vadd.xlane.f32.xlu0 %v3331
        %v3333 = vpop.xlane.xlu0 %3332
        %v3334 = vsel %vm1893, %v3263, 0.0
        %3335 = vadd.xlane.f32.xlu0 %v3334
        %v3336 = vpop.xlane.xlu0 %3335
        %v3337 = vsel %vm1893, %v3265, 0.0
        %3338 = vadd.xlane.f32.xlu0 %v3337
        %v3339 = vpop.xlane.xlu0 %3338
        %v3340 = vsel %vm1893, %v3267, 0.0
        %3341 = vadd.xlane.f32.xlu0 %v3340
        %v3342 = vpop.xlane.xlu0 %3341
        %v3343 = vsel %vm1893, %v3269, 0.0
        %3344 = vadd.xlane.f32.xlu0 %v3343
        %v3345 = vpop.xlane.xlu0 %3344
        %v3346 = vsel %vm1893, %v3271, 0.0
        %3347 = vadd.xlane.f32.xlu0 %v3346
        %v3348 = vpop.xlane.xlu0 %3347
        %v3349 = vsel %vm1893, %v3273, 0.0
        %3350 = vadd.xlane.f32.xlu0 %v3349
        %v3351 = vpop.xlane.xlu0 %3350
        %v3352 = vsel %vm1893, %v3275, 0.0
        %3353 = vadd.xlane.f32.xlu0 %v3352
        %v3354 = vpop.xlane.xlu0 %3353
        %v3355 = vsel %vm1893, %v3277, 0.0
        %3356 = vadd.xlane.f32.xlu0 %v3355
        %v3357 = vpop.xlane.xlu0 %3356
        %v3358 = vsel %vm1893, %v3279, 0.0
        %3359 = vadd.xlane.f32.xlu0 %v3358
        %v3360 = vpop.xlane.xlu0 %3359
        %v3361 = vsel %vm1893, %v3281, 0.0
        %3362 = vadd.xlane.f32.xlu0 %v3361
        %v3363 = vpop.xlane.xlu0 %3362
        %v3364 = vsel %vm1893, %v3283, 0.0
        %3365 = vadd.xlane.f32.xlu0 %v3364
        %v3366 = vpop.xlane.xlu0 %3365
        %v3367 = vsel %vm1893, %v3285, 0.0
        %3368 = vadd.xlane.f32.xlu0 %v3367
        %v3369 = vpop.xlane.xlu0 %3368
        %v3370 = vsel %vm1893, %v3287, 0.0
        %3371 = vadd.xlane.f32.xlu0 %v3370
        %v3372 = vpop.xlane.xlu0 %3371
        %v3373 = vsel %vm1893, %v3289, 0.0
        %3374 = vadd.xlane.f32.xlu0 %v3373
        %v3375 = vpop.xlane.xlu0 %3374
        %v3376 = vsel %vm1893, %v3291, 0.0
        %3377 = vadd.xlane.f32.xlu0 %v3376
        %v3378 = vpop.xlane.xlu0 %3377
        %v3379 = vsel %vm1893, %v3293, 0.0
        %3380 = vadd.xlane.f32.xlu0 %v3379
        %v3381 = vpop.xlane.xlu0 %3380
        %v3382 = vsel %vm1893, %v3295, 0.0
        %3383 = vadd.xlane.f32.xlu0 %v3382
        %v3384 = vpop.xlane.xlu0 %3383
        %v3385 = vsel %vm1893, %v3297, 0.0
        %3386 = vadd.xlane.f32.xlu0 %v3385
        %v3387 = vpop.xlane.xlu0 %3386
        %v3388 = vsel %vm1893, %v3299, 0.0
        %3389 = vadd.xlane.f32.xlu0 %v3388
        %v3390 = vpop.xlane.xlu0 %3389
        %v3391 = vsel %vm1893, %v3301, 0.0
        %3392 = vadd.xlane.f32.xlu0 %v3391
        %v3393 = vpop.xlane.xlu0 %3392
        %v3394 = vsel %vm1893, %v3303, 0.0
        %3395 = vadd.xlane.f32.xlu0 %v3394
        %v3396 = vpop.xlane.xlu0 %3395
        %v3397 = vsel %vm1893, %v3305, 0.0
        %3398 = vadd.xlane.f32.xlu0 %v3397
        %v3399 = vpop.xlane.xlu0 %3398
        %v3400 = vsel %vm1893, %v3307, 0.0
        %3401 = vadd.xlane.f32.xlu0 %v3400
        %v3402 = vpop.xlane.xlu0 %3401
        %v3403 = vsel %vm1893, %v3309, 0.0
        %3404 = vadd.xlane.f32.xlu0 %v3403
        %v3405 = vpop.xlane.xlu0 %3404
        %v3406 = vrcp.pop %v3312
        %v3407 = vrcp.pop %v3315
        %v3408 = vrcp.pop %v3318
        %v3409 = vrcp.pop %v3321
        %v3410 = vrcp.pop %v3324
        %v3411 = vrcp.pop %v3327
        %v3412 = vrcp.pop %v3330
        %v3413 = vrcp.pop %v3333
        %v3414 = vrcp.pop %v3336
        %v3415 = vrcp.pop %v3339
        %v3416 = vrcp.pop %v3342
        %v3417 = vrcp.pop %v3345
        %v3418 = vrcp.pop %v3348
        %v3419 = vrcp.pop %v3351
        %v3420 = vrcp.pop %v3354
        %v3421 = vrcp.pop %v3357
        %v3422 = vrcp.pop %v3360
        %v3423 = vrcp.pop %v3363
        %v3424 = vrcp.pop %v3366
        %v3425 = vrcp.pop %v3369
        %v3426 = vrcp.pop %v3372
        %v3427 = vrcp.pop %v3375
        %v3428 = vrcp.pop %v3378
        %v3429 = vrcp.pop %v3381
        %v3430 = vrcp.pop %v3384
        %v3431 = vrcp.pop %v3387
        %v3432 = vrcp.pop %v3390
        %v3433 = vrcp.pop %v3393
        %v3434 = vrcp.pop %v3396
        %v3435 = vrcp.pop %v3399
        %v3436 = vrcp.pop %v3402
        %v3437 = vrcp.pop %v3405
        %v3438 = vmul.f32 %v3247, %v3406
        %v3439 = vmul.f32 %v3249, %v3407
        %v3440 = vmul.f32 %v3251, %v3408
        %v3441 = vmul.f32 %v3253, %v3409
        %v3442 = vmul.f32 %v3255, %v3410
        %v3443 = vmul.f32 %v3257, %v3411
        %v3444 = vmul.f32 %v3259, %v3412
        %v3445 = vmul.f32 %v3261, %v3413
        %v3446 = vmul.f32 %v3263, %v3414
        %v3447 = vmul.f32 %v3265, %v3415
        %v3448 = vmul.f32 %v3267, %v3416
        %v3449 = vmul.f32 %v3269, %v3417
        %v3450 = vmul.f32 %v3271, %v3418
        %v3451 = vmul.f32 %v3273, %v3419
        %v3452 = vmul.f32 %v3275, %v3420
        %v3453 = vmul.f32 %v3277, %v3421
        %v3454 = vmul.f32 %v3279, %v3422
        %v3455 = vmul.f32 %v3281, %v3423
        %v3456 = vmul.f32 %v3283, %v3424
        %v3457 = vmul.f32 %v3285, %v3425
        %v3458 = vmul.f32 %v3287, %v3426
        %v3459 = vmul.f32 %v3289, %v3427
        %v3460 = vmul.f32 %v3291, %v3428
        %v3461 = vmul.f32 %v3293, %v3429
        %v3462 = vmul.f32 %v3295, %v3430
        %v3463 = vmul.f32 %v3297, %v3431
        %v3464 = vmul.f32 %v3299, %v3432
        %v3465 = vmul.f32 %v3301, %v3433
        %v3466 = vmul.f32 %v3303, %v3434
        %v3467 = vmul.f32 %v3305, %v3435
        %v3468 = vmul.f32 %v3307, %v3436
        %v3469 = vmul.f32 %v3309, %v3437
        %v3470 = vpack.c.bf16 %v3438, %v3438
        %v3471 = vpack.c.bf16 %v3439, %v3439
        %v3472 = vpack.c.bf16 %v3440, %v3440
        %v3473 = vpack.c.bf16 %v3441, %v3441
        %v3474 = vpack.c.bf16 %v3442, %v3442
        %v3475 = vpack.c.bf16 %v3443, %v3443
        %v3476 = vpack.c.bf16 %v3444, %v3444
        %v3477 = vpack.c.bf16 %v3445, %v3445
        %v3478 = vpack.c.bf16 %v3446, %v3446
        %v3479 = vpack.c.bf16 %v3447, %v3447
        %v3480 = vpack.c.bf16 %v3448, %v3448
        %v3481 = vpack.c.bf16 %v3449, %v3449
        %v3482 = vpack.c.bf16 %v3450, %v3450
        %v3483 = vpack.c.bf16 %v3451, %v3451
        %v3484 = vpack.c.bf16 %v3452, %v3452
        %v3485 = vpack.c.bf16 %v3453, %v3453
        %v3486 = vpack.c.bf16 %v3454, %v3454
        %v3487 = vpack.c.bf16 %v3455, %v3455
        %v3488 = vpack.c.bf16 %v3456, %v3456
        %v3489 = vpack.c.bf16 %v3457, %v3457
        %v3490 = vpack.c.bf16 %v3458, %v3458
        %v3491 = vpack.c.bf16 %v3459, %v3459
        %v3492 = vpack.c.bf16 %v3460, %v3460
        %v3493 = vpack.c.bf16 %v3461, %v3461
        %v3494 = vpack.c.bf16 %v3462, %v3462
        %v3495 = vpack.c.bf16 %v3463, %v3463
        %v3496 = vpack.c.bf16 %v3464, %v3464
        %v3497 = vpack.c.bf16 %v3465, %v3465
        %v3498 = vpack.c.bf16 %v3466, %v3466
        %v3499 = vpack.c.bf16 %v3467, %v3467
        %v3500 = vpack.c.bf16 %v3468, %v3468
        %v3501 = vpack.c.bf16 %v3469, %v3469
        %v3510 = vunpack.c.l.b16 %v3470
        %v3511 = vunpack.c.l.b16 %v3471
        %v3512 = vunpack.c.l.b16 %v3472
        %v3513 = vunpack.c.l.b16 %v3473
        %v3514 = vunpack.c.l.b16 %v3474
        %v3515 = vunpack.c.l.b16 %v3475
        %v3516 = vunpack.c.l.b16 %v3476
        %v3517 = vunpack.c.l.b16 %v3477
        %v3518 = vpack.c.b16 %v3511, %v3510
        %v3519 = vpack.c.b16 %v3513, %v3512
        %v3520 = vpack.c.b16 %v3515, %v3514
        %v3521 = vpack.c.b16 %v3517, %v3516
        %v3530 = vunpack.c.l.b16 %v2778
        %v3531 = vunpack.c.l.b16 %v2779
        %v3532 = vunpack.c.l.b16 %v2780
        %v3533 = vunpack.c.l.b16 %v2781
        %v3534 = vunpack.c.l.b16 %v2782
        %v3535 = vunpack.c.l.b16 %v2783
        %v3536 = vunpack.c.l.b16 %v2784
        %v3537 = vunpack.c.l.b16 %v2785
        %v3538 = vpack.c.b16 %v3531, %v3530
        %v3539 = vpack.c.b16 %v3533, %v3532
        %v3540 = vpack.c.b16 %v3535, %v3534
        %v3541 = vpack.c.b16 %v3537, %v3536
        %v3547 = vsel %vm1893, %v3518, 0
        %v3550 = vsel %vm1893, %v3519, 0
        %v3553 = vsel %vm1893, %v3520, 0
        %v3556 = vsel %vm1893, %v3521, 0
        %3558 = vmatpush.bf16.msra.mxu0 0
        %3559 = vmatpush.bf16.msra.mxu0 0
        %3560 = vmatpush.bf16.msra.mxu0 0
        %3561 = vmatpush.bf16.msra.mxu0 0
        %3562 = vmatpush.bf16.msra.mxu0 %v3541
        %3563 = vmatpush.bf16.msra.mxu0 %v3540
        %3564 = vmatpush.bf16.msra.mxu0 %v3539
        %3565 = vmatpush.bf16.msra.mxu0 %v3538
        %3566 = vmatmul.bf16.gmra.mxu0 %v3547
        %v3567 = vpop.f32.mrf.mxu0
        %v3568 = vadd.f32 0.0, %v3567
        %v3569 = vpop.f32.mrf.mxu0
        %v3570 = vadd.f32 0.0, %v3569
        %3571 = vmatmul.bf16.gmra.mxu0 %v3550
        %v3572 = vpop.f32.mrf.mxu0
        %v3573 = vadd.f32 0.0, %v3572
        %v3574 = vpop.f32.mrf.mxu0
        %v3575 = vadd.f32 0.0, %v3574
        %3576 = vmatmul.bf16.gmra.mxu0 %v3553
        %v3577 = vpop.f32.mrf.mxu0
        %v3578 = vadd.f32 0.0, %v3577
        %v3579 = vpop.f32.mrf.mxu0
        %v3580 = vadd.f32 0.0, %v3579
        %3581 = vmatmul.bf16.gmra.mxu0 %v3556
        %v3582 = vpop.f32.mrf.mxu0
        %v3583 = vadd.f32 0.0, %v3582
        %v3584 = vpop.f32.mrf.mxu0
        %v3585 = vadd.f32 0.0, %v3584
        %3586 = vdwg.mxu0
        %v3595 = vunpack.c.l.b16 %v3478
        %v3596 = vunpack.c.l.b16 %v3479
        %v3597 = vunpack.c.l.b16 %v3480
        %v3598 = vunpack.c.l.b16 %v3481
        %v3599 = vunpack.c.l.b16 %v3482
        %v3600 = vunpack.c.l.b16 %v3483
        %v3601 = vunpack.c.l.b16 %v3484
        %v3602 = vunpack.c.l.b16 %v3485
        %v3603 = vpack.c.b16 %v3596, %v3595
        %v3604 = vpack.c.b16 %v3598, %v3597
        %v3605 = vpack.c.b16 %v3600, %v3599
        %v3606 = vpack.c.b16 %v3602, %v3601
        %v3615 = vunpack.c.l.b16 %v2786
        %v3616 = vunpack.c.l.b16 %v2787
        %v3617 = vunpack.c.l.b16 %v2788
        %v3618 = vunpack.c.l.b16 %v2789
        %v3619 = vunpack.c.l.b16 %v2790
        %v3620 = vunpack.c.l.b16 %v2791
        %v3621 = vunpack.c.l.b16 %v2792
        %v3622 = vunpack.c.l.b16 %v2793
        %v3623 = vpack.c.b16 %v3616, %v3615
        %v3624 = vpack.c.b16 %v3618, %v3617
        %v3625 = vpack.c.b16 %v3620, %v3619
        %v3626 = vpack.c.b16 %v3622, %v3621
        %v3632 = vsel %vm1893, %v3603, 0
        %v3635 = vsel %vm1893, %v3604, 0
        %v3638 = vsel %vm1893, %v3605, 0
        %v3641 = vsel %vm1893, %v3606, 0
        %3643 = vmatpush.bf16.msra.mxu0 0
        %3644 = vmatpush.bf16.msra.mxu0 0
        %3645 = vmatpush.bf16.msra.mxu0 0
        %3646 = vmatpush.bf16.msra.mxu0 0
        %3647 = vmatpush.bf16.msra.mxu0 %v3626
        %3648 = vmatpush.bf16.msra.mxu0 %v3625
        %3649 = vmatpush.bf16.msra.mxu0 %v3624
        %3650 = vmatpush.bf16.msra.mxu0 %v3623
        %3651 = vmatmul.bf16.gmra.mxu0 %v3632
        %v3652 = vpop.f32.mrf.mxu0
        %v3653 = vadd.f32 0.0, %v3652
        %v3654 = vpop.f32.mrf.mxu0
        %v3655 = vadd.f32 0.0, %v3654
        %3656 = vmatmul.bf16.gmra.mxu0 %v3635
        %v3657 = vpop.f32.mrf.mxu0
        %v3658 = vadd.f32 0.0, %v3657
        %v3659 = vpop.f32.mrf.mxu0
        %v3660 = vadd.f32 0.0, %v3659
        %3661 = vmatmul.bf16.gmra.mxu0 %v3638
        %v3662 = vpop.f32.mrf.mxu0
        %v3663 = vadd.f32 0.0, %v3662
        %v3664 = vpop.f32.mrf.mxu0
        %v3665 = vadd.f32 0.0, %v3664
        %3666 = vmatmul.bf16.gmra.mxu0 %v3641
        %v3667 = vpop.f32.mrf.mxu0
        %v3668 = vadd.f32 0.0, %v3667
        %v3669 = vpop.f32.mrf.mxu0
        %v3670 = vadd.f32 0.0, %v3669
        %3671 = vdwg.mxu0
        %v3680 = vunpack.c.l.b16 %v3486
        %v3681 = vunpack.c.l.b16 %v3487
        %v3682 = vunpack.c.l.b16 %v3488
        %v3683 = vunpack.c.l.b16 %v3489
        %v3684 = vunpack.c.l.b16 %v3490
        %v3685 = vunpack.c.l.b16 %v3491
        %v3686 = vunpack.c.l.b16 %v3492
        %v3687 = vunpack.c.l.b16 %v3493
        %v3688 = vpack.c.b16 %v3681, %v3680
        %v3689 = vpack.c.b16 %v3683, %v3682
        %v3690 = vpack.c.b16 %v3685, %v3684
        %v3691 = vpack.c.b16 %v3687, %v3686
        %v3700 = vunpack.c.l.b16 %v2794
        %v3701 = vunpack.c.l.b16 %v2795
        %v3702 = vunpack.c.l.b16 %v2796
        %v3703 = vunpack.c.l.b16 %v2797
        %v3704 = vunpack.c.l.b16 %v2798
        %v3705 = vunpack.c.l.b16 %v2799
        %v3706 = vunpack.c.l.b16 %v2800
        %v3707 = vunpack.c.l.b16 %v2801
        %v3708 = vpack.c.b16 %v3701, %v3700
        %v3709 = vpack.c.b16 %v3703, %v3702
        %v3710 = vpack.c.b16 %v3705, %v3704
        %v3711 = vpack.c.b16 %v3707, %v3706
        %v3717 = vsel %vm1893, %v3688, 0
        %v3720 = vsel %vm1893, %v3689, 0
        %v3723 = vsel %vm1893, %v3690, 0
        %v3726 = vsel %vm1893, %v3691, 0
        %3728 = vmatpush.bf16.msra.mxu0 0
        %3729 = vmatpush.bf16.msra.mxu0 0
        %3730 = vmatpush.bf16.msra.mxu0 0
        %3731 = vmatpush.bf16.msra.mxu0 0
        %3732 = vmatpush.bf16.msra.mxu0 %v3711
        %3733 = vmatpush.bf16.msra.mxu0 %v3710
        %3734 = vmatpush.bf16.msra.mxu0 %v3709
        %3735 = vmatpush.bf16.msra.mxu0 %v3708
        %3736 = vmatmul.bf16.gmra.mxu0 %v3717
        %v3737 = vpop.f32.mrf.mxu0
        %v3738 = vadd.f32 0.0, %v3737
        %v3739 = vpop.f32.mrf.mxu0
        %v3740 = vadd.f32 0.0, %v3739
        %3741 = vmatmul.bf16.gmra.mxu0 %v3720
        %v3742 = vpop.f32.mrf.mxu0
        %v3743 = vadd.f32 0.0, %v3742
        %v3744 = vpop.f32.mrf.mxu0
        %v3745 = vadd.f32 0.0, %v3744
        %3746 = vmatmul.bf16.gmra.mxu0 %v3723
        %v3747 = vpop.f32.mrf.mxu0
        %v3748 = vadd.f32 0.0, %v3747
        %v3749 = vpop.f32.mrf.mxu0
        %v3750 = vadd.f32 0.0, %v3749
        %3751 = vmatmul.bf16.gmra.mxu0 %v3726
        %v3752 = vpop.f32.mrf.mxu0
        %v3753 = vadd.f32 0.0, %v3752
        %v3754 = vpop.f32.mrf.mxu0
        %v3755 = vadd.f32 0.0, %v3754
        %3756 = vdwg.mxu0
        %v3765 = vunpack.c.l.b16 %v3494
        %v3766 = vunpack.c.l.b16 %v3495
        %v3767 = vunpack.c.l.b16 %v3496
        %v3768 = vunpack.c.l.b16 %v3497
        %v3769 = vunpack.c.l.b16 %v3498
        %v3770 = vunpack.c.l.b16 %v3499
        %v3771 = vunpack.c.l.b16 %v3500
        %v3772 = vunpack.c.l.b16 %v3501
        %v3773 = vpack.c.b16 %v3766, %v3765
        %v3774 = vpack.c.b16 %v3768, %v3767
        %v3775 = vpack.c.b16 %v3770, %v3769
        %v3776 = vpack.c.b16 %v3772, %v3771
        %v3785 = vunpack.c.l.b16 %v2802
        %v3786 = vunpack.c.l.b16 %v2803
        %v3787 = vunpack.c.l.b16 %v2804
        %v3788 = vunpack.c.l.b16 %v2805
        %v3789 = vunpack.c.l.b16 %v2806
        %v3790 = vunpack.c.l.b16 %v2807
        %v3791 = vunpack.c.l.b16 %v2808
        %v3792 = vunpack.c.l.b16 %v2809
        %v3793 = vpack.c.b16 %v3786, %v3785
        %v3794 = vpack.c.b16 %v3788, %v3787
        %v3795 = vpack.c.b16 %v3790, %v3789
        %v3796 = vpack.c.b16 %v3792, %v3791
        %v3802 = vsel %vm1893, %v3773, 0
        %v3805 = vsel %vm1893, %v3774, 0
        %v3808 = vsel %vm1893, %v3775, 0
        %v3811 = vsel %vm1893, %v3776, 0
        %3813 = vmatpush.bf16.msra.mxu0 0
        %3814 = vmatpush.bf16.msra.mxu0 0
        %3815 = vmatpush.bf16.msra.mxu0 0
        %3816 = vmatpush.bf16.msra.mxu0 0
        %3817 = vmatpush.bf16.msra.mxu0 %v3796
        %3818 = vmatpush.bf16.msra.mxu0 %v3795
        %3819 = vmatpush.bf16.msra.mxu0 %v3794
        %3820 = vmatpush.bf16.msra.mxu0 %v3793
        %3821 = vmatmul.bf16.gmra.mxu0 %v3802
        %v3822 = vpop.f32.mrf.mxu0
        %v3823 = vadd.f32 0.0, %v3822
        %v3824 = vpop.f32.mrf.mxu0
        %v3825 = vadd.f32 0.0, %v3824
        %3826 = vmatmul.bf16.gmra.mxu0 %v3805
        %v3827 = vpop.f32.mrf.mxu0
        %v3828 = vadd.f32 0.0, %v3827
        %v3829 = vpop.f32.mrf.mxu0
        %v3830 = vadd.f32 0.0, %v3829
        %3831 = vmatmul.bf16.gmra.mxu0 %v3808
        %v3832 = vpop.f32.mrf.mxu0
        %v3833 = vadd.f32 0.0, %v3832
        %v3834 = vpop.f32.mrf.mxu0
        %v3835 = vadd.f32 0.0, %v3834
        %3836 = vmatmul.bf16.gmra.mxu0 %v3811
        %v3837 = vpop.f32.mrf.mxu0
        %v3838 = vadd.f32 0.0, %v3837
        %v3839 = vpop.f32.mrf.mxu0
        %v3840 = vadd.f32 0.0, %v3839
        %3841 = vdwg.mxu0
        %v3842 = vpack.c.bf16 %v3568, %v3568
        %v3843 = vpack.c.bf16 %v3570, %v3570
        %v3844 = vpack.c.bf16 %v3573, %v3573
        %v3845 = vpack.c.bf16 %v3575, %v3575
        %v3846 = vpack.c.bf16 %v3578, %v3578
        %v3847 = vpack.c.bf16 %v3580, %v3580
        %v3848 = vpack.c.bf16 %v3583, %v3583
        %v3849 = vpack.c.bf16 %v3585, %v3585
        %v3850 = vpack.c.bf16 %v3653, %v3653
        %v3851 = vpack.c.bf16 %v3655, %v3655
        %v3852 = vpack.c.bf16 %v3658, %v3658
        %v3853 = vpack.c.bf16 %v3660, %v3660
        %v3854 = vpack.c.bf16 %v3663, %v3663
        %v3855 = vpack.c.bf16 %v3665, %v3665
        %v3856 = vpack.c.bf16 %v3668, %v3668
        %v3857 = vpack.c.bf16 %v3670, %v3670
        %v3858 = vpack.c.bf16 %v3738, %v3738
        %v3859 = vpack.c.bf16 %v3740, %v3740
        %v3860 = vpack.c.bf16 %v3743, %v3743
        %v3861 = vpack.c.bf16 %v3745, %v3745
        %v3862 = vpack.c.bf16 %v3748, %v3748
        %v3863 = vpack.c.bf16 %v3750, %v3750
        %v3864 = vpack.c.bf16 %v3753, %v3753
        %v3865 = vpack.c.bf16 %v3755, %v3755
        %v3866 = vpack.c.bf16 %v3823, %v3823
        %v3867 = vpack.c.bf16 %v3825, %v3825
        %v3868 = vpack.c.bf16 %v3828, %v3828
        %v3869 = vpack.c.bf16 %v3830, %v3830
        %v3870 = vpack.c.bf16 %v3833, %v3833
        %v3871 = vpack.c.bf16 %v3835, %v3835
        %v3872 = vpack.c.bf16 %v3838, %v3838
        %v3873 = vpack.c.bf16 %v3840, %v3840
        %3874 = vst [vmem:[#allocation3 + $0x4] sm:$0xf] %v3842
        %3875 = vst [vmem:[#allocation3 + $0xc] sm:$0xf] %v3843
        %3876 = vst [vmem:[#allocation3 + $0x14] sm:$0xf] %v3844
        %3877 = vst [vmem:[#allocation3 + $0x1c] sm:$0xf] %v3845
        %3878 = vst [vmem:[#allocation3 + $0x24] sm:$0xf] %v3846
        %3879 = vst [vmem:[#allocation3 + $0x2c] sm:$0xf] %v3847
        %3880 = vst [vmem:[#allocation3 + $0x34] sm:$0xf] %v3848
        %3881 = vst [vmem:[#allocation3 + $0x3c] sm:$0xf] %v3849
        %3882 = vst [vmem:[#allocation3 + $0x44] sm:$0xf] %v3850
        %3883 = vst [vmem:[#allocation3 + $0x4c] sm:$0xf] %v3851
        %3884 = vst [vmem:[#allocation3 + $0x54] sm:$0xf] %v3852
        %3885 = vst [vmem:[#allocation3 + $0x5c] sm:$0xf] %v3853
        %3886 = vst [vmem:[#allocation3 + $0x64] sm:$0xf] %v3854
        %3887 = vst [vmem:[#allocation3 + $0x6c] sm:$0xf] %v3855
        %3888 = vst [vmem:[#allocation3 + $0x74] sm:$0xf] %v3856
        %3889 = vst [vmem:[#allocation3 + $0x7c] sm:$0xf] %v3857
        %3890 = vst [vmem:[#allocation3 + $0x84] sm:$0xf] %v3858
        %3891 = vst [vmem:[#allocation3 + $0x8c] sm:$0xf] %v3859
        %3892 = vst [vmem:[#allocation3 + $0x94] sm:$0xf] %v3860
        %3893 = vst [vmem:[#allocation3 + $0x9c] sm:$0xf] %v3861
        %3894 = vst [vmem:[#allocation3 + $0xa4] sm:$0xf] %v3862
        %3895 = vst [vmem:[#allocation3 + $0xac] sm:$0xf] %v3863
        %3896 = vst [vmem:[#allocation3 + $0xb4] sm:$0xf] %v3864
        %3897 = vst [vmem:[#allocation3 + $0xbc] sm:$0xf] %v3865
        %3898 = vst [vmem:[#allocation3 + $0xc4] sm:$0xf] %v3866
        %3899 = vst [vmem:[#allocation3 + $0xcc] sm:$0xf] %v3867
        %3900 = vst [vmem:[#allocation3 + $0xd4] sm:$0xf] %v3868
        %3901 = vst [vmem:[#allocation3 + $0xdc] sm:$0xf] %v3869
        %3902 = vst [vmem:[#allocation3 + $0xe4] sm:$0xf] %v3870
        %3903 = vst [vmem:[#allocation3 + $0xec] sm:$0xf] %v3871
        %3904 = vst [vmem:[#allocation3 + $0xf4] sm:$0xf] %v3872
        %3905 = vst [vmem:[#allocation3 + $0xfc] sm:$0xf] %v3873
        %v3906 = vld [vmem:[#allocation3] sm:$0xff]
        %v3907 = vld [vmem:[#allocation3 + $0x8] sm:$0xff]
        %v3908 = vld [vmem:[#allocation3 + $0x10] sm:$0xff]
        %v3909 = vld [vmem:[#allocation3 + $0x18] sm:$0xff]
        %v3910 = vld [vmem:[#allocation3 + $0x20] sm:$0xff]
        %v3911 = vld [vmem:[#allocation3 + $0x28] sm:$0xff]
        %v3912 = vld [vmem:[#allocation3 + $0x30] sm:$0xff]
        %v3913 = vld [vmem:[#allocation3 + $0x38] sm:$0xff]
        %v3914 = vld [vmem:[#allocation3 + $0x40] sm:$0xff]
        %v3915 = vld [vmem:[#allocation3 + $0x48] sm:$0xff]
        %v3916 = vld [vmem:[#allocation3 + $0x50] sm:$0xff]
        %v3917 = vld [vmem:[#allocation3 + $0x58] sm:$0xff]
        %v3918 = vld [vmem:[#allocation3 + $0x60] sm:$0xff]
        %v3919 = vld [vmem:[#allocation3 + $0x68] sm:$0xff]
        %v3920 = vld [vmem:[#allocation3 + $0x70] sm:$0xff]
        %v3921 = vld [vmem:[#allocation3 + $0x78] sm:$0xff]
        %v3922 = vld [vmem:[#allocation3 + $0x80] sm:$0xff]
        %v3923 = vld [vmem:[#allocation3 + $0x88] sm:$0xff]
        %v3924 = vld [vmem:[#allocation3 + $0x90] sm:$0xff]
        %v3925 = vld [vmem:[#allocation3 + $0x98] sm:$0xff]
        %v3926 = vld [vmem:[#allocation3 + $0xa0] sm:$0xff]
        %v3927 = vld [vmem:[#allocation3 + $0xa8] sm:$0xff]
        %v3928 = vld [vmem:[#allocation3 + $0xb0] sm:$0xff]
        %v3929 = vld [vmem:[#allocation3 + $0xb8] sm:$0xff]
        %v3930 = vld [vmem:[#allocation3 + $0xc0] sm:$0xff]
        %v3931 = vld [vmem:[#allocation3 + $0xc8] sm:$0xff]
        %v3932 = vld [vmem:[#allocation3 + $0xd0] sm:$0xff]
        %v3933 = vld [vmem:[#allocation3 + $0xd8] sm:$0xff]
        %v3934 = vld [vmem:[#allocation3 + $0xe0] sm:$0xff]
        %v3935 = vld [vmem:[#allocation3 + $0xe8] sm:$0xff]
        %v3936 = vld [vmem:[#allocation3 + $0xf0] sm:$0xff]
        %v3937 = vld [vmem:[#allocation3 + $0xf8] sm:$0xff]
        %v3938 = vld [vmem:[%s386] sm:$0xf]
        %v3939 = vld [vmem:[%s386 + $0x4] sm:$0xf]
        %v3940 = vld [vmem:[%s386 + $0x8] sm:$0xf]
        %v3941 = vld [vmem:[%s386 + $0xc] sm:$0xf]
        %v3942 = vld [vmem:[%s386 + $0x10] sm:$0xf]
        %v3943 = vld [vmem:[%s386 + $0x14] sm:$0xf]
        %v3944 = vld [vmem:[%s386 + $0x18] sm:$0xf]
        %v3945 = vld [vmem:[%s386 + $0x1c] sm:$0xf]
        %v3946 = vld [vmem:[%s386 + $0x20] sm:$0xf]
        %v3947 = vld [vmem:[%s386 + $0x24] sm:$0xf]
        %v3948 = vld [vmem:[%s386 + $0x28] sm:$0xf]
        %v3949 = vld [vmem:[%s386 + $0x2c] sm:$0xf]
        %v3950 = vld [vmem:[%s386 + $0x30] sm:$0xf]
        %v3951 = vld [vmem:[%s386 + $0x34] sm:$0xf]
        %v3952 = vld [vmem:[%s386 + $0x38] sm:$0xf]
        %v3953 = vld [vmem:[%s386 + $0x3c] sm:$0xf]
        %v3954 = vld [vmem:[%s386 + $0x40] sm:$0xf]
        %v3955 = vld [vmem:[%s386 + $0x44] sm:$0xf]
        %v3956 = vld [vmem:[%s386 + $0x48] sm:$0xf]
        %v3957 = vld [vmem:[%s386 + $0x4c] sm:$0xf]
        %v3958 = vld [vmem:[%s386 + $0x50] sm:$0xf]
        %v3959 = vld [vmem:[%s386 + $0x54] sm:$0xf]
        %v3960 = vld [vmem:[%s386 + $0x58] sm:$0xf]
        %v3961 = vld [vmem:[%s386 + $0x5c] sm:$0xf]
        %v3962 = vld [vmem:[%s386 + $0x60] sm:$0xf]
        %v3963 = vld [vmem:[%s386 + $0x64] sm:$0xf]
        %v3964 = vld [vmem:[%s386 + $0x68] sm:$0xf]
        %v3965 = vld [vmem:[%s386 + $0x6c] sm:$0xf]
        %v3966 = vld [vmem:[%s386 + $0x70] sm:$0xf]
        %v3967 = vld [vmem:[%s386 + $0x74] sm:$0xf]
        %v3968 = vld [vmem:[%s386 + $0x78] sm:$0xf]
        %v3969 = vld [vmem:[%s386 + $0x7c] sm:$0xf]
        %v3970 = vperm.slane %v599, 0
        %v4003 = vunpack.c.l.b16 %v3906
        %v4004 = vunpack.c.h.b16 %v3906
        %v4005 = vunpack.c.l.b16 %v3907
        %v4006 = vunpack.c.h.b16 %v3907
        %v4007 = vunpack.c.l.b16 %v3908
        %v4008 = vunpack.c.h.b16 %v3908
        %v4009 = vunpack.c.l.b16 %v3909
        %v4010 = vunpack.c.h.b16 %v3909
        %v4011 = vunpack.c.l.b16 %v3910
        %v4012 = vunpack.c.h.b16 %v3910
        %v4013 = vunpack.c.l.b16 %v3911
        %v4014 = vunpack.c.h.b16 %v3911
        %v4015 = vunpack.c.l.b16 %v3912
        %v4016 = vunpack.c.h.b16 %v3912
        %v4017 = vunpack.c.l.b16 %v3913
        %v4018 = vunpack.c.h.b16 %v3913
        %v4019 = vunpack.c.l.b16 %v3914
        %v4020 = vunpack.c.h.b16 %v3914
        %v4021 = vunpack.c.l.b16 %v3915
        %v4022 = vunpack.c.h.b16 %v3915
        %v4023 = vunpack.c.l.b16 %v3916
        %v4024 = vunpack.c.h.b16 %v3916
        %v4025 = vunpack.c.l.b16 %v3917
        %v4026 = vunpack.c.h.b16 %v3917
        %v4027 = vunpack.c.l.b16 %v3918
        %v4028 = vunpack.c.h.b16 %v3918
        %v4029 = vunpack.c.l.b16 %v3919
        %v4030 = vunpack.c.h.b16 %v3919
        %v4031 = vunpack.c.l.b16 %v3920
        %v4032 = vunpack.c.h.b16 %v3920
        %v4033 = vunpack.c.l.b16 %v3921
        %v4034 = vunpack.c.h.b16 %v3921
        %v4035 = vunpack.c.l.b16 %v3922
        %v4036 = vunpack.c.h.b16 %v3922
        %v4037 = vunpack.c.l.b16 %v3923
        %v4038 = vunpack.c.h.b16 %v3923
        %v4039 = vunpack.c.l.b16 %v3924
        %v4040 = vunpack.c.h.b16 %v3924
        %v4041 = vunpack.c.l.b16 %v3925
        %v4042 = vunpack.c.h.b16 %v3925
        %v4043 = vunpack.c.l.b16 %v3926
        %v4044 = vunpack.c.h.b16 %v3926
        %v4045 = vunpack.c.l.b16 %v3927
        %v4046 = vunpack.c.h.b16 %v3927
        %v4047 = vunpack.c.l.b16 %v3928
        %v4048 = vunpack.c.h.b16 %v3928
        %v4049 = vunpack.c.l.b16 %v3929
        %v4050 = vunpack.c.h.b16 %v3929
        %v4051 = vunpack.c.l.b16 %v3930
        %v4052 = vunpack.c.h.b16 %v3930
        %v4053 = vunpack.c.l.b16 %v3931
        %v4054 = vunpack.c.h.b16 %v3931
        %v4055 = vunpack.c.l.b16 %v3932
        %v4056 = vunpack.c.h.b16 %v3932
        %v4057 = vunpack.c.l.b16 %v3933
        %v4058 = vunpack.c.h.b16 %v3933
        %v4059 = vunpack.c.l.b16 %v3934
        %v4060 = vunpack.c.h.b16 %v3934
        %v4061 = vunpack.c.l.b16 %v3935
        %v4062 = vunpack.c.h.b16 %v3935
        %v4063 = vunpack.c.l.b16 %v3936
        %v4064 = vunpack.c.h.b16 %v3936
        %v4065 = vunpack.c.l.b16 %v3937
        %v4066 = vunpack.c.h.b16 %v3937
        %v4067 = vpack.c.b16 %v4005, %v4003
        %v4068 = vpack.c.b16 %v4006, %v4004
        %v4069 = vpack.c.b16 %v4009, %v4007
        %v4070 = vpack.c.b16 %v4010, %v4008
        %v4071 = vpack.c.b16 %v4013, %v4011
        %v4072 = vpack.c.b16 %v4014, %v4012
        %v4073 = vpack.c.b16 %v4017, %v4015
        %v4074 = vpack.c.b16 %v4018, %v4016
        %v4075 = vpack.c.b16 %v4021, %v4019
        %v4076 = vpack.c.b16 %v4022, %v4020
        %v4077 = vpack.c.b16 %v4025, %v4023
        %v4078 = vpack.c.b16 %v4026, %v4024
        %v4079 = vpack.c.b16 %v4029, %v4027
        %v4080 = vpack.c.b16 %v4030, %v4028
        %v4081 = vpack.c.b16 %v4033, %v4031
        %v4082 = vpack.c.b16 %v4034, %v4032
        %v4083 = vpack.c.b16 %v4037, %v4035
        %v4084 = vpack.c.b16 %v4038, %v4036
        %v4085 = vpack.c.b16 %v4041, %v4039
        %v4086 = vpack.c.b16 %v4042, %v4040
        %v4087 = vpack.c.b16 %v4045, %v4043
        %v4088 = vpack.c.b16 %v4046, %v4044
        %v4089 = vpack.c.b16 %v4049, %v4047
        %v4090 = vpack.c.b16 %v4050, %v4048
        %v4091 = vpack.c.b16 %v4053, %v4051
        %v4092 = vpack.c.b16 %v4054, %v4052
        %v4093 = vpack.c.b16 %v4057, %v4055
        %v4094 = vpack.c.b16 %v4058, %v4056
        %v4095 = vpack.c.b16 %v4061, %v4059
        %v4096 = vpack.c.b16 %v4062, %v4060
        %v4097 = vpack.c.b16 %v4065, %v4063
        %v4098 = vpack.c.b16 %v4066, %v4064
        %v4163 = vunpack.c.l.b16 %v3938
        %v4164 = vunpack.c.l.b16 %v3939
        %v4165 = vunpack.c.l.b16 %v3940
        %v4166 = vunpack.c.l.b16 %v3941
        %v4167 = vunpack.c.l.b16 %v3942
        %v4168 = vunpack.c.l.b16 %v3943
        %v4169 = vunpack.c.l.b16 %v3944
        %v4170 = vunpack.c.l.b16 %v3945
        %v4171 = vunpack.c.l.b16 %v3946
        %v4172 = vunpack.c.l.b16 %v3947
        %v4173 = vunpack.c.l.b16 %v3948
        %v4174 = vunpack.c.l.b16 %v3949
        %v4175 = vunpack.c.l.b16 %v3950
        %v4176 = vunpack.c.l.b16 %v3951
        %v4177 = vunpack.c.l.b16 %v3952
        %v4178 = vunpack.c.l.b16 %v3953
        %v4179 = vunpack.c.l.b16 %v3954
        %v4180 = vunpack.c.l.b16 %v3955
        %v4181 = vunpack.c.l.b16 %v3956
        %v4182 = vunpack.c.l.b16 %v3957
        %v4183 = vunpack.c.l.b16 %v3958
        %v4184 = vunpack.c.l.b16 %v3959
        %v4185 = vunpack.c.l.b16 %v3960
        %v4186 = vunpack.c.l.b16 %v3961
        %v4187 = vunpack.c.l.b16 %v3962
        %v4188 = vunpack.c.l.b16 %v3963
        %v4189 = vunpack.c.l.b16 %v3964
        %v4190 = vunpack.c.l.b16 %v3965
        %v4191 = vunpack.c.l.b16 %v3966
        %v4192 = vunpack.c.l.b16 %v3967
        %v4193 = vunpack.c.l.b16 %v3968
        %v4194 = vunpack.c.l.b16 %v3969
        %v4195 = vpack.c.b16 %v4164, %v4163
        %v4196 = vpack.c.b16 %v4166, %v4165
        %v4197 = vpack.c.b16 %v4168, %v4167
        %v4198 = vpack.c.b16 %v4170, %v4169
        %v4199 = vpack.c.b16 %v4172, %v4171
        %v4200 = vpack.c.b16 %v4174, %v4173
        %v4201 = vpack.c.b16 %v4176, %v4175
        %v4202 = vpack.c.b16 %v4178, %v4177
        %v4203 = vpack.c.b16 %v4180, %v4179
        %v4204 = vpack.c.b16 %v4182, %v4181
        %v4205 = vpack.c.b16 %v4184, %v4183
        %v4206 = vpack.c.b16 %v4186, %v4185
        %v4207 = vpack.c.b16 %v4188, %v4187
        %v4208 = vpack.c.b16 %v4190, %v4189
        %v4209 = vpack.c.b16 %v4192, %v4191
        %v4210 = vpack.c.b16 %v4194, %v4193
        %4227 = vmatpush.bf16.msra.mxu0 %v4202
        %4228 = vmatpush.bf16.msra.mxu0 %v4201
        %4229 = vmatpush.bf16.msra.mxu0 %v4200
        %4230 = vmatpush.bf16.msra.mxu0 %v4199
        %4231 = vmatpush.bf16.msra.mxu0 %v4198
        %4232 = vmatpush.bf16.msra.mxu0 %v4197
        %4233 = vmatpush.bf16.msra.mxu0 %v4196
        %4234 = vmatpush.bf16.msra.mxu0 %v4195
        %4235 = vmatmul.bf16.gmra.mxu0 %v4067
        %v4236 = vpop.f32.mrf.mxu0
        %v4237 = vadd.f32 %v3970, %v4236
        %v4238 = vpop.f32.mrf.mxu0
        %v4239 = vadd.f32 %v3970, %v4238
        %4240 = vmatmul.bf16.gmra.mxu0 %v4069
        %v4241 = vpop.f32.mrf.mxu0
        %v4242 = vadd.f32 %v3970, %v4241
        %v4243 = vpop.f32.mrf.mxu0
        %v4244 = vadd.f32 %v3970, %v4243
        %4245 = vmatmul.bf16.gmra.mxu0 %v4071
        %v4246 = vpop.f32.mrf.mxu0
        %v4247 = vadd.f32 %v3970, %v4246
        %v4248 = vpop.f32.mrf.mxu0
        %v4249 = vadd.f32 %v3970, %v4248
        %4250 = vmatmul.bf16.gmra.mxu0 %v4073
        %v4251 = vpop.f32.mrf.mxu0
        %v4252 = vadd.f32 %v3970, %v4251
        %v4253 = vpop.f32.mrf.mxu0
        %v4254 = vadd.f32 %v3970, %v4253
        %4255 = vmatmul.bf16.gmra.mxu0 %v4075
        %v4256 = vpop.f32.mrf.mxu0
        %v4257 = vadd.f32 %v3970, %v4256
        %v4258 = vpop.f32.mrf.mxu0
        %v4259 = vadd.f32 %v3970, %v4258
        %4260 = vmatmul.bf16.gmra.mxu0 %v4077
        %v4261 = vpop.f32.mrf.mxu0
        %v4262 = vadd.f32 %v3970, %v4261
        %v4263 = vpop.f32.mrf.mxu0
        %v4264 = vadd.f32 %v3970, %v4263
        %4265 = vmatmul.bf16.gmra.mxu0 %v4079
        %v4266 = vpop.f32.mrf.mxu0
        %v4267 = vadd.f32 %v3970, %v4266
        %v4268 = vpop.f32.mrf.mxu0
        %v4269 = vadd.f32 %v3970, %v4268
        %4270 = vmatmul.bf16.gmra.mxu0 %v4081
        %v4271 = vpop.f32.mrf.mxu0
        %v4272 = vadd.f32 %v3970, %v4271
        %v4273 = vpop.f32.mrf.mxu0
        %v4274 = vadd.f32 %v3970, %v4273
        %4275 = vmatmul.bf16.gmra.mxu0 %v4083
        %v4276 = vpop.f32.mrf.mxu0
        %v4277 = vadd.f32 %v3970, %v4276
        %v4278 = vpop.f32.mrf.mxu0
        %v4279 = vadd.f32 %v3970, %v4278
        %4280 = vmatmul.bf16.gmra.mxu0 %v4085
        %v4281 = vpop.f32.mrf.mxu0
        %v4282 = vadd.f32 %v3970, %v4281
        %v4283 = vpop.f32.mrf.mxu0
        %v4284 = vadd.f32 %v3970, %v4283
        %4285 = vmatmul.bf16.gmra.mxu0 %v4087
        %v4286 = vpop.f32.mrf.mxu0
        %v4287 = vadd.f32 %v3970, %v4286
        %v4288 = vpop.f32.mrf.mxu0
        %v4289 = vadd.f32 %v3970, %v4288
        %4290 = vmatmul.bf16.gmra.mxu0 %v4089
        %v4291 = vpop.f32.mrf.mxu0
        %v4292 = vadd.f32 %v3970, %v4291
        %v4293 = vpop.f32.mrf.mxu0
        %v4294 = vadd.f32 %v3970, %v4293
        %4295 = vmatmul.bf16.gmra.mxu0 %v4091
        %v4296 = vpop.f32.mrf.mxu0
        %v4297 = vadd.f32 %v3970, %v4296
        %v4298 = vpop.f32.mrf.mxu0
        %v4299 = vadd.f32 %v3970, %v4298
        %4300 = vmatmul.bf16.gmra.mxu0 %v4093
        %v4301 = vpop.f32.mrf.mxu0
        %v4302 = vadd.f32 %v3970, %v4301
        %v4303 = vpop.f32.mrf.mxu0
        %v4304 = vadd.f32 %v3970, %v4303
        %4305 = vmatmul.bf16.gmra.mxu0 %v4095
        %v4306 = vpop.f32.mrf.mxu0
        %v4307 = vadd.f32 %v3970, %v4306
        %v4308 = vpop.f32.mrf.mxu0
        %v4309 = vadd.f32 %v3970, %v4308
        %4310 = vmatmul.bf16.gmra.mxu0 %v4097
        %v4311 = vpop.f32.mrf.mxu0
        %v4312 = vadd.f32 %v3970, %v4311
        %v4313 = vpop.f32.mrf.mxu0
        %v4314 = vadd.f32 %v3970, %v4313
        %4315 = vdwg.mxu0
        %4316 = vmatpush.bf16.msra.mxu0 %v4210
        %4317 = vmatpush.bf16.msra.mxu0 %v4209
        %4318 = vmatpush.bf16.msra.mxu0 %v4208
        %4319 = vmatpush.bf16.msra.mxu0 %v4207
        %4320 = vmatpush.bf16.msra.mxu0 %v4206
        %4321 = vmatpush.bf16.msra.mxu0 %v4205
        %4322 = vmatpush.bf16.msra.mxu0 %v4204
        %4323 = vmatpush.bf16.msra.mxu0 %v4203
        %4324 = vmatmul.bf16.gmra.mxu0 %v4068
        %v4325 = vpop.f32.mrf.mxu0
        %v4326 = vadd.f32 %v4237, %v4325
        %v4327 = vpop.f32.mrf.mxu0
        %v4328 = vadd.f32 %v4239, %v4327
        %4329 = vmatmul.bf16.gmra.mxu0 %v4070
        %v4330 = vpop.f32.mrf.mxu0
        %v4331 = vadd.f32 %v4242, %v4330
        %v4332 = vpop.f32.mrf.mxu0
        %v4333 = vadd.f32 %v4244, %v4332
        %4334 = vmatmul.bf16.gmra.mxu0 %v4072
        %v4335 = vpop.f32.mrf.mxu0
        %v4336 = vadd.f32 %v4247, %v4335
        %v4337 = vpop.f32.mrf.mxu0
        %v4338 = vadd.f32 %v4249, %v4337
        %4339 = vmatmul.bf16.gmra.mxu0 %v4074
        %v4340 = vpop.f32.mrf.mxu0
        %v4341 = vadd.f32 %v4252, %v4340
        %v4342 = vpop.f32.mrf.mxu0
        %v4343 = vadd.f32 %v4254, %v4342
        %4344 = vmatmul.bf16.gmra.mxu0 %v4076
        %v4345 = vpop.f32.mrf.mxu0
        %v4346 = vadd.f32 %v4257, %v4345
        %v4347 = vpop.f32.mrf.mxu0
        %v4348 = vadd.f32 %v4259, %v4347
        %4349 = vmatmul.bf16.gmra.mxu0 %v4078
        %v4350 = vpop.f32.mrf.mxu0
        %v4351 = vadd.f32 %v4262, %v4350
        %v4352 = vpop.f32.mrf.mxu0
        %v4353 = vadd.f32 %v4264, %v4352
        %4354 = vmatmul.bf16.gmra.mxu0 %v4080
        %v4355 = vpop.f32.mrf.mxu0
        %v4356 = vadd.f32 %v4267, %v4355
        %v4357 = vpop.f32.mrf.mxu0
        %v4358 = vadd.f32 %v4269, %v4357
        %4359 = vmatmul.bf16.gmra.mxu0 %v4082
        %v4360 = vpop.f32.mrf.mxu0
        %v4361 = vadd.f32 %v4272, %v4360
        %v4362 = vpop.f32.mrf.mxu0
        %v4363 = vadd.f32 %v4274, %v4362
        %4364 = vmatmul.bf16.gmra.mxu0 %v4084
        %v4365 = vpop.f32.mrf.mxu0
        %v4366 = vadd.f32 %v4277, %v4365
        %v4367 = vpop.f32.mrf.mxu0
        %v4368 = vadd.f32 %v4279, %v4367
        %4369 = vmatmul.bf16.gmra.mxu0 %v4086
        %v4370 = vpop.f32.mrf.mxu0
        %v4371 = vadd.f32 %v4282, %v4370
        %v4372 = vpop.f32.mrf.mxu0
        %v4373 = vadd.f32 %v4284, %v4372
        %4374 = vmatmul.bf16.gmra.mxu0 %v4088
        %v4375 = vpop.f32.mrf.mxu0
        %v4376 = vadd.f32 %v4287, %v4375
        %v4377 = vpop.f32.mrf.mxu0
        %v4378 = vadd.f32 %v4289, %v4377
        %4379 = vmatmul.bf16.gmra.mxu0 %v4090
        %v4380 = vpop.f32.mrf.mxu0
        %v4381 = vadd.f32 %v4292, %v4380
        %v4382 = vpop.f32.mrf.mxu0
        %v4383 = vadd.f32 %v4294, %v4382
        %4384 = vmatmul.bf16.gmra.mxu0 %v4092
        %v4385 = vpop.f32.mrf.mxu0
        %v4386 = vadd.f32 %v4297, %v4385
        %v4387 = vpop.f32.mrf.mxu0
        %v4388 = vadd.f32 %v4299, %v4387
        %4389 = vmatmul.bf16.gmra.mxu0 %v4094
        %v4390 = vpop.f32.mrf.mxu0
        %v4391 = vadd.f32 %v4302, %v4390
        %v4392 = vpop.f32.mrf.mxu0
        %v4393 = vadd.f32 %v4304, %v4392
        %4394 = vmatmul.bf16.gmra.mxu0 %v4096
        %v4395 = vpop.f32.mrf.mxu0
        %v4396 = vadd.f32 %v4307, %v4395
        %v4397 = vpop.f32.mrf.mxu0
        %v4398 = vadd.f32 %v4309, %v4397
        %4399 = vmatmul.bf16.gmra.mxu0 %v4098
        %v4400 = vpop.f32.mrf.mxu0
        %v4401 = vadd.f32 %v4312, %v4400
        %v4402 = vpop.f32.mrf.mxu0
        %v4403 = vadd.f32 %v4314, %v4402
        %4404 = vdwg.mxu0
        %v4405 = vadd.f32 %v4326, %v567
        %v4406 = vadd.f32 %v4328, %v568
        %v4407 = vadd.f32 %v4331, %v569
        %v4408 = vadd.f32 %v4333, %v570
        %v4409 = vadd.f32 %v4336, %v571
        %v4410 = vadd.f32 %v4338, %v572
        %v4411 = vadd.f32 %v4341, %v573
        %v4412 = vadd.f32 %v4343, %v574
        %v4413 = vadd.f32 %v4346, %v575
        %v4414 = vadd.f32 %v4348, %v576
        %v4415 = vadd.f32 %v4351, %v577
        %v4416 = vadd.f32 %v4353, %v578
        %v4417 = vadd.f32 %v4356, %v579
        %v4418 = vadd.f32 %v4358, %v580
        %v4419 = vadd.f32 %v4361, %v581
        %v4420 = vadd.f32 %v4363, %v582
        %v4421 = vadd.f32 %v4366, %v583
        %v4422 = vadd.f32 %v4368, %v584
        %v4423 = vadd.f32 %v4371, %v585
        %v4424 = vadd.f32 %v4373, %v586
        %v4425 = vadd.f32 %v4376, %v587
        %v4426 = vadd.f32 %v4378, %v588
        %v4427 = vadd.f32 %v4381, %v589
        %v4428 = vadd.f32 %v4383, %v590
        %v4429 = vadd.f32 %v4386, %v591
        %v4430 = vadd.f32 %v4388, %v592
        %v4431 = vadd.f32 %v4391, %v593
        %v4432 = vadd.f32 %v4393, %v594
        %v4433 = vadd.f32 %v4396, %v595
        %v4434 = vadd.f32 %v4398, %v596
        %v4435 = vadd.f32 %v4401, %v597
        %v4436 = vadd.f32 %v4403, %v598
        %4437 = vadd.xlane.f32.xlu0 %v4405
        %v4438 = vpop.xlane.xlu0 %4437
        %4439 = vadd.xlane.f32.xlu0 %v4406
        %v4440 = vpop.xlane.xlu0 %4439
        %4441 = vadd.xlane.f32.xlu0 %v4407
        %v4442 = vpop.xlane.xlu0 %4441
        %4443 = vadd.xlane.f32.xlu0 %v4408
        %v4444 = vpop.xlane.xlu0 %4443
        %4445 = vadd.xlane.f32.xlu0 %v4409
        %v4446 = vpop.xlane.xlu0 %4445
        %4447 = vadd.xlane.f32.xlu0 %v4410
        %v4448 = vpop.xlane.xlu0 %4447
        %4449 = vadd.xlane.f32.xlu0 %v4411
        %v4450 = vpop.xlane.xlu0 %4449
        %4451 = vadd.xlane.f32.xlu0 %v4412
        %v4452 = vpop.xlane.xlu0 %4451
        %4453 = vadd.xlane.f32.xlu0 %v4413
        %v4454 = vpop.xlane.xlu0 %4453
        %4455 = vadd.xlane.f32.xlu0 %v4414
        %v4456 = vpop.xlane.xlu0 %4455
        %4457 = vadd.xlane.f32.xlu0 %v4415
        %v4458 = vpop.xlane.xlu0 %4457
        %4459 = vadd.xlane.f32.xlu0 %v4416
        %v4460 = vpop.xlane.xlu0 %4459
        %4461 = vadd.xlane.f32.xlu0 %v4417
        %v4462 = vpop.xlane.xlu0 %4461
        %4463 = vadd.xlane.f32.xlu0 %v4418
        %v4464 = vpop.xlane.xlu0 %4463
        %4465 = vadd.xlane.f32.xlu0 %v4419
        %v4466 = vpop.xlane.xlu0 %4465
        %4467 = vadd.xlane.f32.xlu0 %v4420
        %v4468 = vpop.xlane.xlu0 %4467
        %4469 = vadd.xlane.f32.xlu0 %v4421
        %v4470 = vpop.xlane.xlu0 %4469
        %4471 = vadd.xlane.f32.xlu0 %v4422
        %v4472 = vpop.xlane.xlu0 %4471
        %4473 = vadd.xlane.f32.xlu0 %v4423
        %v4474 = vpop.xlane.xlu0 %4473
        %4475 = vadd.xlane.f32.xlu0 %v4424
        %v4476 = vpop.xlane.xlu0 %4475
        %4477 = vadd.xlane.f32.xlu0 %v4425
        %v4478 = vpop.xlane.xlu0 %4477
        %4479 = vadd.xlane.f32.xlu0 %v4426
        %v4480 = vpop.xlane.xlu0 %4479
        %4481 = vadd.xlane.f32.xlu0 %v4427
        %v4482 = vpop.xlane.xlu0 %4481
        %4483 = vadd.xlane.f32.xlu0 %v4428
        %v4484 = vpop.xlane.xlu0 %4483
        %4485 = vadd.xlane.f32.xlu0 %v4429
        %v4486 = vpop.xlane.xlu0 %4485
        %4487 = vadd.xlane.f32.xlu0 %v4430
        %v4488 = vpop.xlane.xlu0 %4487
        %4489 = vadd.xlane.f32.xlu0 %v4431
        %v4490 = vpop.xlane.xlu0 %4489
        %4491 = vadd.xlane.f32.xlu0 %v4432
        %v4492 = vpop.xlane.xlu0 %4491
        %4493 = vadd.xlane.f32.xlu0 %v4433
        %v4494 = vpop.xlane.xlu0 %4493
        %4495 = vadd.xlane.f32.xlu0 %v4434
        %v4496 = vpop.xlane.xlu0 %4495
        %4497 = vadd.xlane.f32.xlu0 %v4435
        %v4498 = vpop.xlane.xlu0 %4497
        %4499 = vadd.xlane.f32.xlu0 %v4436
        %v4500 = vpop.xlane.xlu0 %4499
        %v4501 = vmul.f32 %v4438, 0.03125
        %v4502 = vmul.f32 %v4440, 0.03125
        %v4503 = vmul.f32 %v4442, 0.03125
        %v4504 = vmul.f32 %v4444, 0.03125
        %v4505 = vmul.f32 %v4446, 0.03125
        %v4506 = vmul.f32 %v4448, 0.03125
        %v4507 = vmul.f32 %v4450, 0.03125
        %v4508 = vmul.f32 %v4452, 0.03125
        %v4509 = vmul.f32 %v4454, 0.03125
        %v4510 = vmul.f32 %v4456, 0.03125
        %v4511 = vmul.f32 %v4458, 0.03125
        %v4512 = vmul.f32 %v4460, 0.03125
        %v4513 = vmul.f32 %v4462, 0.03125
        %v4514 = vmul.f32 %v4464, 0.03125
        %v4515 = vmul.f32 %v4466, 0.03125
        %v4516 = vmul.f32 %v4468, 0.03125
        %v4517 = vmul.f32 %v4470, 0.03125
        %v4518 = vmul.f32 %v4472, 0.03125
        %v4519 = vmul.f32 %v4474, 0.03125
        %v4520 = vmul.f32 %v4476, 0.03125
        %v4521 = vmul.f32 %v4478, 0.03125
        %v4522 = vmul.f32 %v4480, 0.03125
        %v4523 = vmul.f32 %v4482, 0.03125
        %v4524 = vmul.f32 %v4484, 0.03125
        %v4525 = vmul.f32 %v4486, 0.03125
        %v4526 = vmul.f32 %v4488, 0.03125
        %v4527 = vmul.f32 %v4490, 0.03125
        %v4528 = vmul.f32 %v4492, 0.03125
        %v4529 = vmul.f32 %v4494, 0.03125
        %v4530 = vmul.f32 %v4496, 0.03125
        %v4531 = vmul.f32 %v4498, 0.03125
        %v4532 = vmul.f32 %v4500, 0.03125
        %v4533 = vsub.f32 %v4405, %v4501
        %v4534 = vsub.f32 %v4406, %v4502
        %v4535 = vsub.f32 %v4407, %v4503
        %v4536 = vsub.f32 %v4408, %v4504
        %v4537 = vsub.f32 %v4409, %v4505
        %v4538 = vsub.f32 %v4410, %v4506
        %v4539 = vsub.f32 %v4411, %v4507
        %v4540 = vsub.f32 %v4412, %v4508
        %v4541 = vsub.f32 %v4413, %v4509
        %v4542 = vsub.f32 %v4414, %v4510
        %v4543 = vsub.f32 %v4415, %v4511
        %v4544 = vsub.f32 %v4416, %v4512
        %v4545 = vsub.f32 %v4417, %v4513
        %v4546 = vsub.f32 %v4418, %v4514
        %v4547 = vsub.f32 %v4419, %v4515
        %v4548 = vsub.f32 %v4420, %v4516
        %v4549 = vsub.f32 %v4421, %v4517
        %v4550 = vsub.f32 %v4422, %v4518
        %v4551 = vsub.f32 %v4423, %v4519
        %v4552 = vsub.f32 %v4424, %v4520
        %v4553 = vsub.f32 %v4425, %v4521
        %v4554 = vsub.f32 %v4426, %v4522
        %v4555 = vsub.f32 %v4427, %v4523
        %v4556 = vsub.f32 %v4428, %v4524
        %v4557 = vsub.f32 %v4429, %v4525
        %v4558 = vsub.f32 %v4430, %v4526
        %v4559 = vsub.f32 %v4431, %v4527
        %v4560 = vsub.f32 %v4432, %v4528
        %v4561 = vsub.f32 %v4433, %v4529
        %v4562 = vsub.f32 %v4434, %v4530
        %v4563 = vsub.f32 %v4435, %v4531
        %v4564 = vsub.f32 %v4436, %v4532
        %v4565 = vmul.f32 %v4533, %v604
        %v4566 = vmul.f32 %v4534, %v604
        %v4567 = vmul.f32 %v4535, %v604
        %v4568 = vmul.f32 %v4536, %v604
        %v4569 = vmul.f32 %v4537, %v604
        %v4570 = vmul.f32 %v4538, %v604
        %v4571 = vmul.f32 %v4539, %v604
        %v4572 = vmul.f32 %v4540, %v604
        %v4573 = vmul.f32 %v4541, %v604
        %v4574 = vmul.f32 %v4542, %v604
        %v4575 = vmul.f32 %v4543, %v604
        %v4576 = vmul.f32 %v4544, %v604
        %v4577 = vmul.f32 %v4545, %v604
        %v4578 = vmul.f32 %v4546, %v604
        %v4579 = vmul.f32 %v4547, %v604
        %v4580 = vmul.f32 %v4548, %v604
        %v4581 = vmul.f32 %v4549, %v604
        %v4582 = vmul.f32 %v4550, %v604
        %v4583 = vmul.f32 %v4551, %v604
        %v4584 = vmul.f32 %v4552, %v604
        %v4585 = vmul.f32 %v4553, %v604
        %v4586 = vmul.f32 %v4554, %v604
        %v4587 = vmul.f32 %v4555, %v604
        %v4588 = vmul.f32 %v4556, %v604
        %v4589 = vmul.f32 %v4557, %v604
        %v4590 = vmul.f32 %v4558, %v604
        %v4591 = vmul.f32 %v4559, %v604
        %v4592 = vmul.f32 %v4560, %v604
        %v4593 = vmul.f32 %v4561, %v604
        %v4594 = vmul.f32 %v4562, %v604
        %v4595 = vmul.f32 %v4563, %v604
        %v4596 = vmul.f32 %v4564, %v604
        %v4597 = vmul.f32 %v4565, %v4565
        %v4598 = vmul.f32 %v4566, %v4566
        %v4599 = vmul.f32 %v4567, %v4567
        %v4600 = vmul.f32 %v4568, %v4568
        %v4601 = vmul.f32 %v4569, %v4569
        %v4602 = vmul.f32 %v4570, %v4570
        %v4603 = vmul.f32 %v4571, %v4571
        %v4604 = vmul.f32 %v4572, %v4572
        %v4605 = vmul.f32 %v4573, %v4573
        %v4606 = vmul.f32 %v4574, %v4574
        %v4607 = vmul.f32 %v4575, %v4575
        %v4608 = vmul.f32 %v4576, %v4576
        %v4609 = vmul.f32 %v4577, %v4577
        %v4610 = vmul.f32 %v4578, %v4578
        %v4611 = vmul.f32 %v4579, %v4579
        %v4612 = vmul.f32 %v4580, %v4580
        %v4613 = vmul.f32 %v4581, %v4581
        %v4614 = vmul.f32 %v4582, %v4582
        %v4615 = vmul.f32 %v4583, %v4583
        %v4616 = vmul.f32 %v4584, %v4584
        %v4617 = vmul.f32 %v4585, %v4585
        %v4618 = vmul.f32 %v4586, %v4586
        %v4619 = vmul.f32 %v4587, %v4587
        %v4620 = vmul.f32 %v4588, %v4588
        %v4621 = vmul.f32 %v4589, %v4589
        %v4622 = vmul.f32 %v4590, %v4590
        %v4623 = vmul.f32 %v4591, %v4591
        %v4624 = vmul.f32 %v4592, %v4592
        %v4625 = vmul.f32 %v4593, %v4593
        %v4626 = vmul.f32 %v4594, %v4594
        %v4627 = vmul.f32 %v4595, %v4595
        %v4628 = vmul.f32 %v4596, %v4596
        %4629 = vadd.xlane.f32.xlu0 %v4597
        %v4630 = vpop.xlane.xlu0 %4629
        %4631 = vadd.xlane.f32.xlu0 %v4598
        %v4632 = vpop.xlane.xlu0 %4631
        %4633 = vadd.xlane.f32.xlu0 %v4599
        %v4634 = vpop.xlane.xlu0 %4633
        %4635 = vadd.xlane.f32.xlu0 %v4600
        %v4636 = vpop.xlane.xlu0 %4635
        %4637 = vadd.xlane.f32.xlu0 %v4601
        %v4638 = vpop.xlane.xlu0 %4637
        %4639 = vadd.xlane.f32.xlu0 %v4602
        %v4640 = vpop.xlane.xlu0 %4639
        %4641 = vadd.xlane.f32.xlu0 %v4603
        %v4642 = vpop.xlane.xlu0 %4641
        %4643 = vadd.xlane.f32.xlu0 %v4604
        %v4644 = vpop.xlane.xlu0 %4643
        %4645 = vadd.xlane.f32.xlu0 %v4605
        %v4646 = vpop.xlane.xlu0 %4645
        %4647 = vadd.xlane.f32.xlu0 %v4606
        %v4648 = vpop.xlane.xlu0 %4647
        %4649 = vadd.xlane.f32.xlu0 %v4607
        %v4650 = vpop.xlane.xlu0 %4649
        %4651 = vadd.xlane.f32.xlu0 %v4608
        %v4652 = vpop.xlane.xlu0 %4651
        %4653 = vadd.xlane.f32.xlu0 %v4609
        %v4654 = vpop.xlane.xlu0 %4653
        %4655 = vadd.xlane.f32.xlu0 %v4610
        %v4656 = vpop.xlane.xlu0 %4655
        %4657 = vadd.xlane.f32.xlu0 %v4611
        %v4658 = vpop.xlane.xlu0 %4657
        %4659 = vadd.xlane.f32.xlu0 %v4612
        %v4660 = vpop.xlane.xlu0 %4659
        %4661 = vadd.xlane.f32.xlu0 %v4613
        %v4662 = vpop.xlane.xlu0 %4661
        %4663 = vadd.xlane.f32.xlu0 %v4614
        %v4664 = vpop.xlane.xlu0 %4663
        %4665 = vadd.xlane.f32.xlu0 %v4615
        %v4666 = vpop.xlane.xlu0 %4665
        %4667 = vadd.xlane.f32.xlu0 %v4616
        %v4668 = vpop.xlane.xlu0 %4667
        %4669 = vadd.xlane.f32.xlu0 %v4617
        %v4670 = vpop.xlane.xlu0 %4669
        %4671 = vadd.xlane.f32.xlu0 %v4618
        %v4672 = vpop.xlane.xlu0 %4671
        %4673 = vadd.xlane.f32.xlu0 %v4619
        %v4674 = vpop.xlane.xlu0 %4673
        %4675 = vadd.xlane.f32.xlu0 %v4620
        %v4676 = vpop.xlane.xlu0 %4675
        %4677 = vadd.xlane.f32.xlu0 %v4621
        %v4678 = vpop.xlane.xlu0 %4677
        %4679 = vadd.xlane.f32.xlu0 %v4622
        %v4680 = vpop.xlane.xlu0 %4679
        %4681 = vadd.xlane.f32.xlu0 %v4623
        %v4682 = vpop.xlane.xlu0 %4681
        %4683 = vadd.xlane.f32.xlu0 %v4624
        %v4684 = vpop.xlane.xlu0 %4683
        %4685 = vadd.xlane.f32.xlu0 %v4625
        %v4686 = vpop.xlane.xlu0 %4685
        %4687 = vadd.xlane.f32.xlu0 %v4626
        %v4688 = vpop.xlane.xlu0 %4687
        %4689 = vadd.xlane.f32.xlu0 %v4627
        %v4690 = vpop.xlane.xlu0 %4689
        %4691 = vadd.xlane.f32.xlu0 %v4628
        %v4692 = vpop.xlane.xlu0 %4691
        %v4693 = vmul.f32 %v4630, 0.03125
        %v4694 = vmul.f32 %v4632, 0.03125
        %v4695 = vmul.f32 %v4634, 0.03125
        %v4696 = vmul.f32 %v4636, 0.03125
        %v4697 = vmul.f32 %v4638, 0.03125
        %v4698 = vmul.f32 %v4640, 0.03125
        %v4699 = vmul.f32 %v4642, 0.03125
        %v4700 = vmul.f32 %v4644, 0.03125
        %v4701 = vmul.f32 %v4646, 0.03125
        %v4702 = vmul.f32 %v4648, 0.03125
        %v4703 = vmul.f32 %v4650, 0.03125
        %v4704 = vmul.f32 %v4652, 0.03125
        %v4705 = vmul.f32 %v4654, 0.03125
        %v4706 = vmul.f32 %v4656, 0.03125
        %v4707 = vmul.f32 %v4658, 0.03125
        %v4708 = vmul.f32 %v4660, 0.03125
        %v4709 = vmul.f32 %v4662, 0.03125
        %v4710 = vmul.f32 %v4664, 0.03125
        %v4711 = vmul.f32 %v4666, 0.03125
        %v4712 = vmul.f32 %v4668, 0.03125
        %v4713 = vmul.f32 %v4670, 0.03125
        %v4714 = vmul.f32 %v4672, 0.03125
        %v4715 = vmul.f32 %v4674, 0.03125
        %v4716 = vmul.f32 %v4676, 0.03125
        %v4717 = vmul.f32 %v4678, 0.03125
        %v4718 = vmul.f32 %v4680, 0.03125
        %v4719 = vmul.f32 %v4682, 0.03125
        %v4720 = vmul.f32 %v4684, 0.03125
        %v4721 = vmul.f32 %v4686, 0.03125
        %v4722 = vmul.f32 %v4688, 0.03125
        %v4723 = vmul.f32 %v4690, 0.03125
        %v4724 = vmul.f32 %v4692, 0.03125
        %v4725 = vadd.f32 %v4693, 1e-05
        %v4726 = vadd.f32 %v4694, 1e-05
        %v4727 = vadd.f32 %v4695, 1e-05
        %v4728 = vadd.f32 %v4696, 1e-05
        %v4729 = vadd.f32 %v4697, 1e-05
        %v4730 = vadd.f32 %v4698, 1e-05
        %v4731 = vadd.f32 %v4699, 1e-05
        %v4732 = vadd.f32 %v4700, 1e-05
        %v4733 = vadd.f32 %v4701, 1e-05
        %v4734 = vadd.f32 %v4702, 1e-05
        %v4735 = vadd.f32 %v4703, 1e-05
        %v4736 = vadd.f32 %v4704, 1e-05
        %v4737 = vadd.f32 %v4705, 1e-05
        %v4738 = vadd.f32 %v4706, 1e-05
        %v4739 = vadd.f32 %v4707, 1e-05
        %v4740 = vadd.f32 %v4708, 1e-05
        %v4741 = vadd.f32 %v4709, 1e-05
        %v4742 = vadd.f32 %v4710, 1e-05
        %v4743 = vadd.f32 %v4711, 1e-05
        %v4744 = vadd.f32 %v4712, 1e-05
        %v4745 = vadd.f32 %v4713, 1e-05
        %v4746 = vadd.f32 %v4714, 1e-05
        %v4747 = vadd.f32 %v4715, 1e-05
        %v4748 = vadd.f32 %v4716, 1e-05
        %v4749 = vadd.f32 %v4717, 1e-05
        %v4750 = vadd.f32 %v4718, 1e-05
        %v4751 = vadd.f32 %v4719, 1e-05
        %v4752 = vadd.f32 %v4720, 1e-05
        %v4753 = vadd.f32 %v4721, 1e-05
        %v4754 = vadd.f32 %v4722, 1e-05
        %v4755 = vadd.f32 %v4723, 1e-05
        %v4756 = vadd.f32 %v4724, 1e-05
        %v4757 = vrsqrt.pop %v4725
        %v4758 = vmul.f32 %v4757, %v4725
        %v4759 = vmul.f32 %v4758, %v4757
        %v4760 = vmul.f32 0.5, %v4759
        %v4761 = vsub.f32 1.5, %v4760
        %v4762 = vmul.f32 %v4757, %v4761
        %vm4763 = vweird.f32 %v4725
        %vm4764 = vweird.f32 %v4757
        %vm4765 = vmor %vm4763, %vm4764
        %v4766 = vsel %vm4765, %v4757, %v4762
        %v4767 = vrsqrt.pop %v4726
        %v4768 = vmul.f32 %v4767, %v4726
        %v4769 = vmul.f32 %v4768, %v4767
        %v4770 = vmul.f32 0.5, %v4769
        %v4771 = vsub.f32 1.5, %v4770
        %v4772 = vmul.f32 %v4767, %v4771
        %vm4773 = vweird.f32 %v4726
        %vm4774 = vweird.f32 %v4767
        %vm4775 = vmor %vm4773, %vm4774
        %v4776 = vsel %vm4775, %v4767, %v4772
        %v4777 = vrsqrt.pop %v4727
        %v4778 = vmul.f32 %v4777, %v4727
        %v4779 = vmul.f32 %v4778, %v4777
        %v4780 = vmul.f32 0.5, %v4779
        %v4781 = vsub.f32 1.5, %v4780
        %v4782 = vmul.f32 %v4777, %v4781
        %vm4783 = vweird.f32 %v4727
        %vm4784 = vweird.f32 %v4777
        %vm4785 = vmor %vm4783, %vm4784
        %v4786 = vsel %vm4785, %v4777, %v4782
        %v4787 = vrsqrt.pop %v4728
        %v4788 = vmul.f32 %v4787, %v4728
        %v4789 = vmul.f32 %v4788, %v4787
        %v4790 = vmul.f32 0.5, %v4789
        %v4791 = vsub.f32 1.5, %v4790
        %v4792 = vmul.f32 %v4787, %v4791
        %vm4793 = vweird.f32 %v4728
        %vm4794 = vweird.f32 %v4787
        %vm4795 = vmor %vm4793, %vm4794
        %v4796 = vsel %vm4795, %v4787, %v4792
        %v4797 = vrsqrt.pop %v4729
        %v4798 = vmul.f32 %v4797, %v4729
        %v4799 = vmul.f32 %v4798, %v4797
        %v4800 = vmul.f32 0.5, %v4799
        %v4801 = vsub.f32 1.5, %v4800
        %v4802 = vmul.f32 %v4797, %v4801
        %vm4803 = vweird.f32 %v4729
        %vm4804 = vweird.f32 %v4797
        %vm4805 = vmor %vm4803, %vm4804
        %v4806 = vsel %vm4805, %v4797, %v4802
        %v4807 = vrsqrt.pop %v4730
        %v4808 = vmul.f32 %v4807, %v4730
        %v4809 = vmul.f32 %v4808, %v4807
        %v4810 = vmul.f32 0.5, %v4809
        %v4811 = vsub.f32 1.5, %v4810
        %v4812 = vmul.f32 %v4807, %v4811
        %vm4813 = vweird.f32 %v4730
        %vm4814 = vweird.f32 %v4807
        %vm4815 = vmor %vm4813, %vm4814
        %v4816 = vsel %vm4815, %v4807, %v4812
        %v4817 = vrsqrt.pop %v4731
        %v4818 = vmul.f32 %v4817, %v4731
        %v4819 = vmul.f32 %v4818, %v4817
        %v4820 = vmul.f32 0.5, %v4819
        %v4821 = vsub.f32 1.5, %v4820
        %v4822 = vmul.f32 %v4817, %v4821
        %vm4823 = vweird.f32 %v4731
        %vm4824 = vweird.f32 %v4817
        %vm4825 = vmor %vm4823, %vm4824
        %v4826 = vsel %vm4825, %v4817, %v4822
        %v4827 = vrsqrt.pop %v4732
        %v4828 = vmul.f32 %v4827, %v4732
        %v4829 = vmul.f32 %v4828, %v4827
        %v4830 = vmul.f32 0.5, %v4829
        %v4831 = vsub.f32 1.5, %v4830
        %v4832 = vmul.f32 %v4827, %v4831
        %vm4833 = vweird.f32 %v4732
        %vm4834 = vweird.f32 %v4827
        %vm4835 = vmor %vm4833, %vm4834
        %v4836 = vsel %vm4835, %v4827, %v4832
        %v4837 = vrsqrt.pop %v4733
        %v4838 = vmul.f32 %v4837, %v4733
        %v4839 = vmul.f32 %v4838, %v4837
        %v4840 = vmul.f32 0.5, %v4839
        %v4841 = vsub.f32 1.5, %v4840
        %v4842 = vmul.f32 %v4837, %v4841
        %vm4843 = vweird.f32 %v4733
        %vm4844 = vweird.f32 %v4837
        %vm4845 = vmor %vm4843, %vm4844
        %v4846 = vsel %vm4845, %v4837, %v4842
        %v4847 = vrsqrt.pop %v4734
        %v4848 = vmul.f32 %v4847, %v4734
        %v4849 = vmul.f32 %v4848, %v4847
        %v4850 = vmul.f32 0.5, %v4849
        %v4851 = vsub.f32 1.5, %v4850
        %v4852 = vmul.f32 %v4847, %v4851
        %vm4853 = vweird.f32 %v4734
        %vm4854 = vweird.f32 %v4847
        %vm4855 = vmor %vm4853, %vm4854
        %v4856 = vsel %vm4855, %v4847, %v4852
        %v4857 = vrsqrt.pop %v4735
        %v4858 = vmul.f32 %v4857, %v4735
        %v4859 = vmul.f32 %v4858, %v4857
        %v4860 = vmul.f32 0.5, %v4859
        %v4861 = vsub.f32 1.5, %v4860
        %v4862 = vmul.f32 %v4857, %v4861
        %vm4863 = vweird.f32 %v4735
        %vm4864 = vweird.f32 %v4857
        %vm4865 = vmor %vm4863, %vm4864
        %v4866 = vsel %vm4865, %v4857, %v4862
        %v4867 = vrsqrt.pop %v4736
        %v4868 = vmul.f32 %v4867, %v4736
        %v4869 = vmul.f32 %v4868, %v4867
        %v4870 = vmul.f32 0.5, %v4869
        %v4871 = vsub.f32 1.5, %v4870
        %v4872 = vmul.f32 %v4867, %v4871
        %vm4873 = vweird.f32 %v4736
        %vm4874 = vweird.f32 %v4867
        %vm4875 = vmor %vm4873, %vm4874
        %v4876 = vsel %vm4875, %v4867, %v4872
        %v4877 = vrsqrt.pop %v4737
        %v4878 = vmul.f32 %v4877, %v4737
        %v4879 = vmul.f32 %v4878, %v4877
        %v4880 = vmul.f32 0.5, %v4879
        %v4881 = vsub.f32 1.5, %v4880
        %v4882 = vmul.f32 %v4877, %v4881
        %vm4883 = vweird.f32 %v4737
        %vm4884 = vweird.f32 %v4877
        %vm4885 = vmor %vm4883, %vm4884
        %v4886 = vsel %vm4885, %v4877, %v4882
        %v4887 = vrsqrt.pop %v4738
        %v4888 = vmul.f32 %v4887, %v4738
        %v4889 = vmul.f32 %v4888, %v4887
        %v4890 = vmul.f32 0.5, %v4889
        %v4891 = vsub.f32 1.5, %v4890
        %v4892 = vmul.f32 %v4887, %v4891
        %vm4893 = vweird.f32 %v4738
        %vm4894 = vweird.f32 %v4887
        %vm4895 = vmor %vm4893, %vm4894
        %v4896 = vsel %vm4895, %v4887, %v4892
        %v4897 = vrsqrt.pop %v4739
        %v4898 = vmul.f32 %v4897, %v4739
        %v4899 = vmul.f32 %v4898, %v4897
        %v4900 = vmul.f32 0.5, %v4899
        %v4901 = vsub.f32 1.5, %v4900
        %v4902 = vmul.f32 %v4897, %v4901
        %vm4903 = vweird.f32 %v4739
        %vm4904 = vweird.f32 %v4897
        %vm4905 = vmor %vm4903, %vm4904
        %v4906 = vsel %vm4905, %v4897, %v4902
        %v4907 = vrsqrt.pop %v4740
        %v4908 = vmul.f32 %v4907, %v4740
        %v4909 = vmul.f32 %v4908, %v4907
        %v4910 = vmul.f32 0.5, %v4909
        %v4911 = vsub.f32 1.5, %v4910
        %v4912 = vmul.f32 %v4907, %v4911
        %vm4913 = vweird.f32 %v4740
        %vm4914 = vweird.f32 %v4907
        %vm4915 = vmor %vm4913, %vm4914
        %v4916 = vsel %vm4915, %v4907, %v4912
        %v4917 = vrsqrt.pop %v4741
        %v4918 = vmul.f32 %v4917, %v4741
        %v4919 = vmul.f32 %v4918, %v4917
        %v4920 = vmul.f32 0.5, %v4919
        %v4921 = vsub.f32 1.5, %v4920
        %v4922 = vmul.f32 %v4917, %v4921
        %vm4923 = vweird.f32 %v4741
        %vm4924 = vweird.f32 %v4917
        %vm4925 = vmor %vm4923, %vm4924
        %v4926 = vsel %vm4925, %v4917, %v4922
        %v4927 = vrsqrt.pop %v4742
        %v4928 = vmul.f32 %v4927, %v4742
        %v4929 = vmul.f32 %v4928, %v4927
        %v4930 = vmul.f32 0.5, %v4929
        %v4931 = vsub.f32 1.5, %v4930
        %v4932 = vmul.f32 %v4927, %v4931
        %vm4933 = vweird.f32 %v4742
        %vm4934 = vweird.f32 %v4927
        %vm4935 = vmor %vm4933, %vm4934
        %v4936 = vsel %vm4935, %v4927, %v4932
        %v4937 = vrsqrt.pop %v4743
        %v4938 = vmul.f32 %v4937, %v4743
        %v4939 = vmul.f32 %v4938, %v4937
        %v4940 = vmul.f32 0.5, %v4939
        %v4941 = vsub.f32 1.5, %v4940
        %v4942 = vmul.f32 %v4937, %v4941
        %vm4943 = vweird.f32 %v4743
        %vm4944 = vweird.f32 %v4937
        %vm4945 = vmor %vm4943, %vm4944
        %v4946 = vsel %vm4945, %v4937, %v4942
        %v4947 = vrsqrt.pop %v4744
        %v4948 = vmul.f32 %v4947, %v4744
        %v4949 = vmul.f32 %v4948, %v4947
        %v4950 = vmul.f32 0.5, %v4949
        %v4951 = vsub.f32 1.5, %v4950
        %v4952 = vmul.f32 %v4947, %v4951
        %vm4953 = vweird.f32 %v4744
        %vm4954 = vweird.f32 %v4947
        %vm4955 = vmor %vm4953, %vm4954
        %v4956 = vsel %vm4955, %v4947, %v4952
        %v4957 = vrsqrt.pop %v4745
        %v4958 = vmul.f32 %v4957, %v4745
        %v4959 = vmul.f32 %v4958, %v4957
        %v4960 = vmul.f32 0.5, %v4959
        %v4961 = vsub.f32 1.5, %v4960
        %v4962 = vmul.f32 %v4957, %v4961
        %vm4963 = vweird.f32 %v4745
        %vm4964 = vweird.f32 %v4957
        %vm4965 = vmor %vm4963, %vm4964
        %v4966 = vsel %vm4965, %v4957, %v4962
        %v4967 = vrsqrt.pop %v4746
        %v4968 = vmul.f32 %v4967, %v4746
        %v4969 = vmul.f32 %v4968, %v4967
        %v4970 = vmul.f32 0.5, %v4969
        %v4971 = vsub.f32 1.5, %v4970
        %v4972 = vmul.f32 %v4967, %v4971
        %vm4973 = vweird.f32 %v4746
        %vm4974 = vweird.f32 %v4967
        %vm4975 = vmor %vm4973, %vm4974
        %v4976 = vsel %vm4975, %v4967, %v4972
        %v4977 = vrsqrt.pop %v4747
        %v4978 = vmul.f32 %v4977, %v4747
        %v4979 = vmul.f32 %v4978, %v4977
        %v4980 = vmul.f32 0.5, %v4979
        %v4981 = vsub.f32 1.5, %v4980
        %v4982 = vmul.f32 %v4977, %v4981
        %vm4983 = vweird.f32 %v4747
        %vm4984 = vweird.f32 %v4977
        %vm4985 = vmor %vm4983, %vm4984
        %v4986 = vsel %vm4985, %v4977, %v4982
        %v4987 = vrsqrt.pop %v4748
        %v4988 = vmul.f32 %v4987, %v4748
        %v4989 = vmul.f32 %v4988, %v4987
        %v4990 = vmul.f32 0.5, %v4989
        %v4991 = vsub.f32 1.5, %v4990
        %v4992 = vmul.f32 %v4987, %v4991
        %vm4993 = vweird.f32 %v4748
        %vm4994 = vweird.f32 %v4987
        %vm4995 = vmor %vm4993, %vm4994
        %v4996 = vsel %vm4995, %v4987, %v4992
        %v4997 = vrsqrt.pop %v4749
        %v4998 = vmul.f32 %v4997, %v4749
        %v4999 = vmul.f32 %v4998, %v4997
        %v5000 = vmul.f32 0.5, %v4999
        %v5001 = vsub.f32 1.5, %v5000
        %v5002 = vmul.f32 %v4997, %v5001
        %vm5003 = vweird.f32 %v4749
        %vm5004 = vweird.f32 %v4997
        %vm5005 = vmor %vm5003, %vm5004
        %v5006 = vsel %vm5005, %v4997, %v5002
        %v5007 = vrsqrt.pop %v4750
        %v5008 = vmul.f32 %v5007, %v4750
        %v5009 = vmul.f32 %v5008, %v5007
        %v5010 = vmul.f32 0.5, %v5009
        %v5011 = vsub.f32 1.5, %v5010
        %v5012 = vmul.f32 %v5007, %v5011
        %vm5013 = vweird.f32 %v4750
        %vm5014 = vweird.f32 %v5007
        %vm5015 = vmor %vm5013, %vm5014
        %v5016 = vsel %vm5015, %v5007, %v5012
        %v5017 = vrsqrt.pop %v4751
        %v5018 = vmul.f32 %v5017, %v4751
        %v5019 = vmul.f32 %v5018, %v5017
        %v5020 = vmul.f32 0.5, %v5019
        %v5021 = vsub.f32 1.5, %v5020
        %v5022 = vmul.f32 %v5017, %v5021
        %vm5023 = vweird.f32 %v4751
        %vm5024 = vweird.f32 %v5017
        %vm5025 = vmor %vm5023, %vm5024
        %v5026 = vsel %vm5025, %v5017, %v5022
        %v5027 = vrsqrt.pop %v4752
        %v5028 = vmul.f32 %v5027, %v4752
        %v5029 = vmul.f32 %v5028, %v5027
        %v5030 = vmul.f32 0.5, %v5029
        %v5031 = vsub.f32 1.5, %v5030
        %v5032 = vmul.f32 %v5027, %v5031
        %vm5033 = vweird.f32 %v4752
        %vm5034 = vweird.f32 %v5027
        %vm5035 = vmor %vm5033, %vm5034
        %v5036 = vsel %vm5035, %v5027, %v5032
        %v5037 = vrsqrt.pop %v4753
        %v5038 = vmul.f32 %v5037, %v4753
        %v5039 = vmul.f32 %v5038, %v5037
        %v5040 = vmul.f32 0.5, %v5039
        %v5041 = vsub.f32 1.5, %v5040
        %v5042 = vmul.f32 %v5037, %v5041
        %vm5043 = vweird.f32 %v4753
        %vm5044 = vweird.f32 %v5037
        %vm5045 = vmor %vm5043, %vm5044
        %v5046 = vsel %vm5045, %v5037, %v5042
        %v5047 = vrsqrt.pop %v4754
        %v5048 = vmul.f32 %v5047, %v4754
        %v5049 = vmul.f32 %v5048, %v5047
        %v5050 = vmul.f32 0.5, %v5049
        %v5051 = vsub.f32 1.5, %v5050
        %v5052 = vmul.f32 %v5047, %v5051
        %vm5053 = vweird.f32 %v4754
        %vm5054 = vweird.f32 %v5047
        %vm5055 = vmor %vm5053, %vm5054
        %v5056 = vsel %vm5055, %v5047, %v5052
        %v5057 = vrsqrt.pop %v4755
        %v5058 = vmul.f32 %v5057, %v4755
        %v5059 = vmul.f32 %v5058, %v5057
        %v5060 = vmul.f32 0.5, %v5059
        %v5061 = vsub.f32 1.5, %v5060
        %v5062 = vmul.f32 %v5057, %v5061
        %vm5063 = vweird.f32 %v4755
        %vm5064 = vweird.f32 %v5057
        %vm5065 = vmor %vm5063, %vm5064
        %v5066 = vsel %vm5065, %v5057, %v5062
        %v5067 = vrsqrt.pop %v4756
        %v5068 = vmul.f32 %v5067, %v4756
        %v5069 = vmul.f32 %v5068, %v5067
        %v5070 = vmul.f32 0.5, %v5069
        %v5071 = vsub.f32 1.5, %v5070
        %v5072 = vmul.f32 %v5067, %v5071
        %vm5073 = vweird.f32 %v4756
        %vm5074 = vweird.f32 %v5067
        %vm5075 = vmor %vm5073, %vm5074
        %v5076 = vsel %vm5075, %v5067, %v5072
        %v5077 = vmul.f32 %v4565, %v4766
        %v5078 = vmul.f32 %v4566, %v4776
        %v5079 = vmul.f32 %v4567, %v4786
        %v5080 = vmul.f32 %v4568, %v4796
        %v5081 = vmul.f32 %v4569, %v4806
        %v5082 = vmul.f32 %v4570, %v4816
        %v5083 = vmul.f32 %v4571, %v4826
        %v5084 = vmul.f32 %v4572, %v4836
        %v5085 = vmul.f32 %v4573, %v4846
        %v5086 = vmul.f32 %v4574, %v4856
        %v5087 = vmul.f32 %v4575, %v4866
        %v5088 = vmul.f32 %v4576, %v4876
        %v5089 = vmul.f32 %v4577, %v4886
        %v5090 = vmul.f32 %v4578, %v4896
        %v5091 = vmul.f32 %v4579, %v4906
        %v5092 = vmul.f32 %v4580, %v4916
        %v5093 = vmul.f32 %v4581, %v4926
        %v5094 = vmul.f32 %v4582, %v4936
        %v5095 = vmul.f32 %v4583, %v4946
        %v5096 = vmul.f32 %v4584, %v4956
        %v5097 = vmul.f32 %v4585, %v4966
        %v5098 = vmul.f32 %v4586, %v4976
        %v5099 = vmul.f32 %v4587, %v4986
        %v5100 = vmul.f32 %v4588, %v4996
        %v5101 = vmul.f32 %v4589, %v5006
        %v5102 = vmul.f32 %v4590, %v5016
        %v5103 = vmul.f32 %v4591, %v5026
        %v5104 = vmul.f32 %v4592, %v5036
        %v5105 = vmul.f32 %v4593, %v5046
        %v5106 = vmul.f32 %v4594, %v5056
        %v5107 = vmul.f32 %v4595, %v5066
        %v5108 = vmul.f32 %v4596, %v5076
        %v5109 = vperm.slane %v599, 1
        %v5110 = vmul.f32 %v5077, %v5109
        %v5111 = vmul.f32 %v5078, %v5109
        %v5112 = vmul.f32 %v5079, %v5109
        %v5113 = vmul.f32 %v5080, %v5109
        %v5114 = vmul.f32 %v5081, %v5109
        %v5115 = vmul.f32 %v5082, %v5109
        %v5116 = vmul.f32 %v5083, %v5109
        %v5117 = vmul.f32 %v5084, %v5109
        %v5118 = vmul.f32 %v5085, %v5109
        %v5119 = vmul.f32 %v5086, %v5109
        %v5120 = vmul.f32 %v5087, %v5109
        %v5121 = vmul.f32 %v5088, %v5109
        %v5122 = vmul.f32 %v5089, %v5109
        %v5123 = vmul.f32 %v5090, %v5109
        %v5124 = vmul.f32 %v5091, %v5109
        %v5125 = vmul.f32 %v5092, %v5109
        %v5126 = vmul.f32 %v5093, %v5109
        %v5127 = vmul.f32 %v5094, %v5109
        %v5128 = vmul.f32 %v5095, %v5109
        %v5129 = vmul.f32 %v5096, %v5109
        %v5130 = vmul.f32 %v5097, %v5109
        %v5131 = vmul.f32 %v5098, %v5109
        %v5132 = vmul.f32 %v5099, %v5109
        %v5133 = vmul.f32 %v5100, %v5109
        %v5134 = vmul.f32 %v5101, %v5109
        %v5135 = vmul.f32 %v5102, %v5109
        %v5136 = vmul.f32 %v5103, %v5109
        %v5137 = vmul.f32 %v5104, %v5109
        %v5138 = vmul.f32 %v5105, %v5109
        %v5139 = vmul.f32 %v5106, %v5109
        %v5140 = vmul.f32 %v5107, %v5109
        %v5141 = vmul.f32 %v5108, %v5109
        %v5142 = vperm.slane %v599, 2
        %v5143 = vadd.f32 %v5110, %v5142
        %v5144 = vadd.f32 %v5111, %v5142
        %v5145 = vadd.f32 %v5112, %v5142
        %v5146 = vadd.f32 %v5113, %v5142
        %v5147 = vadd.f32 %v5114, %v5142
        %v5148 = vadd.f32 %v5115, %v5142
        %v5149 = vadd.f32 %v5116, %v5142
        %v5150 = vadd.f32 %v5117, %v5142
        %v5151 = vadd.f32 %v5118, %v5142
        %v5152 = vadd.f32 %v5119, %v5142
        %v5153 = vadd.f32 %v5120, %v5142
        %v5154 = vadd.f32 %v5121, %v5142
        %v5155 = vadd.f32 %v5122, %v5142
        %v5156 = vadd.f32 %v5123, %v5142
        %v5157 = vadd.f32 %v5124, %v5142
        %v5158 = vadd.f32 %v5125, %v5142
        %v5159 = vadd.f32 %v5126, %v5142
        %v5160 = vadd.f32 %v5127, %v5142
        %v5161 = vadd.f32 %v5128, %v5142
        %v5162 = vadd.f32 %v5129, %v5142
        %v5163 = vadd.f32 %v5130, %v5142
        %v5164 = vadd.f32 %v5131, %v5142
        %v5165 = vadd.f32 %v5132, %v5142
        %v5166 = vadd.f32 %v5133, %v5142
        %v5167 = vadd.f32 %v5134, %v5142
        %v5168 = vadd.f32 %v5135, %v5142
        %v5169 = vadd.f32 %v5136, %v5142
        %v5170 = vadd.f32 %v5137, %v5142
        %v5171 = vadd.f32 %v5138, %v5142
        %v5172 = vadd.f32 %v5139, %v5142
        %v5173 = vadd.f32 %v5140, %v5142
        %v5174 = vadd.f32 %v5141, %v5142
        %v5175 = vpack.c.bf16 %v5144, %v5143
        %v5176 = vpack.c.bf16 %v5146, %v5145
        %v5177 = vpack.c.bf16 %v5148, %v5147
        %v5178 = vpack.c.bf16 %v5150, %v5149
        %v5179 = vpack.c.bf16 %v5152, %v5151
        %v5180 = vpack.c.bf16 %v5154, %v5153
        %v5181 = vpack.c.bf16 %v5156, %v5155
        %v5182 = vpack.c.bf16 %v5158, %v5157
        %v5183 = vpack.c.bf16 %v5160, %v5159
        %v5184 = vpack.c.bf16 %v5162, %v5161
        %v5185 = vpack.c.bf16 %v5164, %v5163
        %v5186 = vpack.c.bf16 %v5166, %v5165
        %v5187 = vpack.c.bf16 %v5168, %v5167
        %v5188 = vpack.c.bf16 %v5170, %v5169
        %v5189 = vpack.c.bf16 %v5172, %v5171
        %v5190 = vpack.c.bf16 %v5174, %v5173
        %v5191 = vld [vmem:[%s487] sm:$0xf]
        %v5192 = vld [vmem:[%s487 + $0x4] sm:$0xf]
        %v5193 = vld [vmem:[%s487 + $0x8] sm:$0xf]
        %v5194 = vld [vmem:[%s487 + $0xc] sm:$0xf]
        %v5195 = vld [vmem:[%s487 + $0x10] sm:$0xf]
        %v5196 = vld [vmem:[%s487 + $0x14] sm:$0xf]
        %v5197 = vld [vmem:[%s487 + $0x18] sm:$0xf]
        %v5198 = vld [vmem:[%s487 + $0x1c] sm:$0xf]
        %v5199 = vld [vmem:[%s487 + $0x20] sm:$0xf]
        %v5200 = vld [vmem:[%s487 + $0x24] sm:$0xf]
        %v5201 = vld [vmem:[%s487 + $0x28] sm:$0xf]
        %v5202 = vld [vmem:[%s487 + $0x2c] sm:$0xf]
        %v5203 = vld [vmem:[%s487 + $0x30] sm:$0xf]
        %v5204 = vld [vmem:[%s487 + $0x34] sm:$0xf]
        %v5205 = vld [vmem:[%s487 + $0x38] sm:$0xf]
        %v5206 = vld [vmem:[%s487 + $0x3c] sm:$0xf]
        %v5207 = vld [vmem:[%s490] sm:$0x1]
        %v5209 = vperm.slane %v5207, 0
        %v5227 = vunpack.c.l.b16 %v5191
        %v5228 = vunpack.c.l.b16 %v5192
        %v5229 = vunpack.c.l.b16 %v5193
        %v5230 = vunpack.c.l.b16 %v5194
        %v5231 = vunpack.c.l.b16 %v5195
        %v5232 = vunpack.c.l.b16 %v5196
        %v5233 = vunpack.c.l.b16 %v5197
        %v5234 = vunpack.c.l.b16 %v5198
        %v5235 = vunpack.c.l.b16 %v5199
        %v5236 = vunpack.c.l.b16 %v5200
        %v5237 = vunpack.c.l.b16 %v5201
        %v5238 = vunpack.c.l.b16 %v5202
        %v5239 = vunpack.c.l.b16 %v5203
        %v5240 = vunpack.c.l.b16 %v5204
        %v5241 = vunpack.c.l.b16 %v5205
        %v5242 = vunpack.c.l.b16 %v5206
        %v5243 = vpack.c.b16 %v5228, %v5227
        %v5244 = vpack.c.b16 %v5230, %v5229
        %v5245 = vpack.c.b16 %v5232, %v5231
        %v5246 = vpack.c.b16 %v5234, %v5233
        %v5247 = vpack.c.b16 %v5236, %v5235
        %v5248 = vpack.c.b16 %v5238, %v5237
        %v5249 = vpack.c.b16 %v5240, %v5239
        %v5250 = vpack.c.b16 %v5242, %v5241
        %5259 = vmatpush.bf16.msra.mxu0 %v5250
        %5260 = vmatpush.bf16.msra.mxu0 %v5249
        %5261 = vmatpush.bf16.msra.mxu0 %v5248
        %5262 = vmatpush.bf16.msra.mxu0 %v5247
        %5263 = vmatpush.bf16.msra.mxu0 %v5246
        %5264 = vmatpush.bf16.msra.mxu0 %v5245
        %5265 = vmatpush.bf16.msra.mxu0 %v5244
        %5266 = vmatpush.bf16.msra.mxu0 %v5243
        %5267 = vmatmul.bf16.gmra.mxu0 %v5175
        %v5268 = vpop.f32.mrf.mxu0
        %v5269 = vadd.f32 %v5209, %v5268
        %v5270 = vpop.f32.mrf.mxu0
        %v5271 = vadd.f32 %v5209, %v5270
        %5272 = vmatmul.bf16.gmra.mxu0 %v5176
        %v5273 = vpop.f32.mrf.mxu0
        %v5274 = vadd.f32 %v5209, %v5273
        %v5275 = vpop.f32.mrf.mxu0
        %v5276 = vadd.f32 %v5209, %v5275
        %5277 = vmatmul.bf16.gmra.mxu0 %v5177
        %v5278 = vpop.f32.mrf.mxu0
        %v5279 = vadd.f32 %v5209, %v5278
        %v5280 = vpop.f32.mrf.mxu0
        %v5281 = vadd.f32 %v5209, %v5280
        %5282 = vmatmul.bf16.gmra.mxu0 %v5178
        %v5283 = vpop.f32.mrf.mxu0
        %v5284 = vadd.f32 %v5209, %v5283
        %v5285 = vpop.f32.mrf.mxu0
        %v5286 = vadd.f32 %v5209, %v5285
        %5287 = vmatmul.bf16.gmra.mxu0 %v5179
        %v5288 = vpop.f32.mrf.mxu0
        %v5289 = vadd.f32 %v5209, %v5288
        %v5290 = vpop.f32.mrf.mxu0
        %v5291 = vadd.f32 %v5209, %v5290
        %5292 = vmatmul.bf16.gmra.mxu0 %v5180
        %v5293 = vpop.f32.mrf.mxu0
        %v5294 = vadd.f32 %v5209, %v5293
        %v5295 = vpop.f32.mrf.mxu0
        %v5296 = vadd.f32 %v5209, %v5295
        %5297 = vmatmul.bf16.gmra.mxu0 %v5181
        %v5298 = vpop.f32.mrf.mxu0
        %v5299 = vadd.f32 %v5209, %v5298
        %v5300 = vpop.f32.mrf.mxu0
        %v5301 = vadd.f32 %v5209, %v5300
        %5302 = vmatmul.bf16.gmra.mxu0 %v5182
        %v5303 = vpop.f32.mrf.mxu0
        %v5304 = vadd.f32 %v5209, %v5303
        %v5305 = vpop.f32.mrf.mxu0
        %v5306 = vadd.f32 %v5209, %v5305
        %5307 = vmatmul.bf16.gmra.mxu0 %v5183
        %v5308 = vpop.f32.mrf.mxu0
        %v5309 = vadd.f32 %v5209, %v5308
        %v5310 = vpop.f32.mrf.mxu0
        %v5311 = vadd.f32 %v5209, %v5310
        %5312 = vmatmul.bf16.gmra.mxu0 %v5184
        %v5313 = vpop.f32.mrf.mxu0
        %v5314 = vadd.f32 %v5209, %v5313
        %v5315 = vpop.f32.mrf.mxu0
        %v5316 = vadd.f32 %v5209, %v5315
        %5317 = vmatmul.bf16.gmra.mxu0 %v5185
        %v5318 = vpop.f32.mrf.mxu0
        %v5319 = vadd.f32 %v5209, %v5318
        %v5320 = vpop.f32.mrf.mxu0
        %v5321 = vadd.f32 %v5209, %v5320
        %5322 = vmatmul.bf16.gmra.mxu0 %v5186
        %v5323 = vpop.f32.mrf.mxu0
        %v5324 = vadd.f32 %v5209, %v5323
        %v5325 = vpop.f32.mrf.mxu0
        %v5326 = vadd.f32 %v5209, %v5325
        %5327 = vmatmul.bf16.gmra.mxu0 %v5187
        %v5328 = vpop.f32.mrf.mxu0
        %v5329 = vadd.f32 %v5209, %v5328
        %v5330 = vpop.f32.mrf.mxu0
        %v5331 = vadd.f32 %v5209, %v5330
        %5332 = vmatmul.bf16.gmra.mxu0 %v5188
        %v5333 = vpop.f32.mrf.mxu0
        %v5334 = vadd.f32 %v5209, %v5333
        %v5335 = vpop.f32.mrf.mxu0
        %v5336 = vadd.f32 %v5209, %v5335
        %5337 = vmatmul.bf16.gmra.mxu0 %v5189
        %v5338 = vpop.f32.mrf.mxu0
        %v5339 = vadd.f32 %v5209, %v5338
        %v5340 = vpop.f32.mrf.mxu0
        %v5341 = vadd.f32 %v5209, %v5340
        %5342 = vmatmul.bf16.gmra.mxu0 %v5190
        %v5343 = vpop.f32.mrf.mxu0
        %v5344 = vadd.f32 %v5209, %v5343
        %v5345 = vpop.f32.mrf.mxu0
        %v5346 = vadd.f32 %v5209, %v5345
        %5347 = vdwg.mxu0
        %v5348 = vmax.f32 %v5269, 0.0
        %v5349 = vmax.f32 %v5271, 0.0
        %v5350 = vmax.f32 %v5274, 0.0
        %v5351 = vmax.f32 %v5276, 0.0
        %v5352 = vmax.f32 %v5279, 0.0
        %v5353 = vmax.f32 %v5281, 0.0
        %v5354 = vmax.f32 %v5284, 0.0
        %v5355 = vmax.f32 %v5286, 0.0
        %v5356 = vmax.f32 %v5289, 0.0
        %v5357 = vmax.f32 %v5291, 0.0
        %v5358 = vmax.f32 %v5294, 0.0
        %v5359 = vmax.f32 %v5296, 0.0
        %v5360 = vmax.f32 %v5299, 0.0
        %v5361 = vmax.f32 %v5301, 0.0
        %v5362 = vmax.f32 %v5304, 0.0
        %v5363 = vmax.f32 %v5306, 0.0
        %v5364 = vmax.f32 %v5309, 0.0
        %v5365 = vmax.f32 %v5311, 0.0
        %v5366 = vmax.f32 %v5314, 0.0
        %v5367 = vmax.f32 %v5316, 0.0
        %v5368 = vmax.f32 %v5319, 0.0
        %v5369 = vmax.f32 %v5321, 0.0
        %v5370 = vmax.f32 %v5324, 0.0
        %v5371 = vmax.f32 %v5326, 0.0
        %v5372 = vmax.f32 %v5329, 0.0
        %v5373 = vmax.f32 %v5331, 0.0
        %v5374 = vmax.f32 %v5334, 0.0
        %v5375 = vmax.f32 %v5336, 0.0
        %v5376 = vmax.f32 %v5339, 0.0
        %v5377 = vmax.f32 %v5341, 0.0
        %v5378 = vmax.f32 %v5344, 0.0
        %v5379 = vmax.f32 %v5346, 0.0
        %v5380 = vpack.c.bf16 %v5349, %v5348
        %v5381 = vpack.c.bf16 %v5351, %v5350
        %v5382 = vpack.c.bf16 %v5353, %v5352
        %v5383 = vpack.c.bf16 %v5355, %v5354
        %v5384 = vpack.c.bf16 %v5357, %v5356
        %v5385 = vpack.c.bf16 %v5359, %v5358
        %v5386 = vpack.c.bf16 %v5361, %v5360
        %v5387 = vpack.c.bf16 %v5363, %v5362
        %v5388 = vpack.c.bf16 %v5365, %v5364
        %v5389 = vpack.c.bf16 %v5367, %v5366
        %v5390 = vpack.c.bf16 %v5369, %v5368
        %v5391 = vpack.c.bf16 %v5371, %v5370
        %v5392 = vpack.c.bf16 %v5373, %v5372
        %v5393 = vpack.c.bf16 %v5375, %v5374
        %v5394 = vpack.c.bf16 %v5377, %v5376
        %v5395 = vpack.c.bf16 %v5379, %v5378
        %v5396 = vld [vmem:[%s396] sm:$0xf]
        %v5397 = vld [vmem:[%s396 + $0x4] sm:$0xf]
        %v5398 = vld [vmem:[%s396 + $0x8] sm:$0xf]
        %v5399 = vld [vmem:[%s396 + $0xc] sm:$0xf]
        %v5400 = vld [vmem:[%s396 + $0x10] sm:$0xf]
        %v5401 = vld [vmem:[%s396 + $0x14] sm:$0xf]
        %v5402 = vld [vmem:[%s396 + $0x18] sm:$0xf]
        %v5403 = vld [vmem:[%s396 + $0x1c] sm:$0xf]
        %v5404 = vld [vmem:[%s396 + $0x20] sm:$0xf]
        %v5405 = vld [vmem:[%s396 + $0x24] sm:$0xf]
        %v5406 = vld [vmem:[%s396 + $0x28] sm:$0xf]
        %v5407 = vld [vmem:[%s396 + $0x2c] sm:$0xf]
        %v5408 = vld [vmem:[%s396 + $0x30] sm:$0xf]
        %v5409 = vld [vmem:[%s396 + $0x34] sm:$0xf]
        %v5410 = vld [vmem:[%s396 + $0x38] sm:$0xf]
        %v5411 = vld [vmem:[%s396 + $0x3c] sm:$0xf]
        %v5412 = vperm.slane %v599, 3
        %v5429 = vunpack.c.l.b16 %v5396
        %v5430 = vunpack.c.l.b16 %v5397
        %v5431 = vunpack.c.l.b16 %v5398
        %v5432 = vunpack.c.l.b16 %v5399
        %v5433 = vunpack.c.l.b16 %v5400
        %v5434 = vunpack.c.l.b16 %v5401
        %v5435 = vunpack.c.l.b16 %v5402
        %v5436 = vunpack.c.l.b16 %v5403
        %v5437 = vunpack.c.l.b16 %v5404
        %v5438 = vunpack.c.l.b16 %v5405
        %v5439 = vunpack.c.l.b16 %v5406
        %v5440 = vunpack.c.l.b16 %v5407
        %v5441 = vunpack.c.l.b16 %v5408
        %v5442 = vunpack.c.l.b16 %v5409
        %v5443 = vunpack.c.l.b16 %v5410
        %v5444 = vunpack.c.l.b16 %v5411
        %v5445 = vpack.c.b16 %v5430, %v5429
        %v5446 = vpack.c.b16 %v5432, %v5431
        %v5447 = vpack.c.b16 %v5434, %v5433
        %v5448 = vpack.c.b16 %v5436, %v5435
        %v5449 = vpack.c.b16 %v5438, %v5437
        %v5450 = vpack.c.b16 %v5440, %v5439
        %v5451 = vpack.c.b16 %v5442, %v5441
        %v5452 = vpack.c.b16 %v5444, %v5443
        %5461 = vmatpush.bf16.msra.mxu0 %v5452
        %5462 = vmatpush.bf16.msra.mxu0 %v5451
        %5463 = vmatpush.bf16.msra.mxu0 %v5450
        %5464 = vmatpush.bf16.msra.mxu0 %v5449
        %5465 = vmatpush.bf16.msra.mxu0 %v5448
        %5466 = vmatpush.bf16.msra.mxu0 %v5447
        %5467 = vmatpush.bf16.msra.mxu0 %v5446
        %5468 = vmatpush.bf16.msra.mxu0 %v5445
        %5469 = vmatmul.bf16.gmra.mxu0 %v5380
        %v5470 = vpop.f32.mrf.mxu0
        %v5471 = vadd.f32 %v5412, %v5470
        %v5472 = vpop.f32.mrf.mxu0
        %v5473 = vadd.f32 %v5412, %v5472
        %5474 = vmatmul.bf16.gmra.mxu0 %v5381
        %v5475 = vpop.f32.mrf.mxu0
        %v5476 = vadd.f32 %v5412, %v5475
        %v5477 = vpop.f32.mrf.mxu0
        %v5478 = vadd.f32 %v5412, %v5477
        %5479 = vmatmul.bf16.gmra.mxu0 %v5382
        %v5480 = vpop.f32.mrf.mxu0
        %v5481 = vadd.f32 %v5412, %v5480
        %v5482 = vpop.f32.mrf.mxu0
        %v5483 = vadd.f32 %v5412, %v5482
        %5484 = vmatmul.bf16.gmra.mxu0 %v5383
        %v5485 = vpop.f32.mrf.mxu0
        %v5486 = vadd.f32 %v5412, %v5485
        %v5487 = vpop.f32.mrf.mxu0
        %v5488 = vadd.f32 %v5412, %v5487
        %5489 = vmatmul.bf16.gmra.mxu0 %v5384
        %v5490 = vpop.f32.mrf.mxu0
        %v5491 = vadd.f32 %v5412, %v5490
        %v5492 = vpop.f32.mrf.mxu0
        %v5493 = vadd.f32 %v5412, %v5492
        %5494 = vmatmul.bf16.gmra.mxu0 %v5385
        %v5495 = vpop.f32.mrf.mxu0
        %v5496 = vadd.f32 %v5412, %v5495
        %v5497 = vpop.f32.mrf.mxu0
        %v5498 = vadd.f32 %v5412, %v5497
        %5499 = vmatmul.bf16.gmra.mxu0 %v5386
        %v5500 = vpop.f32.mrf.mxu0
        %v5501 = vadd.f32 %v5412, %v5500
        %v5502 = vpop.f32.mrf.mxu0
        %v5503 = vadd.f32 %v5412, %v5502
        %5504 = vmatmul.bf16.gmra.mxu0 %v5387
        %v5505 = vpop.f32.mrf.mxu0
        %v5506 = vadd.f32 %v5412, %v5505
        %v5507 = vpop.f32.mrf.mxu0
        %v5508 = vadd.f32 %v5412, %v5507
        %5509 = vmatmul.bf16.gmra.mxu0 %v5388
        %v5510 = vpop.f32.mrf.mxu0
        %v5511 = vadd.f32 %v5412, %v5510
        %v5512 = vpop.f32.mrf.mxu0
        %v5513 = vadd.f32 %v5412, %v5512
        %5514 = vmatmul.bf16.gmra.mxu0 %v5389
        %v5515 = vpop.f32.mrf.mxu0
        %v5516 = vadd.f32 %v5412, %v5515
        %v5517 = vpop.f32.mrf.mxu0
        %v5518 = vadd.f32 %v5412, %v5517
        %5519 = vmatmul.bf16.gmra.mxu0 %v5390
        %v5520 = vpop.f32.mrf.mxu0
        %v5521 = vadd.f32 %v5412, %v5520
        %v5522 = vpop.f32.mrf.mxu0
        %v5523 = vadd.f32 %v5412, %v5522
        %5524 = vmatmul.bf16.gmra.mxu0 %v5391
        %v5525 = vpop.f32.mrf.mxu0
        %v5526 = vadd.f32 %v5412, %v5525
        %v5527 = vpop.f32.mrf.mxu0
        %v5528 = vadd.f32 %v5412, %v5527
        %5529 = vmatmul.bf16.gmra.mxu0 %v5392
        %v5530 = vpop.f32.mrf.mxu0
        %v5531 = vadd.f32 %v5412, %v5530
        %v5532 = vpop.f32.mrf.mxu0
        %v5533 = vadd.f32 %v5412, %v5532
        %5534 = vmatmul.bf16.gmra.mxu0 %v5393
        %v5535 = vpop.f32.mrf.mxu0
        %v5536 = vadd.f32 %v5412, %v5535
        %v5537 = vpop.f32.mrf.mxu0
        %v5538 = vadd.f32 %v5412, %v5537
        %5539 = vmatmul.bf16.gmra.mxu0 %v5394
        %v5540 = vpop.f32.mrf.mxu0
        %v5541 = vadd.f32 %v5412, %v5540
        %v5542 = vpop.f32.mrf.mxu0
        %v5543 = vadd.f32 %v5412, %v5542
        %5544 = vmatmul.bf16.gmra.mxu0 %v5395
        %v5545 = vpop.f32.mrf.mxu0
        %v5546 = vadd.f32 %v5412, %v5545
        %v5547 = vpop.f32.mrf.mxu0
        %v5548 = vadd.f32 %v5412, %v5547
        %5549 = vdwg.mxu0
        %v5550 = vadd.f32 %v5471, %v5143
        %v5551 = vadd.f32 %v5473, %v5144
        %v5552 = vadd.f32 %v5476, %v5145
        %v5553 = vadd.f32 %v5478, %v5146
        %v5554 = vadd.f32 %v5481, %v5147
        %v5555 = vadd.f32 %v5483, %v5148
        %v5556 = vadd.f32 %v5486, %v5149
        %v5557 = vadd.f32 %v5488, %v5150
        %v5558 = vadd.f32 %v5491, %v5151
        %v5559 = vadd.f32 %v5493, %v5152
        %v5560 = vadd.f32 %v5496, %v5153
        %v5561 = vadd.f32 %v5498, %v5154
        %v5562 = vadd.f32 %v5501, %v5155
        %v5563 = vadd.f32 %v5503, %v5156
        %v5564 = vadd.f32 %v5506, %v5157
        %v5565 = vadd.f32 %v5508, %v5158
        %v5566 = vadd.f32 %v5511, %v5159
        %v5567 = vadd.f32 %v5513, %v5160
        %v5568 = vadd.f32 %v5516, %v5161
        %v5569 = vadd.f32 %v5518, %v5162
        %v5570 = vadd.f32 %v5521, %v5163
        %v5571 = vadd.f32 %v5523, %v5164
        %v5572 = vadd.f32 %v5526, %v5165
        %v5573 = vadd.f32 %v5528, %v5166
        %v5574 = vadd.f32 %v5531, %v5167
        %v5575 = vadd.f32 %v5533, %v5168
        %v5576 = vadd.f32 %v5536, %v5169
        %v5577 = vadd.f32 %v5538, %v5170
        %v5578 = vadd.f32 %v5541, %v5171
        %v5579 = vadd.f32 %v5543, %v5172
        %v5580 = vadd.f32 %v5546, %v5173
        %v5581 = vadd.f32 %v5548, %v5174
        %5582 = vadd.xlane.f32.xlu0 %v5550
        %v5583 = vpop.xlane.xlu0 %5582
        %5584 = vadd.xlane.f32.xlu0 %v5551
        %v5585 = vpop.xlane.xlu0 %5584
        %5586 = vadd.xlane.f32.xlu0 %v5552
        %v5587 = vpop.xlane.xlu0 %5586
        %5588 = vadd.xlane.f32.xlu0 %v5553
        %v5589 = vpop.xlane.xlu0 %5588
        %5590 = vadd.xlane.f32.xlu0 %v5554
        %v5591 = vpop.xlane.xlu0 %5590
        %5592 = vadd.xlane.f32.xlu0 %v5555
        %v5593 = vpop.xlane.xlu0 %5592
        %5594 = vadd.xlane.f32.xlu0 %v5556
        %v5595 = vpop.xlane.xlu0 %5594
        %5596 = vadd.xlane.f32.xlu0 %v5557
        %v5597 = vpop.xlane.xlu0 %5596
        %5598 = vadd.xlane.f32.xlu0 %v5558
        %v5599 = vpop.xlane.xlu0 %5598
        %5600 = vadd.xlane.f32.xlu0 %v5559
        %v5601 = vpop.xlane.xlu0 %5600
        %5602 = vadd.xlane.f32.xlu0 %v5560
        %v5603 = vpop.xlane.xlu0 %5602
        %5604 = vadd.xlane.f32.xlu0 %v5561
        %v5605 = vpop.xlane.xlu0 %5604
        %5606 = vadd.xlane.f32.xlu0 %v5562
        %v5607 = vpop.xlane.xlu0 %5606
        %5608 = vadd.xlane.f32.xlu0 %v5563
        %v5609 = vpop.xlane.xlu0 %5608
        %5610 = vadd.xlane.f32.xlu0 %v5564
        %v5611 = vpop.xlane.xlu0 %5610
        %5612 = vadd.xlane.f32.xlu0 %v5565
        %v5613 = vpop.xlane.xlu0 %5612
        %5614 = vadd.xlane.f32.xlu0 %v5566
        %v5615 = vpop.xlane.xlu0 %5614
        %5616 = vadd.xlane.f32.xlu0 %v5567
        %v5617 = vpop.xlane.xlu0 %5616
        %5618 = vadd.xlane.f32.xlu0 %v5568
        %v5619 = vpop.xlane.xlu0 %5618
        %5620 = vadd.xlane.f32.xlu0 %v5569
        %v5621 = vpop.xlane.xlu0 %5620
        %5622 = vadd.xlane.f32.xlu0 %v5570
        %v5623 = vpop.xlane.xlu0 %5622
        %5624 = vadd.xlane.f32.xlu0 %v5571
        %v5625 = vpop.xlane.xlu0 %5624
        %5626 = vadd.xlane.f32.xlu0 %v5572
        %v5627 = vpop.xlane.xlu0 %5626
        %5628 = vadd.xlane.f32.xlu0 %v5573
        %v5629 = vpop.xlane.xlu0 %5628
        %5630 = vadd.xlane.f32.xlu0 %v5574
        %v5631 = vpop.xlane.xlu0 %5630
        %5632 = vadd.xlane.f32.xlu0 %v5575
        %v5633 = vpop.xlane.xlu0 %5632
        %5634 = vadd.xlane.f32.xlu0 %v5576
        %v5635 = vpop.xlane.xlu0 %5634
        %5636 = vadd.xlane.f32.xlu0 %v5577
        %v5637 = vpop.xlane.xlu0 %5636
        %5638 = vadd.xlane.f32.xlu0 %v5578
        %v5639 = vpop.xlane.xlu0 %5638
        %5640 = vadd.xlane.f32.xlu0 %v5579
        %v5641 = vpop.xlane.xlu0 %5640
        %5642 = vadd.xlane.f32.xlu0 %v5580
        %v5643 = vpop.xlane.xlu0 %5642
        %5644 = vadd.xlane.f32.xlu0 %v5581
        %v5645 = vpop.xlane.xlu0 %5644
        %v5646 = vmul.f32 %v5583, 0.03125
        %v5647 = vmul.f32 %v5585, 0.03125
        %v5648 = vmul.f32 %v5587, 0.03125
        %v5649 = vmul.f32 %v5589, 0.03125
        %v5650 = vmul.f32 %v5591, 0.03125
        %v5651 = vmul.f32 %v5593, 0.03125
        %v5652 = vmul.f32 %v5595, 0.03125
        %v5653 = vmul.f32 %v5597, 0.03125
        %v5654 = vmul.f32 %v5599, 0.03125
        %v5655 = vmul.f32 %v5601, 0.03125
        %v5656 = vmul.f32 %v5603, 0.03125
        %v5657 = vmul.f32 %v5605, 0.03125
        %v5658 = vmul.f32 %v5607, 0.03125
        %v5659 = vmul.f32 %v5609, 0.03125
        %v5660 = vmul.f32 %v5611, 0.03125
        %v5661 = vmul.f32 %v5613, 0.03125
        %v5662 = vmul.f32 %v5615, 0.03125
        %v5663 = vmul.f32 %v5617, 0.03125
        %v5664 = vmul.f32 %v5619, 0.03125
        %v5665 = vmul.f32 %v5621, 0.03125
        %v5666 = vmul.f32 %v5623, 0.03125
        %v5667 = vmul.f32 %v5625, 0.03125
        %v5668 = vmul.f32 %v5627, 0.03125
        %v5669 = vmul.f32 %v5629, 0.03125
        %v5670 = vmul.f32 %v5631, 0.03125
        %v5671 = vmul.f32 %v5633, 0.03125
        %v5672 = vmul.f32 %v5635, 0.03125
        %v5673 = vmul.f32 %v5637, 0.03125
        %v5674 = vmul.f32 %v5639, 0.03125
        %v5675 = vmul.f32 %v5641, 0.03125
        %v5676 = vmul.f32 %v5643, 0.03125
        %v5677 = vmul.f32 %v5645, 0.03125
        %v5678 = vsub.f32 %v5550, %v5646
        %v5679 = vsub.f32 %v5551, %v5647
        %v5680 = vsub.f32 %v5552, %v5648
        %v5681 = vsub.f32 %v5553, %v5649
        %v5682 = vsub.f32 %v5554, %v5650
        %v5683 = vsub.f32 %v5555, %v5651
        %v5684 = vsub.f32 %v5556, %v5652
        %v5685 = vsub.f32 %v5557, %v5653
        %v5686 = vsub.f32 %v5558, %v5654
        %v5687 = vsub.f32 %v5559, %v5655
        %v5688 = vsub.f32 %v5560, %v5656
        %v5689 = vsub.f32 %v5561, %v5657
        %v5690 = vsub.f32 %v5562, %v5658
        %v5691 = vsub.f32 %v5563, %v5659
        %v5692 = vsub.f32 %v5564, %v5660
        %v5693 = vsub.f32 %v5565, %v5661
        %v5694 = vsub.f32 %v5566, %v5662
        %v5695 = vsub.f32 %v5567, %v5663
        %v5696 = vsub.f32 %v5568, %v5664
        %v5697 = vsub.f32 %v5569, %v5665
        %v5698 = vsub.f32 %v5570, %v5666
        %v5699 = vsub.f32 %v5571, %v5667
        %v5700 = vsub.f32 %v5572, %v5668
        %v5701 = vsub.f32 %v5573, %v5669
        %v5702 = vsub.f32 %v5574, %v5670
        %v5703 = vsub.f32 %v5575, %v5671
        %v5704 = vsub.f32 %v5576, %v5672
        %v5705 = vsub.f32 %v5577, %v5673
        %v5706 = vsub.f32 %v5578, %v5674
        %v5707 = vsub.f32 %v5579, %v5675
        %v5708 = vsub.f32 %v5580, %v5676
        %v5709 = vsub.f32 %v5581, %v5677
        %v5710 = vmul.f32 %v5678, %v604
        %v5711 = vmul.f32 %v5679, %v604
        %v5712 = vmul.f32 %v5680, %v604
        %v5713 = vmul.f32 %v5681, %v604
        %v5714 = vmul.f32 %v5682, %v604
        %v5715 = vmul.f32 %v5683, %v604
        %v5716 = vmul.f32 %v5684, %v604
        %v5717 = vmul.f32 %v5685, %v604
        %v5718 = vmul.f32 %v5686, %v604
        %v5719 = vmul.f32 %v5687, %v604
        %v5720 = vmul.f32 %v5688, %v604
        %v5721 = vmul.f32 %v5689, %v604
        %v5722 = vmul.f32 %v5690, %v604
        %v5723 = vmul.f32 %v5691, %v604
        %v5724 = vmul.f32 %v5692, %v604
        %v5725 = vmul.f32 %v5693, %v604
        %v5726 = vmul.f32 %v5694, %v604
        %v5727 = vmul.f32 %v5695, %v604
        %v5728 = vmul.f32 %v5696, %v604
        %v5729 = vmul.f32 %v5697, %v604
        %v5730 = vmul.f32 %v5698, %v604
        %v5731 = vmul.f32 %v5699, %v604
        %v5732 = vmul.f32 %v5700, %v604
        %v5733 = vmul.f32 %v5701, %v604
        %v5734 = vmul.f32 %v5702, %v604
        %v5735 = vmul.f32 %v5703, %v604
        %v5736 = vmul.f32 %v5704, %v604
        %v5737 = vmul.f32 %v5705, %v604
        %v5738 = vmul.f32 %v5706, %v604
        %v5739 = vmul.f32 %v5707, %v604
        %v5740 = vmul.f32 %v5708, %v604
        %v5741 = vmul.f32 %v5709, %v604
        %v5742 = vmul.f32 %v5710, %v5710
        %v5743 = vmul.f32 %v5711, %v5711
        %v5744 = vmul.f32 %v5712, %v5712
        %v5745 = vmul.f32 %v5713, %v5713
        %v5746 = vmul.f32 %v5714, %v5714
        %v5747 = vmul.f32 %v5715, %v5715
        %v5748 = vmul.f32 %v5716, %v5716
        %v5749 = vmul.f32 %v5717, %v5717
        %v5750 = vmul.f32 %v5718, %v5718
        %v5751 = vmul.f32 %v5719, %v5719
        %v5752 = vmul.f32 %v5720, %v5720
        %v5753 = vmul.f32 %v5721, %v5721
        %v5754 = vmul.f32 %v5722, %v5722
        %v5755 = vmul.f32 %v5723, %v5723
        %v5756 = vmul.f32 %v5724, %v5724
        %v5757 = vmul.f32 %v5725, %v5725
        %v5758 = vmul.f32 %v5726, %v5726
        %v5759 = vmul.f32 %v5727, %v5727
        %v5760 = vmul.f32 %v5728, %v5728
        %v5761 = vmul.f32 %v5729, %v5729
        %v5762 = vmul.f32 %v5730, %v5730
        %v5763 = vmul.f32 %v5731, %v5731
        %v5764 = vmul.f32 %v5732, %v5732
        %v5765 = vmul.f32 %v5733, %v5733
        %v5766 = vmul.f32 %v5734, %v5734
        %v5767 = vmul.f32 %v5735, %v5735
        %v5768 = vmul.f32 %v5736, %v5736
        %v5769 = vmul.f32 %v5737, %v5737
        %v5770 = vmul.f32 %v5738, %v5738
        %v5771 = vmul.f32 %v5739, %v5739
        %v5772 = vmul.f32 %v5740, %v5740
        %v5773 = vmul.f32 %v5741, %v5741
        %5774 = vadd.xlane.f32.xlu0 %v5742
        %v5775 = vpop.xlane.xlu0 %5774
        %5776 = vadd.xlane.f32.xlu0 %v5743
        %v5777 = vpop.xlane.xlu0 %5776
        %5778 = vadd.xlane.f32.xlu0 %v5744
        %v5779 = vpop.xlane.xlu0 %5778
        %5780 = vadd.xlane.f32.xlu0 %v5745
        %v5781 = vpop.xlane.xlu0 %5780
        %5782 = vadd.xlane.f32.xlu0 %v5746
        %v5783 = vpop.xlane.xlu0 %5782
        %5784 = vadd.xlane.f32.xlu0 %v5747
        %v5785 = vpop.xlane.xlu0 %5784
        %5786 = vadd.xlane.f32.xlu0 %v5748
        %v5787 = vpop.xlane.xlu0 %5786
        %5788 = vadd.xlane.f32.xlu0 %v5749
        %v5789 = vpop.xlane.xlu0 %5788
        %5790 = vadd.xlane.f32.xlu0 %v5750
        %v5791 = vpop.xlane.xlu0 %5790
        %5792 = vadd.xlane.f32.xlu0 %v5751
        %v5793 = vpop.xlane.xlu0 %5792
        %5794 = vadd.xlane.f32.xlu0 %v5752
        %v5795 = vpop.xlane.xlu0 %5794
        %5796 = vadd.xlane.f32.xlu0 %v5753
        %v5797 = vpop.xlane.xlu0 %5796
        %5798 = vadd.xlane.f32.xlu0 %v5754
        %v5799 = vpop.xlane.xlu0 %5798
        %5800 = vadd.xlane.f32.xlu0 %v5755
        %v5801 = vpop.xlane.xlu0 %5800
        %5802 = vadd.xlane.f32.xlu0 %v5756
        %v5803 = vpop.xlane.xlu0 %5802
        %5804 = vadd.xlane.f32.xlu0 %v5757
        %v5805 = vpop.xlane.xlu0 %5804
        %5806 = vadd.xlane.f32.xlu0 %v5758
        %v5807 = vpop.xlane.xlu0 %5806
        %5808 = vadd.xlane.f32.xlu0 %v5759
        %v5809 = vpop.xlane.xlu0 %5808
        %5810 = vadd.xlane.f32.xlu0 %v5760
        %v5811 = vpop.xlane.xlu0 %5810
        %5812 = vadd.xlane.f32.xlu0 %v5761
        %v5813 = vpop.xlane.xlu0 %5812
        %5814 = vadd.xlane.f32.xlu0 %v5762
        %v5815 = vpop.xlane.xlu0 %5814
        %5816 = vadd.xlane.f32.xlu0 %v5763
        %v5817 = vpop.xlane.xlu0 %5816
        %5818 = vadd.xlane.f32.xlu0 %v5764
        %v5819 = vpop.xlane.xlu0 %5818
        %5820 = vadd.xlane.f32.xlu0 %v5765
        %v5821 = vpop.xlane.xlu0 %5820
        %5822 = vadd.xlane.f32.xlu0 %v5766
        %v5823 = vpop.xlane.xlu0 %5822
        %5824 = vadd.xlane.f32.xlu0 %v5767
        %v5825 = vpop.xlane.xlu0 %5824
        %5826 = vadd.xlane.f32.xlu0 %v5768
        %v5827 = vpop.xlane.xlu0 %5826
        %5828 = vadd.xlane.f32.xlu0 %v5769
        %v5829 = vpop.xlane.xlu0 %5828
        %5830 = vadd.xlane.f32.xlu0 %v5770
        %v5831 = vpop.xlane.xlu0 %5830
        %5832 = vadd.xlane.f32.xlu0 %v5771
        %v5833 = vpop.xlane.xlu0 %5832
        %5834 = vadd.xlane.f32.xlu0 %v5772
        %v5835 = vpop.xlane.xlu0 %5834
        %5836 = vadd.xlane.f32.xlu0 %v5773
        %v5837 = vpop.xlane.xlu0 %5836
        %v5838 = vmul.f32 %v5775, 0.03125
        %v5839 = vmul.f32 %v5777, 0.03125
        %v5840 = vmul.f32 %v5779, 0.03125
        %v5841 = vmul.f32 %v5781, 0.03125
        %v5842 = vmul.f32 %v5783, 0.03125
        %v5843 = vmul.f32 %v5785, 0.03125
        %v5844 = vmul.f32 %v5787, 0.03125
        %v5845 = vmul.f32 %v5789, 0.03125
        %v5846 = vmul.f32 %v5791, 0.03125
        %v5847 = vmul.f32 %v5793, 0.03125
        %v5848 = vmul.f32 %v5795, 0.03125
        %v5849 = vmul.f32 %v5797, 0.03125
        %v5850 = vmul.f32 %v5799, 0.03125
        %v5851 = vmul.f32 %v5801, 0.03125
        %v5852 = vmul.f32 %v5803, 0.03125
        %v5853 = vmul.f32 %v5805, 0.03125
        %v5854 = vmul.f32 %v5807, 0.03125
        %v5855 = vmul.f32 %v5809, 0.03125
        %v5856 = vmul.f32 %v5811, 0.03125
        %v5857 = vmul.f32 %v5813, 0.03125
        %v5858 = vmul.f32 %v5815, 0.03125
        %v5859 = vmul.f32 %v5817, 0.03125
        %v5860 = vmul.f32 %v5819, 0.03125
        %v5861 = vmul.f32 %v5821, 0.03125
        %v5862 = vmul.f32 %v5823, 0.03125
        %v5863 = vmul.f32 %v5825, 0.03125
        %v5864 = vmul.f32 %v5827, 0.03125
        %v5865 = vmul.f32 %v5829, 0.03125
        %v5866 = vmul.f32 %v5831, 0.03125
        %v5867 = vmul.f32 %v5833, 0.03125
        %v5868 = vmul.f32 %v5835, 0.03125
        %v5869 = vmul.f32 %v5837, 0.03125
        %v5870 = vadd.f32 %v5838, 1e-05
        %v5871 = vadd.f32 %v5839, 1e-05
        %v5872 = vadd.f32 %v5840, 1e-05
        %v5873 = vadd.f32 %v5841, 1e-05
        %v5874 = vadd.f32 %v5842, 1e-05
        %v5875 = vadd.f32 %v5843, 1e-05
        %v5876 = vadd.f32 %v5844, 1e-05
        %v5877 = vadd.f32 %v5845, 1e-05
        %v5878 = vadd.f32 %v5846, 1e-05
        %v5879 = vadd.f32 %v5847, 1e-05
        %v5880 = vadd.f32 %v5848, 1e-05
        %v5881 = vadd.f32 %v5849, 1e-05
        %v5882 = vadd.f32 %v5850, 1e-05
        %v5883 = vadd.f32 %v5851, 1e-05
        %v5884 = vadd.f32 %v5852, 1e-05
        %v5885 = vadd.f32 %v5853, 1e-05
        %v5886 = vadd.f32 %v5854, 1e-05
        %v5887 = vadd.f32 %v5855, 1e-05
        %v5888 = vadd.f32 %v5856, 1e-05
        %v5889 = vadd.f32 %v5857, 1e-05
        %v5890 = vadd.f32 %v5858, 1e-05
        %v5891 = vadd.f32 %v5859, 1e-05
        %v5892 = vadd.f32 %v5860, 1e-05
        %v5893 = vadd.f32 %v5861, 1e-05
        %v5894 = vadd.f32 %v5862, 1e-05
        %v5895 = vadd.f32 %v5863, 1e-05
        %v5896 = vadd.f32 %v5864, 1e-05
        %v5897 = vadd.f32 %v5865, 1e-05
        %v5898 = vadd.f32 %v5866, 1e-05
        %v5899 = vadd.f32 %v5867, 1e-05
        %v5900 = vadd.f32 %v5868, 1e-05
        %v5901 = vadd.f32 %v5869, 1e-05
        %v5902 = vrsqrt.pop %v5870
        %v5903 = vmul.f32 %v5902, %v5870
        %v5904 = vmul.f32 %v5903, %v5902
        %v5905 = vmul.f32 0.5, %v5904
        %v5906 = vsub.f32 1.5, %v5905
        %v5907 = vmul.f32 %v5902, %v5906
        %vm5908 = vweird.f32 %v5870
        %vm5909 = vweird.f32 %v5902
        %vm5910 = vmor %vm5908, %vm5909
        %v5911 = vsel %vm5910, %v5902, %v5907
        %v5912 = vrsqrt.pop %v5871
        %v5913 = vmul.f32 %v5912, %v5871
        %v5914 = vmul.f32 %v5913, %v5912
        %v5915 = vmul.f32 0.5, %v5914
        %v5916 = vsub.f32 1.5, %v5915
        %v5917 = vmul.f32 %v5912, %v5916
        %vm5918 = vweird.f32 %v5871
        %vm5919 = vweird.f32 %v5912
        %vm5920 = vmor %vm5918, %vm5919
        %v5921 = vsel %vm5920, %v5912, %v5917
        %v5922 = vrsqrt.pop %v5872
        %v5923 = vmul.f32 %v5922, %v5872
        %v5924 = vmul.f32 %v5923, %v5922
        %v5925 = vmul.f32 0.5, %v5924
        %v5926 = vsub.f32 1.5, %v5925
        %v5927 = vmul.f32 %v5922, %v5926
        %vm5928 = vweird.f32 %v5872
        %vm5929 = vweird.f32 %v5922
        %vm5930 = vmor %vm5928, %vm5929
        %v5931 = vsel %vm5930, %v5922, %v5927
        %v5932 = vrsqrt.pop %v5873
        %v5933 = vmul.f32 %v5932, %v5873
        %v5934 = vmul.f32 %v5933, %v5932
        %v5935 = vmul.f32 0.5, %v5934
        %v5936 = vsub.f32 1.5, %v5935
        %v5937 = vmul.f32 %v5932, %v5936
        %vm5938 = vweird.f32 %v5873
        %vm5939 = vweird.f32 %v5932
        %vm5940 = vmor %vm5938, %vm5939
        %v5941 = vsel %vm5940, %v5932, %v5937
        %v5942 = vrsqrt.pop %v5874
        %v5943 = vmul.f32 %v5942, %v5874
        %v5944 = vmul.f32 %v5943, %v5942
        %v5945 = vmul.f32 0.5, %v5944
        %v5946 = vsub.f32 1.5, %v5945
        %v5947 = vmul.f32 %v5942, %v5946
        %vm5948 = vweird.f32 %v5874
        %vm5949 = vweird.f32 %v5942
        %vm5950 = vmor %vm5948, %vm5949
        %v5951 = vsel %vm5950, %v5942, %v5947
        %v5952 = vrsqrt.pop %v5875
        %v5953 = vmul.f32 %v5952, %v5875
        %v5954 = vmul.f32 %v5953, %v5952
        %v5955 = vmul.f32 0.5, %v5954
        %v5956 = vsub.f32 1.5, %v5955
        %v5957 = vmul.f32 %v5952, %v5956
        %vm5958 = vweird.f32 %v5875
        %vm5959 = vweird.f32 %v5952
        %vm5960 = vmor %vm5958, %vm5959
        %v5961 = vsel %vm5960, %v5952, %v5957
        %v5962 = vrsqrt.pop %v5876
        %v5963 = vmul.f32 %v5962, %v5876
        %v5964 = vmul.f32 %v5963, %v5962
        %v5965 = vmul.f32 0.5, %v5964
        %v5966 = vsub.f32 1.5, %v5965
        %v5967 = vmul.f32 %v5962, %v5966
        %vm5968 = vweird.f32 %v5876
        %vm5969 = vweird.f32 %v5962
        %vm5970 = vmor %vm5968, %vm5969
        %v5971 = vsel %vm5970, %v5962, %v5967
        %v5972 = vrsqrt.pop %v5877
        %v5973 = vmul.f32 %v5972, %v5877
        %v5974 = vmul.f32 %v5973, %v5972
        %v5975 = vmul.f32 0.5, %v5974
        %v5976 = vsub.f32 1.5, %v5975
        %v5977 = vmul.f32 %v5972, %v5976
        %vm5978 = vweird.f32 %v5877
        %vm5979 = vweird.f32 %v5972
        %vm5980 = vmor %vm5978, %vm5979
        %v5981 = vsel %vm5980, %v5972, %v5977
        %v5982 = vrsqrt.pop %v5878
        %v5983 = vmul.f32 %v5982, %v5878
        %v5984 = vmul.f32 %v5983, %v5982
        %v5985 = vmul.f32 0.5, %v5984
        %v5986 = vsub.f32 1.5, %v5985
        %v5987 = vmul.f32 %v5982, %v5986
        %vm5988 = vweird.f32 %v5878
        %vm5989 = vweird.f32 %v5982
        %vm5990 = vmor %vm5988, %vm5989
        %v5991 = vsel %vm5990, %v5982, %v5987
        %v5992 = vrsqrt.pop %v5879
        %v5993 = vmul.f32 %v5992, %v5879
        %v5994 = vmul.f32 %v5993, %v5992
        %v5995 = vmul.f32 0.5, %v5994
        %v5996 = vsub.f32 1.5, %v5995
        %v5997 = vmul.f32 %v5992, %v5996
        %vm5998 = vweird.f32 %v5879
        %vm5999 = vweird.f32 %v5992
        %vm6000 = vmor %vm5998, %vm5999
        %v6001 = vsel %vm6000, %v5992, %v5997
        %v6002 = vrsqrt.pop %v5880
        %v6003 = vmul.f32 %v6002, %v5880
        %v6004 = vmul.f32 %v6003, %v6002
        %v6005 = vmul.f32 0.5, %v6004
        %v6006 = vsub.f32 1.5, %v6005
        %v6007 = vmul.f32 %v6002, %v6006
        %vm6008 = vweird.f32 %v5880
        %vm6009 = vweird.f32 %v6002
        %vm6010 = vmor %vm6008, %vm6009
        %v6011 = vsel %vm6010, %v6002, %v6007
        %v6012 = vrsqrt.pop %v5881
        %v6013 = vmul.f32 %v6012, %v5881
        %v6014 = vmul.f32 %v6013, %v6012
        %v6015 = vmul.f32 0.5, %v6014
        %v6016 = vsub.f32 1.5, %v6015
        %v6017 = vmul.f32 %v6012, %v6016
        %vm6018 = vweird.f32 %v5881
        %vm6019 = vweird.f32 %v6012
        %vm6020 = vmor %vm6018, %vm6019
        %v6021 = vsel %vm6020, %v6012, %v6017
        %v6022 = vrsqrt.pop %v5882
        %v6023 = vmul.f32 %v6022, %v5882
        %v6024 = vmul.f32 %v6023, %v6022
        %v6025 = vmul.f32 0.5, %v6024
        %v6026 = vsub.f32 1.5, %v6025
        %v6027 = vmul.f32 %v6022, %v6026
        %vm6028 = vweird.f32 %v5882
        %vm6029 = vweird.f32 %v6022
        %vm6030 = vmor %vm6028, %vm6029
        %v6031 = vsel %vm6030, %v6022, %v6027
        %v6032 = vrsqrt.pop %v5883
        %v6033 = vmul.f32 %v6032, %v5883
        %v6034 = vmul.f32 %v6033, %v6032
        %v6035 = vmul.f32 0.5, %v6034
        %v6036 = vsub.f32 1.5, %v6035
        %v6037 = vmul.f32 %v6032, %v6036
        %vm6038 = vweird.f32 %v5883
        %vm6039 = vweird.f32 %v6032
        %vm6040 = vmor %vm6038, %vm6039
        %v6041 = vsel %vm6040, %v6032, %v6037
        %v6042 = vrsqrt.pop %v5884
        %v6043 = vmul.f32 %v6042, %v5884
        %v6044 = vmul.f32 %v6043, %v6042
        %v6045 = vmul.f32 0.5, %v6044
        %v6046 = vsub.f32 1.5, %v6045
        %v6047 = vmul.f32 %v6042, %v6046
        %vm6048 = vweird.f32 %v5884
        %vm6049 = vweird.f32 %v6042
        %vm6050 = vmor %vm6048, %vm6049
        %v6051 = vsel %vm6050, %v6042, %v6047
        %v6052 = vrsqrt.pop %v5885
        %v6053 = vmul.f32 %v6052, %v5885
        %v6054 = vmul.f32 %v6053, %v6052
        %v6055 = vmul.f32 0.5, %v6054
        %v6056 = vsub.f32 1.5, %v6055
        %v6057 = vmul.f32 %v6052, %v6056
        %vm6058 = vweird.f32 %v5885
        %vm6059 = vweird.f32 %v6052
        %vm6060 = vmor %vm6058, %vm6059
        %v6061 = vsel %vm6060, %v6052, %v6057
        %v6062 = vrsqrt.pop %v5886
        %v6063 = vmul.f32 %v6062, %v5886
        %v6064 = vmul.f32 %v6063, %v6062
        %v6065 = vmul.f32 0.5, %v6064
        %v6066 = vsub.f32 1.5, %v6065
        %v6067 = vmul.f32 %v6062, %v6066
        %vm6068 = vweird.f32 %v5886
        %vm6069 = vweird.f32 %v6062
        %vm6070 = vmor %vm6068, %vm6069
        %v6071 = vsel %vm6070, %v6062, %v6067
        %v6072 = vrsqrt.pop %v5887
        %v6073 = vmul.f32 %v6072, %v5887
        %v6074 = vmul.f32 %v6073, %v6072
        %v6075 = vmul.f32 0.5, %v6074
        %v6076 = vsub.f32 1.5, %v6075
        %v6077 = vmul.f32 %v6072, %v6076
        %vm6078 = vweird.f32 %v5887
        %vm6079 = vweird.f32 %v6072
        %vm6080 = vmor %vm6078, %vm6079
        %v6081 = vsel %vm6080, %v6072, %v6077
        %v6082 = vrsqrt.pop %v5888
        %v6083 = vmul.f32 %v6082, %v5888
        %v6084 = vmul.f32 %v6083, %v6082
        %v6085 = vmul.f32 0.5, %v6084
        %v6086 = vsub.f32 1.5, %v6085
        %v6087 = vmul.f32 %v6082, %v6086
        %vm6088 = vweird.f32 %v5888
        %vm6089 = vweird.f32 %v6082
        %vm6090 = vmor %vm6088, %vm6089
        %v6091 = vsel %vm6090, %v6082, %v6087
        %v6092 = vrsqrt.pop %v5889
        %v6093 = vmul.f32 %v6092, %v5889
        %v6094 = vmul.f32 %v6093, %v6092
        %v6095 = vmul.f32 0.5, %v6094
        %v6096 = vsub.f32 1.5, %v6095
        %v6097 = vmul.f32 %v6092, %v6096
        %vm6098 = vweird.f32 %v5889
        %vm6099 = vweird.f32 %v6092
        %vm6100 = vmor %vm6098, %vm6099
        %v6101 = vsel %vm6100, %v6092, %v6097
        %v6102 = vrsqrt.pop %v5890
        %v6103 = vmul.f32 %v6102, %v5890
        %v6104 = vmul.f32 %v6103, %v6102
        %v6105 = vmul.f32 0.5, %v6104
        %v6106 = vsub.f32 1.5, %v6105
        %v6107 = vmul.f32 %v6102, %v6106
        %vm6108 = vweird.f32 %v5890
        %vm6109 = vweird.f32 %v6102
        %vm6110 = vmor %vm6108, %vm6109
        %v6111 = vsel %vm6110, %v6102, %v6107
        %v6112 = vrsqrt.pop %v5891
        %v6113 = vmul.f32 %v6112, %v5891
        %v6114 = vmul.f32 %v6113, %v6112
        %v6115 = vmul.f32 0.5, %v6114
        %v6116 = vsub.f32 1.5, %v6115
        %v6117 = vmul.f32 %v6112, %v6116
        %vm6118 = vweird.f32 %v5891
        %vm6119 = vweird.f32 %v6112
        %vm6120 = vmor %vm6118, %vm6119
        %v6121 = vsel %vm6120, %v6112, %v6117
        %v6122 = vrsqrt.pop %v5892
        %v6123 = vmul.f32 %v6122, %v5892
        %v6124 = vmul.f32 %v6123, %v6122
        %v6125 = vmul.f32 0.5, %v6124
        %v6126 = vsub.f32 1.5, %v6125
        %v6127 = vmul.f32 %v6122, %v6126
        %vm6128 = vweird.f32 %v5892
        %vm6129 = vweird.f32 %v6122
        %vm6130 = vmor %vm6128, %vm6129
        %v6131 = vsel %vm6130, %v6122, %v6127
        %v6132 = vrsqrt.pop %v5893
        %v6133 = vmul.f32 %v6132, %v5893
        %v6134 = vmul.f32 %v6133, %v6132
        %v6135 = vmul.f32 0.5, %v6134
        %v6136 = vsub.f32 1.5, %v6135
        %v6137 = vmul.f32 %v6132, %v6136
        %vm6138 = vweird.f32 %v5893
        %vm6139 = vweird.f32 %v6132
        %vm6140 = vmor %vm6138, %vm6139
        %v6141 = vsel %vm6140, %v6132, %v6137
        %v6142 = vrsqrt.pop %v5894
        %v6143 = vmul.f32 %v6142, %v5894
        %v6144 = vmul.f32 %v6143, %v6142
        %v6145 = vmul.f32 0.5, %v6144
        %v6146 = vsub.f32 1.5, %v6145
        %v6147 = vmul.f32 %v6142, %v6146
        %vm6148 = vweird.f32 %v5894
        %vm6149 = vweird.f32 %v6142
        %vm6150 = vmor %vm6148, %vm6149
        %v6151 = vsel %vm6150, %v6142, %v6147
        %v6152 = vrsqrt.pop %v5895
        %v6153 = vmul.f32 %v6152, %v5895
        %v6154 = vmul.f32 %v6153, %v6152
        %v6155 = vmul.f32 0.5, %v6154
        %v6156 = vsub.f32 1.5, %v6155
        %v6157 = vmul.f32 %v6152, %v6156
        %vm6158 = vweird.f32 %v5895
        %vm6159 = vweird.f32 %v6152
        %vm6160 = vmor %vm6158, %vm6159
        %v6161 = vsel %vm6160, %v6152, %v6157
        %v6162 = vrsqrt.pop %v5896
        %v6163 = vmul.f32 %v6162, %v5896
        %v6164 = vmul.f32 %v6163, %v6162
        %v6165 = vmul.f32 0.5, %v6164
        %v6166 = vsub.f32 1.5, %v6165
        %v6167 = vmul.f32 %v6162, %v6166
        %vm6168 = vweird.f32 %v5896
        %vm6169 = vweird.f32 %v6162
        %vm6170 = vmor %vm6168, %vm6169
        %v6171 = vsel %vm6170, %v6162, %v6167
        %v6172 = vrsqrt.pop %v5897
        %v6173 = vmul.f32 %v6172, %v5897
        %v6174 = vmul.f32 %v6173, %v6172
        %v6175 = vmul.f32 0.5, %v6174
        %v6176 = vsub.f32 1.5, %v6175
        %v6177 = vmul.f32 %v6172, %v6176
        %vm6178 = vweird.f32 %v5897
        %vm6179 = vweird.f32 %v6172
        %vm6180 = vmor %vm6178, %vm6179
        %v6181 = vsel %vm6180, %v6172, %v6177
        %v6182 = vrsqrt.pop %v5898
        %v6183 = vmul.f32 %v6182, %v5898
        %v6184 = vmul.f32 %v6183, %v6182
        %v6185 = vmul.f32 0.5, %v6184
        %v6186 = vsub.f32 1.5, %v6185
        %v6187 = vmul.f32 %v6182, %v6186
        %vm6188 = vweird.f32 %v5898
        %vm6189 = vweird.f32 %v6182
        %vm6190 = vmor %vm6188, %vm6189
        %v6191 = vsel %vm6190, %v6182, %v6187
        %v6192 = vrsqrt.pop %v5899
        %v6193 = vmul.f32 %v6192, %v5899
        %v6194 = vmul.f32 %v6193, %v6192
        %v6195 = vmul.f32 0.5, %v6194
        %v6196 = vsub.f32 1.5, %v6195
        %v6197 = vmul.f32 %v6192, %v6196
        %vm6198 = vweird.f32 %v5899
        %vm6199 = vweird.f32 %v6192
        %vm6200 = vmor %vm6198, %vm6199
        %v6201 = vsel %vm6200, %v6192, %v6197
        %v6202 = vrsqrt.pop %v5900
        %v6203 = vmul.f32 %v6202, %v5900
        %v6204 = vmul.f32 %v6203, %v6202
        %v6205 = vmul.f32 0.5, %v6204
        %v6206 = vsub.f32 1.5, %v6205
        %v6207 = vmul.f32 %v6202, %v6206
        %vm6208 = vweird.f32 %v5900
        %vm6209 = vweird.f32 %v6202
        %vm6210 = vmor %vm6208, %vm6209
        %v6211 = vsel %vm6210, %v6202, %v6207
        %v6212 = vrsqrt.pop %v5901
        %v6213 = vmul.f32 %v6212, %v5901
        %v6214 = vmul.f32 %v6213, %v6212
        %v6215 = vmul.f32 0.5, %v6214
        %v6216 = vsub.f32 1.5, %v6215
        %v6217 = vmul.f32 %v6212, %v6216
        %vm6218 = vweird.f32 %v5901
        %vm6219 = vweird.f32 %v6212
        %vm6220 = vmor %vm6218, %vm6219
        %v6221 = vsel %vm6220, %v6212, %v6217
        %v6222 = vmul.f32 %v5710, %v5911
        %v6223 = vmul.f32 %v5711, %v5921
        %v6224 = vmul.f32 %v5712, %v5931
        %v6225 = vmul.f32 %v5713, %v5941
        %v6226 = vmul.f32 %v5714, %v5951
        %v6227 = vmul.f32 %v5715, %v5961
        %v6228 = vmul.f32 %v5716, %v5971
        %v6229 = vmul.f32 %v5717, %v5981
        %v6230 = vmul.f32 %v5718, %v5991
        %v6231 = vmul.f32 %v5719, %v6001
        %v6232 = vmul.f32 %v5720, %v6011
        %v6233 = vmul.f32 %v5721, %v6021
        %v6234 = vmul.f32 %v5722, %v6031
        %v6235 = vmul.f32 %v5723, %v6041
        %v6236 = vmul.f32 %v5724, %v6051
        %v6237 = vmul.f32 %v5725, %v6061
        %v6238 = vmul.f32 %v5726, %v6071
        %v6239 = vmul.f32 %v5727, %v6081
        %v6240 = vmul.f32 %v5728, %v6091
        %v6241 = vmul.f32 %v5729, %v6101
        %v6242 = vmul.f32 %v5730, %v6111
        %v6243 = vmul.f32 %v5731, %v6121
        %v6244 = vmul.f32 %v5732, %v6131
        %v6245 = vmul.f32 %v5733, %v6141
        %v6246 = vmul.f32 %v5734, %v6151
        %v6247 = vmul.f32 %v5735, %v6161
        %v6248 = vmul.f32 %v5736, %v6171
        %v6249 = vmul.f32 %v5737, %v6181
        %v6250 = vmul.f32 %v5738, %v6191
        %v6251 = vmul.f32 %v5739, %v6201
        %v6252 = vmul.f32 %v5740, %v6211
        %v6253 = vmul.f32 %v5741, %v6221
        %v6254 = vperm.slane %v599, 4
        %v6255 = vmul.f32 %v6222, %v6254
        %v6256 = vmul.f32 %v6223, %v6254
        %v6257 = vmul.f32 %v6224, %v6254
        %v6258 = vmul.f32 %v6225, %v6254
        %v6259 = vmul.f32 %v6226, %v6254
        %v6260 = vmul.f32 %v6227, %v6254
        %v6261 = vmul.f32 %v6228, %v6254
        %v6262 = vmul.f32 %v6229, %v6254
        %v6263 = vmul.f32 %v6230, %v6254
        %v6264 = vmul.f32 %v6231, %v6254
        %v6265 = vmul.f32 %v6232, %v6254
        %v6266 = vmul.f32 %v6233, %v6254
        %v6267 = vmul.f32 %v6234, %v6254
        %v6268 = vmul.f32 %v6235, %v6254
        %v6269 = vmul.f32 %v6236, %v6254
        %v6270 = vmul.f32 %v6237, %v6254
        %v6271 = vmul.f32 %v6238, %v6254
        %v6272 = vmul.f32 %v6239, %v6254
        %v6273 = vmul.f32 %v6240, %v6254
        %v6274 = vmul.f32 %v6241, %v6254
        %v6275 = vmul.f32 %v6242, %v6254
        %v6276 = vmul.f32 %v6243, %v6254
        %v6277 = vmul.f32 %v6244, %v6254
        %v6278 = vmul.f32 %v6245, %v6254
        %v6279 = vmul.f32 %v6246, %v6254
        %v6280 = vmul.f32 %v6247, %v6254
        %v6281 = vmul.f32 %v6248, %v6254
        %v6282 = vmul.f32 %v6249, %v6254
        %v6283 = vmul.f32 %v6250, %v6254
        %v6284 = vmul.f32 %v6251, %v6254
        %v6285 = vmul.f32 %v6252, %v6254
        %v6286 = vmul.f32 %v6253, %v6254
        %v6287 = vperm.slane %v599, 5
        %v6288 = vadd.f32 %v6255, %v6287
        %v6289 = vadd.f32 %v6256, %v6287
        %v6290 = vadd.f32 %v6257, %v6287
        %v6291 = vadd.f32 %v6258, %v6287
        %v6292 = vadd.f32 %v6259, %v6287
        %v6293 = vadd.f32 %v6260, %v6287
        %v6294 = vadd.f32 %v6261, %v6287
        %v6295 = vadd.f32 %v6262, %v6287
        %v6296 = vadd.f32 %v6263, %v6287
        %v6297 = vadd.f32 %v6264, %v6287
        %v6298 = vadd.f32 %v6265, %v6287
        %v6299 = vadd.f32 %v6266, %v6287
        %v6300 = vadd.f32 %v6267, %v6287
        %v6301 = vadd.f32 %v6268, %v6287
        %v6302 = vadd.f32 %v6269, %v6287
        %v6303 = vadd.f32 %v6270, %v6287
        %v6304 = vadd.f32 %v6271, %v6287
        %v6305 = vadd.f32 %v6272, %v6287
        %v6306 = vadd.f32 %v6273, %v6287
        %v6307 = vadd.f32 %v6274, %v6287
        %v6308 = vadd.f32 %v6275, %v6287
        %v6309 = vadd.f32 %v6276, %v6287
        %v6310 = vadd.f32 %v6277, %v6287
        %v6311 = vadd.f32 %v6278, %v6287
        %v6312 = vadd.f32 %v6279, %v6287
        %v6313 = vadd.f32 %v6280, %v6287
        %v6314 = vadd.f32 %v6281, %v6287
        %v6315 = vadd.f32 %v6282, %v6287
        %v6316 = vadd.f32 %v6283, %v6287
        %v6317 = vadd.f32 %v6284, %v6287
        %v6318 = vadd.f32 %v6285, %v6287
        %v6319 = vadd.f32 %v6286, %v6287
        %6320 = vst [vmem:[#allocation2] sm:$0xff] %v6288
        %6321 = vst [vmem:[#allocation2 + $0x8] sm:$0xff] %v6289
        %6322 = vst [vmem:[#allocation2 + $0x10] sm:$0xff] %v6290
        %6323 = vst [vmem:[#allocation2 + $0x18] sm:$0xff] %v6291
        %6324 = vst [vmem:[#allocation2 + $0x20] sm:$0xff] %v6292
        %6325 = vst [vmem:[#allocation2 + $0x28] sm:$0xff] %v6293
        %6326 = vst [vmem:[#allocation2 + $0x30] sm:$0xff] %v6294
        %6327 = vst [vmem:[#allocation2 + $0x38] sm:$0xff] %v6295
        %6328 = vst [vmem:[#allocation2 + $0x40] sm:$0xff] %v6296
        %6329 = vst [vmem:[#allocation2 + $0x48] sm:$0xff] %v6297
        %6330 = vst [vmem:[#allocation2 + $0x50] sm:$0xff] %v6298
        %6331 = vst [vmem:[#allocation2 + $0x58] sm:$0xff] %v6299
        %6332 = vst [vmem:[#allocation2 + $0x60] sm:$0xff] %v6300
        %6333 = vst [vmem:[#allocation2 + $0x68] sm:$0xff] %v6301
        %6334 = vst [vmem:[#allocation2 + $0x70] sm:$0xff] %v6302
        %6335 = vst [vmem:[#allocation2 + $0x78] sm:$0xff] %v6303
        %6336 = vst [vmem:[#allocation2 + $0x80] sm:$0xff] %v6304
        %6337 = vst [vmem:[#allocation2 + $0x88] sm:$0xff] %v6305
        %6338 = vst [vmem:[#allocation2 + $0x90] sm:$0xff] %v6306
        %6339 = vst [vmem:[#allocation2 + $0x98] sm:$0xff] %v6307
        %6340 = vst [vmem:[#allocation2 + $0xa0] sm:$0xff] %v6308
        %6341 = vst [vmem:[#allocation2 + $0xa8] sm:$0xff] %v6309
        %6342 = vst [vmem:[#allocation2 + $0xb0] sm:$0xff] %v6310
        %6343 = vst [vmem:[#allocation2 + $0xb8] sm:$0xff] %v6311
        %6344 = vst [vmem:[#allocation2 + $0xc0] sm:$0xff] %v6312
        %6345 = vst [vmem:[#allocation2 + $0xc8] sm:$0xff] %v6313
        %6346 = vst [vmem:[#allocation2 + $0xd0] sm:$0xff] %v6314
        %6347 = vst [vmem:[#allocation2 + $0xd8] sm:$0xff] %v6315
        %6348 = vst [vmem:[#allocation2 + $0xe0] sm:$0xff] %v6316
        %6349 = vst [vmem:[#allocation2 + $0xe8] sm:$0xff] %v6317
        %6350 = vst [vmem:[#allocation2 + $0xf0] sm:$0xff] %v6318
        %6351 = vst [vmem:[#allocation2 + $0xf8] sm:$0xff] %v6319
        %p6352 = scmp.eq.s32.totalorder %s30, 1
        // Predicated region
        $region65: #{_forward.1} parent=51 // pred_check
          %p6353 = pneg %p6352
        $region66: #{_forward.1} parent=51 // pred_check_branch
          %6355 = sbr.rel (%p6353) target = $region68
        $region67: #{_forward.1} parent=51 // pred_region
          %6356 = vst [vmem:[%s496] sm:$0xff] %v6288
          %6357 = vst [vmem:[%s496 + $0x8] sm:$0xff] %v6289
          %6358 = vst [vmem:[%s496 + $0x10] sm:$0xff] %v6290
          %6359 = vst [vmem:[%s496 + $0x18] sm:$0xff] %v6291
          %6360 = vst [vmem:[%s496 + $0x20] sm:$0xff] %v6292
          %6361 = vst [vmem:[%s496 + $0x28] sm:$0xff] %v6293
          %6362 = vst [vmem:[%s496 + $0x30] sm:$0xff] %v6294
          %6363 = vst [vmem:[%s496 + $0x38] sm:$0xff] %v6295
          %6364 = vst [vmem:[%s496 + $0x40] sm:$0xff] %v6296
          %6365 = vst [vmem:[%s496 + $0x48] sm:$0xff] %v6297
          %6366 = vst [vmem:[%s496 + $0x50] sm:$0xff] %v6298
          %6367 = vst [vmem:[%s496 + $0x58] sm:$0xff] %v6299
          %6368 = vst [vmem:[%s496 + $0x60] sm:$0xff] %v6300
          %6369 = vst [vmem:[%s496 + $0x68] sm:$0xff] %v6301
          %6370 = vst [vmem:[%s496 + $0x70] sm:$0xff] %v6302
          %6371 = vst [vmem:[%s496 + $0x78] sm:$0xff] %v6303
          %6372 = vst [vmem:[%s496 + $0x80] sm:$0xff] %v6304
          %6373 = vst [vmem:[%s496 + $0x88] sm:$0xff] %v6305
          %6374 = vst [vmem:[%s496 + $0x90] sm:$0xff] %v6306
          %6375 = vst [vmem:[%s496 + $0x98] sm:$0xff] %v6307
          %6376 = vst [vmem:[%s496 + $0xa0] sm:$0xff] %v6308
          %6377 = vst [vmem:[%s496 + $0xa8] sm:$0xff] %v6309
          %6378 = vst [vmem:[%s496 + $0xb0] sm:$0xff] %v6310
          %6379 = vst [vmem:[%s496 + $0xb8] sm:$0xff] %v6311
          %6380 = vst [vmem:[%s496 + $0xc0] sm:$0xff] %v6312
          %6381 = vst [vmem:[%s496 + $0xc8] sm:$0xff] %v6313
          %6382 = vst [vmem:[%s496 + $0xd0] sm:$0xff] %v6314
          %6383 = vst [vmem:[%s496 + $0xd8] sm:$0xff] %v6315
          %6384 = vst [vmem:[%s496 + $0xe0] sm:$0xff] %v6316
          %6385 = vst [vmem:[%s496 + $0xe8] sm:$0xff] %v6317
          %6386 = vst [vmem:[%s496 + $0xf0] sm:$0xff] %v6318
          %6387 = vst [vmem:[%s496 + $0xf8] sm:$0xff] %v6319
        $region68: #{_forward.1} parent=51 // pred_fallthru
          _
        %s6388 = smul.u32 4, %s29
        %p6389 = scmp.lt.s32.totalorder %s6388, 3
        %s6390 = scalar_select %p6389, %s6388, 3
        %s6391 = smul.addr %s6390, 8
        %s6392 = smul.addr %s6391, 8
        %s6393 = scalar_lea.vmem %s8, %s6392
        // Predicated region
        $region69: #{_forward.1} parent=51 // pred_check
          %p6394 = pneg %p263
        $region70: #{_forward.1} parent=51 // pred_check_branch
          %6396 = sbr.rel (%p6394) target = $region72
        $region71: #{_forward.1} parent=51 // pred_region
          %s6397 = smul.u32 4, %s29
        $region72: #{_forward.1} parent=51 // pred_fallthru
          _
        // Predicated region
        $region73: #{_forward.1} parent=51 // pred_check
          %p6398 = pneg %p263
        $region74: #{_forward.1} parent=51 // pred_check_branch
          %6400 = sbr.rel (%p6398) target = $region76
        $region75: #{_forward.1} parent=51 // pred_region
          %s6401 = smul.u32 4, %s29
          %p6402 = scmp.lt.s32.totalorder %s6401, 3
          %s6403 = scalar_select %p6402, %s6401, 3
          %s6404 = smul.addr %s6403, 8
          %s6405 = smul.addr %s6404, 8
          %s6406 = scalar_lea.vmem %s8, %s6405
        $region76: #{_forward.1} parent=51 // pred_fallthru
          _
      $region52: #{_forward.1} parent=5 // pred_fallthru
        _
      %p6407 = scmp.le.s32.totalorder 2, %s20
      // Predicated region
      $region77: #{_forward.1} parent=5 // pred_check
        %p6408 = pneg %p6407
      $region78: #{_forward.1} parent=5 // pred_check_branch
        %6410 = sbr.rel (%p6408) target = $region80
      $region79: #{_forward.1} parent=5 // pred_region
        %s6411 = ssub.s32 %s20, 2
      $region80: #{_forward.1} parent=5 // pred_fallthru
        _
    $region6: #{_forward.1} parent=1 // loop_footer
      %s24 = sadd.s32 1, %s20
    $region7: #{_forward.1} parent=1 // loop_footer_branch
      %19 = sbr.rel target = $region3
    $region8: #{_forward.1} parent=1 // loop_exit
      _
    %6412 = vsyncpa [#allocation5], 1
    %s6413 = scalar_lea.sflag [#allocation5], 1
    %6414 = vsyncpa %s6413, 1
    %6415 = vsyncpa [#allocation7], 1
    %s6416 = scalar_lea.sflag [#allocation7], 1
    %6417 = vsyncpa %s6416, 1

</llo_original>
